<compile_context>
chip_gen: v7x
topology: tpu7x:2x2x1
jax: 0.10.0
libtpu: 0.0.40
codegen_flags: <defaults>
</compile_context>

<pallas_src>
import functools

import numpy as np
import jax
import jax.numpy as jnp
from jax.experimental import pallas as pl
from jax.experimental.pallas import tpu as pltpu


# ------------------------------ Pallas kernel -------------------------------

def _reduce_block_kernel(x_ref, m1_ref, b1_ref, m2_ref, b2_ref, w3_ref, b3_ref,
                         o_ref, *, kh, k1d, l_out):
    # x_ref : (1, H, W*Cin)   channels-last slab for one batch element
    # m1_ref: (kh, W*Cin,   W1*Cmid)  folded conv1 weights (one matrix per row tap)
    # m2_ref: (kh, W1*Cmid, W2)       folded conv2 weights (Cout = 1)
    # w3_ref: (k1d, Cout, H-4)        Conv1d weights, one (Cout, 508) matrix per tap
    # o_ref : (1, Cout, 1)
    x = x_ref[0]                                       # (H, W*Cin)
    h1 = x.shape[0] - kh + 1                           # H - 2

    # --- conv1 (3x3) + ReLU: sum of kh shifted MXU matmuls -------------------
    acc = jnp.dot(x[0:h1, :], m1_ref[0], preferred_element_type=jnp.float32)
    for dh in range(1, kh):
        acc = acc + jnp.dot(x[dh:dh + h1, :], m1_ref[dh],
                            preferred_element_type=jnp.float32)
    z1 = jnp.maximum(acc + b1_ref[...], 0.0)           # (H-2, W1*Cmid)

    # --- conv2 (3x3, Cout=1) + ReLU ------------------------------------------
    h2 = h1 - kh + 1                                   # H - 4
    acc = jnp.dot(z1[0:h2, :], m2_ref[0], preferred_element_type=jnp.float32)
    for dh in range(1, kh):
        acc = acc + jnp.dot(z1[dh:dh + h2, :], m2_ref[dh],
                            preferred_element_type=jnp.float32)
    z2 = jnp.maximum(acc + b2_ref[...], 0.0)           # (H-4, W-4), e.g. (508, 12)

    # --- out_conv: Conv1d(in_ch = H-4, kernel = k1d) over the width axis -----
    acc = jnp.dot(w3_ref[0], z2[:, 0:l_out], preferred_element_type=jnp.float32)
    for j in range(1, k1d):
        acc = acc + jnp.dot(w3_ref[j], z2[:, j:j + l_out],
                            preferred_element_type=jnp.float32)
    z3 = jnp.maximum(acc + b3_ref[...], 0.0)           # (Cout, L_out)

    # --- AdaptiveAvgPool1d(1): mean over length (reciprocal multiply) --------
    o_ref[0] = (jnp.sum(z3, axis=1, keepdims=True) * (1.0 / l_out)).astype(o_ref.dtype)


# ------------------------- host-side weight folding -------------------------

def _fold_conv2d(w_oihw, w_in):
    """Fold a VALID 2-D conv weight (Cout, Cin, KH, KW), applied to a
    channels-last (H, W*Cin) slab, into KH banded matrices (W*Cin, Wout*Cout)
    so that   conv(x) == sum_dh  x[dh:dh+Hout, :] @ M[dh]  (plus bias)."""
    w = np.asarray(w_oihw, np.float32)
    cout, cin, kh, kw = w.shape
    w_out = w_in - kw + 1
    m = np.zeros((kh, w_in * cin, w_out * cout), np.float32)
    for dh in range(kh):
        for wo in range(w_out):
            for dw in range(kw):
                m[dh,
                  (wo + dw) * cin:(wo + dw) * cin + cin,
                  wo * cout:(wo + 1) * cout] = w[:, :, dh, dw].T
    return m


# --------------------------------- wrapper -----------------------------------

def reduce_block_forward(x_nchw, params):
    """x_nchw: (B, Cin, H, W) float32 -> (B, out_channels) float32."""
    w1, b1 = params["conv1"]
    w2, b2 = params["conv2"]
    w3, b3 = params["out_conv"]

    B, cin, H, W = x_nchw.shape
    cmid, _, kh, kw = w1.shape
    cout, c1d_in, k1d = w3.shape
    w1o = W - kw + 1                 # width after conv1
    w2o = w1o - kw + 1               # width after conv2
    l_out = w2o - k1d + 1            # length after Conv1d
    assert c1d_in == H - 2 * (kh - 1), "Conv1d in_channels must equal H - 4"

    # fold weights (done once, host side; tiny)
    m1 = jnp.asarray(_fold_conv2d(w1, W))                                  # (kh, W*Cin, W1*Cmid)
    b1r = jnp.asarray(np.tile(np.asarray(b1, np.float32), w1o)[None, :])   # (1, W1*Cmid)
    m2 = jnp.asarray(_fold_conv2d(w2, w1o))                                # (kh, W1*Cmid, W2)
    b2r = jnp.asarray(np.tile(np.asarray(b2, np.float32), w2o)[None, :])   # (1, W2)
    w3t = jnp.asarray(np.transpose(np.asarray(w3, np.float32), (2, 0, 1))) # (k1d, Cout, H-4)
    b3c = jnp.asarray(np.asarray(b3, np.float32).reshape(cout, 1))         # (Cout, 1)

    # channels-last slab so every conv tap is a lane-dense matmul:
    #   x2[b, h, w*Cin + ci] = x[b, ci, h, w]
    x2 = jnp.transpose(x_nchw, (0, 2, 3, 1)).reshape(B, H, W * cin).astype(jnp.float32)

    kern = functools.partial(_reduce_block_kernel, kh=kh, k1d=k1d, l_out=l_out)
    out = pl.pallas_call(
        kern,
        out_shape=jax.ShapeDtypeStruct((B, cout, 1), jnp.float32),
        grid=(B,),
        in_specs=[
            pl.BlockSpec((1, H, W * cin), lambda i: (i, 0, 0)),
            pl.BlockSpec((kh, W * cin, w1o * cmid), lambda i: (0, 0, 0)),
            pl.BlockSpec((1, w1o * cmid), lambda i: (0, 0)),
            pl.BlockSpec((kh, w1o * cmid, w2o), lambda i: (0, 0, 0)),
            pl.BlockSpec((1, w2o), lambda i: (0, 0)),
            pl.BlockSpec((k1d, cout, c1d_in), lambda i: (0, 0, 0)),
            pl.BlockSpec((cout, 1), lambda i: (0, 0)),
        ],
        out_specs=pl.BlockSpec((1, cout, 1), lambda i: (i, 0, 0)),
        compiler_params=pltpu.CompilerParams(dimension_semantics=("parallel",)),
    )(x2, m1, b1r, m2, b2r, w3t, b3c)
    return out[:, :, 0]


# ------------------------------ parameters ----------------------------------

def init_params(key, in_channels, out_channels, H):
    mid = (in_channels + out_channels) // 2
    c1d_in = H - 4
    ks = jax.random.split(key, 6)
    w1 = jax.random.normal(ks[0], (mid, in_channels, 3, 3), jnp.float32) / np.sqrt(in_channels * 9)
    b1 = jax.random.normal(ks[1], (mid,), jnp.float32) * 0.05
    w2 = jax.random.normal(ks[2], (1, mid, 3, 3), jnp.float32) / np.sqrt(mid * 9)
    b2 = jax.random.normal(ks[3], (1,), jnp.float32) * 0.05
    w3 = jax.random.normal(ks[4], (out_channels, c1d_in, 5), jnp.float32) / np.sqrt(c1d_in * 5)
    b3 = jax.random.normal(ks[5], (out_channels,), jnp.float32) * 0.05
    return {"conv1": (w1, b1), "conv2": (w2, b2), "out_conv": (w3, b3)}


# --------------------------- pure-JAX reference ------------------------------

def _ref_forward(x, params):
    w1, b1 = params["conv1"]
    w2, b2 = params["conv2"]
    w3, b3 = params["out_conv"]
    dn2 = ("NCHW", "OIHW", "NCHW")
    hp = jax.lax.Precision.HIGHEST
    r = jax.lax.conv_general_dilated(x, w1, (1, 1), "VALID",
                                     dimension_numbers=dn2, precision=hp)
    r = jnp.maximum(r + b1[None, :, None, None], 0.0)
    r = jax.lax.conv_general_dilated(r, w2, (1, 1), "VALID",
                                     dimension_numbers=dn2, precision=hp)
    r = jnp.maximum(r + b2[None, :, None, None], 0.0)[:, 0]       # (B, H-4, W-4)
    r = jax.lax.conv_general_dilated(r, w3, (1,), "VALID",
                                     dimension_numbers=("NCH", "OIH", "NCH"),
                                     precision=hp)
    r = jnp.maximum(r + b3[None, :, None], 0.0)
    return jnp.mean(r, axis=2)


# ----------------------------------- main ------------------------------------

if __name__ == "__main__":
    # Conv1d(in_channels=508) is hardcoded in the module, which forces H = 512.
    B, Cin, H, W = 2, 4, 512, 16
    Cout = 8

    key = jax.random.PRNGKey(0)
    pkey, xkey = jax.random.split(key)
    params = init_params(pkey, Cin, Cout, H)
    x = jax.random.normal(xkey, (B, Cin, H, W), jnp.float32)

    out = reduce_block_forward(x, params)
    out = jax.block_until_ready(out)

    assert out.shape == (B, Cout)
    assert bool(jnp.all(jnp.isfinite(out)))

    ref = _ref_forward(x, params)
    assert jnp.allclose(out, ref, atol=5e-2, rtol=5e-2)

    print("KERNEL_OK")
</pallas_src>

<mosaic_0001>
module attributes {stable_mosaic.version = 11 : i64} {
  func.func @_reduce_block_kernel(%arg0: i32, %arg1: memref<1x512x64xf32, #tpu.memory_space<vmem>>, %arg2: memref<3x64x84xf32, #tpu.memory_space<vmem>>, %arg3: memref<1x84xf32, #tpu.memory_space<vmem>>, %arg4: memref<3x84x12xf32, #tpu.memory_space<vmem>>, %arg5: memref<1x12xf32, #tpu.memory_space<vmem>>, %arg6: memref<5x8x508xf32, #tpu.memory_space<vmem>>, %arg7: memref<8x1xf32, #tpu.memory_space<vmem>>, %arg8: memref<1x8x1xf32, #tpu.memory_space<vmem>>) attributes {dimension_semantics = [#tpu.dimension_semantics<parallel>], iteration_bounds = array<i64: 2>, scalar_prefetch = 0 : i64, scratch_operands = 0 : i64, tpu.core_type = #tpu.core_type<tc>, window_params = [{transform_indices = @transform_0, window_bounds = array<i64: 1, 512, 64>}, {pipeline_mode = #tpu.pipeline_mode<synchronous>, transform_indices = @transform_1, window_bounds = array<i64: 3, 64, 84>}, {pipeline_mode = #tpu.pipeline_mode<synchronous>, transform_indices = @transform_2, window_bounds = array<i64: 1, 84>}, {pipeline_mode = #tpu.pipeline_mode<synchronous>, transform_indices = @transform_3, window_bounds = array<i64: 3, 84, 12>}, {pipeline_mode = #tpu.pipeline_mode<synchronous>, transform_indices = @transform_4, window_bounds = array<i64: 1, 12>}, {pipeline_mode = #tpu.pipeline_mode<synchronous>, transform_indices = @transform_5, window_bounds = array<i64: 5, 8, 508>}, {pipeline_mode = #tpu.pipeline_mode<synchronous>, transform_indices = @transform_6, window_bounds = array<i64: 8, 1>}, {transform_indices = @transform_7, window_bounds = array<i64: 1, 8, 1>}]} {
    %c0 = arith.constant 0 : index
    %c0_0 = arith.constant 0 : index
    %c0_1 = arith.constant 0 : index
    %0 = vector.load %arg1[%c0, %c0_0, %c0_1] : memref<1x512x64xf32, #tpu.memory_space<vmem>>, vector<1x512x64xf32>
    %1 = vector.shape_cast %0 : vector<1x512x64xf32> to vector<512x64xf32>
    %2 = vector.extract_strided_slice %1 {offsets = [0, 0], sizes = [510, 64], strides = [1, 1]} : vector<512x64xf32> to vector<510x64xf32>
    %c0_2 = arith.constant 0 : index
    %c0_3 = arith.constant 0 : index
    %c0_4 = arith.constant 0 : index
    %3 = vector.load %arg2[%c0_2, %c0_3, %c0_4] : memref<3x64x84xf32, #tpu.memory_space<vmem>>, vector<1x64x84xf32>
    %4 = vector.shape_cast %3 : vector<1x64x84xf32> to vector<64x84xf32>
    %cst = arith.constant dense<0.000000e+00> : vector<510x84xf32>
    %5 = tpu.matmul %2, %4, %cst {dimension_numbers = #tpu.dot_dimension_numbers<[1], [0], [0], [1], [0, 0, 1, 1], [], []>} : vector<510x64xf32>, vector<64x84xf32>, vector<510x84xf32> -> vector<510x84xf32>
    %6 = vector.extract_strided_slice %1 {offsets = [1, 0], sizes = [510, 64], strides = [1, 1]} : vector<512x64xf32> to vector<510x64xf32>
    %c1 = arith.constant 1 : index
    %c0_5 = arith.constant 0 : index
    %c0_6 = arith.constant 0 : index
    %7 = vector.load %arg2[%c1, %c0_5, %c0_6] : memref<3x64x84xf32, #tpu.memory_space<vmem>>, vector<1x64x84xf32>
    %8 = vector.shape_cast %7 : vector<1x64x84xf32> to vector<64x84xf32>
    %cst_7 = arith.constant dense<0.000000e+00> : vector<510x84xf32>
    %9 = tpu.matmul %6, %8, %cst_7 {dimension_numbers = #tpu.dot_dimension_numbers<[1], [0], [0], [1], [0, 0, 1, 1], [], []>} : vector<510x64xf32>, vector<64x84xf32>, vector<510x84xf32> -> vector<510x84xf32>
    %10 = arith.addf %5, %9 : vector<510x84xf32>
    %11 = vector.extract_strided_slice %1 {offsets = [2, 0], sizes = [510, 64], strides = [1, 1]} : vector<512x64xf32> to vector<510x64xf32>
    %c2 = arith.constant 2 : index
    %c0_8 = arith.constant 0 : index
    %c0_9 = arith.constant 0 : index
    %12 = vector.load %arg2[%c2, %c0_8, %c0_9] : memref<3x64x84xf32, #tpu.memory_space<vmem>>, vector<1x64x84xf32>
    %13 = vector.shape_cast %12 : vector<1x64x84xf32> to vector<64x84xf32>
    %cst_10 = arith.constant dense<0.000000e+00> : vector<510x84xf32>
    %14 = tpu.matmul %11, %13, %cst_10 {dimension_numbers = #tpu.dot_dimension_numbers<[1], [0], [0], [1], [0, 0, 1, 1], [], []>} : vector<510x64xf32>, vector<64x84xf32>, vector<510x84xf32> -> vector<510x84xf32>
    %15 = arith.addf %10, %14 : vector<510x84xf32>
    %c0_11 = arith.constant 0 : index
    %c0_12 = arith.constant 0 : index
    %16 = vector.load %arg3[%c0_11, %c0_12] : memref<1x84xf32, #tpu.memory_space<vmem>>, vector<1x84xf32>
    %17 = vector.broadcast %16 : vector<1x84xf32> to vector<510x84xf32>
    %18 = arith.addf %15, %17 : vector<510x84xf32>
    %cst_13 = arith.constant 0.000000e+00 : f32
    %19 = vector.broadcast %cst_13 : f32 to vector<510x84xf32>
    %20 = arith.maximumf %18, %19 : vector<510x84xf32>
    %21 = vector.extract_strided_slice %20 {offsets = [0, 0], sizes = [508, 84], strides = [1, 1]} : vector<510x84xf32> to vector<508x84xf32>
    %c0_14 = arith.constant 0 : index
    %c0_15 = arith.constant 0 : index
    %c0_16 = arith.constant 0 : index
    %22 = vector.load %arg4[%c0_14, %c0_15, %c0_16] : memref<3x84x12xf32, #tpu.memory_space<vmem>>, vector<1x84x12xf32>
    %23 = vector.shape_cast %22 : vector<1x84x12xf32> to vector<84x12xf32>
    %cst_17 = arith.constant dense<0.000000e+00> : vector<508x12xf32>
    %24 = tpu.matmul %21, %23, %cst_17 {dimension_numbers = #tpu.dot_dimension_numbers<[1], [0], [0], [1], [0, 0, 1, 1], [], []>} : vector<508x84xf32>, vector<84x12xf32>, vector<508x12xf32> -> vector<508x12xf32>
    %25 = vector.extract_strided_slice %20 {offsets = [1, 0], sizes = [508, 84], strides = [1, 1]} : vector<510x84xf32> to vector<508x84xf32>
    %c1_18 = arith.constant 1 : index
    %c0_19 = arith.constant 0 : index
    %c0_20 = arith.constant 0 : index
    %26 = vector.load %arg4[%c1_18, %c0_19, %c0_20] : memref<3x84x12xf32, #tpu.memory_space<vmem>>, vector<1x84x12xf32>
    %27 = vector.shape_cast %26 : vector<1x84x12xf32> to vector<84x12xf32>
    %cst_21 = arith.constant dense<0.000000e+00> : vector<508x12xf32>
    %28 = tpu.matmul %25, %27, %cst_21 {dimension_numbers = #tpu.dot_dimension_numbers<[1], [0], [0], [1], [0, 0, 1, 1], [], []>} : vector<508x84xf32>, vector<84x12xf32>, vector<508x12xf32> -> vector<508x12xf32>
    %29 = arith.addf %24, %28 : vector<508x12xf32>
    %30 = vector.extract_strided_slice %20 {offsets = [2, 0], sizes = [508, 84], strides = [1, 1]} : vector<510x84xf32> to vector<508x84xf32>
    %c2_22 = arith.constant 2 : index
    %c0_23 = arith.constant 0 : index
    %c0_24 = arith.constant 0 : index
    %31 = vector.load %arg4[%c2_22, %c0_23, %c0_24] : memref<3x84x12xf32, #tpu.memory_space<vmem>>, vector<1x84x12xf32>
    %32 = vector.shape_cast %31 : vector<1x84x12xf32> to vector<84x12xf32>
    %cst_25 = arith.constant dense<0.000000e+00> : vector<508x12xf32>
    %33 = tpu.matmul %30, %32, %cst_25 {dimension_numbers = #tpu.dot_dimension_numbers<[1], [0], [0], [1], [0, 0, 1, 1], [], []>} : vector<508x84xf32>, vector<84x12xf32>, vector<508x12xf32> -> vector<508x12xf32>
    %34 = arith.addf %29, %33 : vector<508x12xf32>
    %c0_26 = arith.constant 0 : index
    %c0_27 = arith.constant 0 : index
    %35 = vector.load %arg5[%c0_26, %c0_27] : memref<1x12xf32, #tpu.memory_space<vmem>>, vector<1x12xf32>
    %36 = vector.broadcast %35 : vector<1x12xf32> to vector<508x12xf32>
    %37 = arith.addf %34, %36 : vector<508x12xf32>
    %cst_28 = arith.constant 0.000000e+00 : f32
    %38 = vector.broadcast %cst_28 : f32 to vector<508x12xf32>
    %39 = arith.maximumf %37, %38 : vector<508x12xf32>
    %c0_29 = arith.constant 0 : index
    %c0_30 = arith.constant 0 : index
    %c0_31 = arith.constant 0 : index
    %40 = vector.load %arg6[%c0_29, %c0_30, %c0_31] : memref<5x8x508xf32, #tpu.memory_space<vmem>>, vector<1x8x508xf32>
    %41 = vector.shape_cast %40 : vector<1x8x508xf32> to vector<8x508xf32>
    %42 = vector.extract_strided_slice %39 {offsets = [0, 0], sizes = [508, 8], strides = [1, 1]} : vector<508x12xf32> to vector<508x8xf32>
    %cst_32 = arith.constant dense<0.000000e+00> : vector<8x8xf32>
    %43 = tpu.matmul %41, %42, %cst_32 {dimension_numbers = #tpu.dot_dimension_numbers<[1], [0], [0], [1], [0, 0, 1, 1], [], []>} : vector<8x508xf32>, vector<508x8xf32>, vector<8x8xf32> -> vector<8x8xf32>
    %c1_33 = arith.constant 1 : index
    %c0_34 = arith.constant 0 : index
    %c0_35 = arith.constant 0 : index
    %44 = vector.load %arg6[%c1_33, %c0_34, %c0_35] : memref<5x8x508xf32, #tpu.memory_space<vmem>>, vector<1x8x508xf32>
    %45 = vector.shape_cast %44 : vector<1x8x508xf32> to vector<8x508xf32>
    %46 = vector.extract_strided_slice %39 {offsets = [0, 1], sizes = [508, 8], strides = [1, 1]} : vector<508x12xf32> to vector<508x8xf32>
    %cst_36 = arith.constant dense<0.000000e+00> : vector<8x8xf32>
    %47 = tpu.matmul %45, %46, %cst_36 {dimension_numbers = #tpu.dot_dimension_numbers<[1], [0], [0], [1], [0, 0, 1, 1], [], []>} : vector<8x508xf32>, vector<508x8xf32>, vector<8x8xf32> -> vector<8x8xf32>
    %48 = arith.addf %43, %47 : vector<8x8xf32>
    %c2_37 = arith.constant 2 : index
    %c0_38 = arith.constant 0 : index
    %c0_39 = arith.constant 0 : index
    %49 = vector.load %arg6[%c2_37, %c0_38, %c0_39] : memref<5x8x508xf32, #tpu.memory_space<vmem>>, vector<1x8x508xf32>
    %50 = vector.shape_cast %49 : vector<1x8x508xf32> to vector<8x508xf32>
    %51 = vector.extract_strided_slice %39 {offsets = [0, 2], sizes = [508, 8], strides = [1, 1]} : vector<508x12xf32> to vector<508x8xf32>
    %cst_40 = arith.constant dense<0.000000e+00> : vector<8x8xf32>
    %52 = tpu.matmul %50, %51, %cst_40 {dimension_numbers = #tpu.dot_dimension_numbers<[1], [0], [0], [1], [0, 0, 1, 1], [], []>} : vector<8x508xf32>, vector<508x8xf32>, vector<8x8xf32> -> vector<8x8xf32>
    %53 = arith.addf %48, %52 : vector<8x8xf32>
    %c3 = arith.constant 3 : index
    %c0_41 = arith.constant 0 : index
    %c0_42 = arith.constant 0 : index
    %54 = vector.load %arg6[%c3, %c0_41, %c0_42] : memref<5x8x508xf32, #tpu.memory_space<vmem>>, vector<1x8x508xf32>
    %55 = vector.shape_cast %54 : vector<1x8x508xf32> to vector<8x508xf32>
    %56 = vector.extract_strided_slice %39 {offsets = [0, 3], sizes = [508, 8], strides = [1, 1]} : vector<508x12xf32> to vector<508x8xf32>
    %cst_43 = arith.constant dense<0.000000e+00> : vector<8x8xf32>
    %57 = tpu.matmul %55, %56, %cst_43 {dimension_numbers = #tpu.dot_dimension_numbers<[1], [0], [0], [1], [0, 0, 1, 1], [], []>} : vector<8x508xf32>, vector<508x8xf32>, vector<8x8xf32> -> vector<8x8xf32>
    %58 = arith.addf %53, %57 : vector<8x8xf32>
    %c4 = arith.constant 4 : index
    %c0_44 = arith.constant 0 : index
    %c0_45 = arith.constant 0 : index
    %59 = vector.load %arg6[%c4, %c0_44, %c0_45] : memref<5x8x508xf32, #tpu.memory_space<vmem>>, vector<1x8x508xf32>
    %60 = vector.shape_cast %59 : vector<1x8x508xf32> to vector<8x508xf32>
    %61 = vector.extract_strided_slice %39 {offsets = [0, 4], sizes = [508, 8], strides = [1, 1]} : vector<508x12xf32> to vector<508x8xf32>
    %cst_46 = arith.constant dense<0.000000e+00> : vector<8x8xf32>
    %62 = tpu.matmul %60, %61, %cst_46 {dimension_numbers = #tpu.dot_dimension_numbers<[1], [0], [0], [1], [0, 0, 1, 1], [], []>} : vector<8x508xf32>, vector<508x8xf32>, vector<8x8xf32> -> vector<8x8xf32>
    %63 = arith.addf %58, %62 : vector<8x8xf32>
    %c0_47 = arith.constant 0 : index
    %c0_48 = arith.constant 0 : index
    %64 = vector.load %arg7[%c0_47, %c0_48] : memref<8x1xf32, #tpu.memory_space<vmem>>, vector<8x1xf32>
    %65 = vector.broadcast %64 : vector<8x1xf32> to vector<8x8xf32>
    %66 = arith.addf %63, %65 : vector<8x8xf32>
    %cst_49 = arith.constant 0.000000e+00 : f32
    %67 = vector.broadcast %cst_49 : f32 to vector<8x8xf32>
    %68 = arith.maximumf %66, %67 : vector<8x8xf32>
    %cst_50 = arith.constant dense<0.000000e+00> : vector<8xf32>
    %69 = vector.multi_reduction <add>, %68, %cst_50 [1] : vector<8x8xf32> to vector<8xf32>
    %70 = vector.shape_cast %69 : vector<8xf32> to vector<8x1xf32>
    %cst_51 = arith.constant 1.250000e-01 : f32
    %71 = vector.broadcast %cst_51 : f32 to vector<8x1xf32>
    %72 = arith.mulf %70, %71 : vector<8x1xf32>
    %c0_52 = arith.constant 0 : index
    %c0_53 = arith.constant 0 : index
    %c0_54 = arith.constant 0 : index
    %73 = vector.load %arg8[%c0_52, %c0_53, %c0_54] : memref<1x8x1xf32, #tpu.memory_space<vmem>>, vector<1x8x1xf32>
    %74 = vector.shape_cast %73 : vector<1x8x1xf32> to vector<8x1xf32>
    %75 = vector.shape_cast %72 : vector<8x1xf32> to vector<1x8x1xf32>
    tpu.vector_store %arg8[%c0_52, %c0_53, %c0_54], %75 {strides = array<i32>} : memref<1x8x1xf32, #tpu.memory_space<vmem>>, vector<1x8x1xf32>,
    return
  }
  func.func @transform_0(%arg0: i32) -> (i32, i32, i32) {
    %c0_i32 = arith.constant 0 : i32
    %c0_i32_0 = arith.constant 0 : i32
    %c0_i32_1 = arith.constant 0 : i32
    return %arg0, %c0_i32, %c0_i32_0 : i32, i32, i32
  }
  func.func @transform_1(%arg0: i32) -> (i32, i32, i32) {
    %c0_i32 = arith.constant 0 : i32
    %c0_i32_0 = arith.constant 0 : i32
    %c0_i32_1 = arith.constant 0 : i32
    %c0_i32_2 = arith.constant 0 : i32
    return %c0_i32, %c0_i32_0, %c0_i32_1 : i32, i32, i32
  }
  func.func @transform_2(%arg0: i32) -> (i32, i32) {
    %c0_i32 = arith.constant 0 : i32
    %c0_i32_0 = arith.constant 0 : i32
    %c0_i32_1 = arith.constant 0 : i32
    return %c0_i32, %c0_i32_0 : i32, i32
  }
  func.func @transform_3(%arg0: i32) -> (i32, i32, i32) {
    %c0_i32 = arith.constant 0 : i32
    %c0_i32_0 = arith.constant 0 : i32
    %c0_i32_1 = arith.constant 0 : i32
    %c0_i32_2 = arith.constant 0 : i32
    return %c0_i32, %c0_i32_0, %c0_i32_1 : i32, i32, i32
  }
  func.func @transform_4(%arg0: i32) -> (i32, i32) {
    %c0_i32 = arith.constant 0 : i32
    %c0_i32_0 = arith.constant 0 : i32
    %c0_i32_1 = arith.constant 0 : i32
    return %c0_i32, %c0_i32_0 : i32, i32
  }
  func.func @transform_5(%arg0: i32) -> (i32, i32, i32) {
    %c0_i32 = arith.constant 0 : i32
    %c0_i32_0 = arith.constant 0 : i32
    %c0_i32_1 = arith.constant 0 : i32
    %c0_i32_2 = arith.constant 0 : i32
    return %c0_i32, %c0_i32_0, %c0_i32_1 : i32, i32, i32
  }
  func.func @transform_6(%arg0: i32) -> (i32, i32) {
    %c0_i32 = arith.constant 0 : i32
    %c0_i32_0 = arith.constant 0 : i32
    %c0_i32_1 = arith.constant 0 : i32
    return %c0_i32, %c0_i32_0 : i32, i32
  }
  func.func @transform_7(%arg0: i32) -> (i32, i32, i32) {
    %c0_i32 = arith.constant 0 : i32
    %c0_i32_0 = arith.constant 0 : i32
    %c0_i32_1 = arith.constant 0 : i32
    return %arg0, %c0_i32, %c0_i32_0 : i32, i32, i32
  }
}

</mosaic_0001>

<llo_original>
// kernel: tpu_custom_call.1
$region0: #{tpu_custom_call.1}
  #allocation0 [shape = 'u32[]', space=smem, size = 0x4, offset = 0x4, fixed_abs, tag = 'smem constant byte address 0x4 - core index']
  #allocation1 [shape = 'u32[144,128]{1,0:T(1,128)}', space=vmem, size = 0x12000, scoped, tag = 'internal scratch']
  %s0 = inlined_call_operand.vmem [shape: f32[2,512,64], index: 0, kind: input, shape index: {}]
  %s1 = inlined_call_operand.vmem [shape: f32[3,64,84], index: 1, kind: input, shape index: {}]
  %s2 = inlined_call_operand.vmem [shape: f32[1,84], index: 2, kind: input, shape index: {}]
  %s3 = inlined_call_operand.vmem [shape: f32[3,84,12], index: 3, kind: input, shape index: {}]
  %s4 = inlined_call_operand.vmem [shape: f32[1,12], index: 4, kind: input, shape index: {}]
  %s5 = inlined_call_operand.vmem [shape: f32[5,8,508], index: 5, kind: input, shape index: {}]
  %s6 = inlined_call_operand.vmem [shape: f32[8,1], index: 6, kind: input, shape index: {}]
  %s7 = inlined_call_operand.vmem [shape: f32[2,8,1], index: 7, kind: output, shape index: {}]
  %s8 = sld [smem:[#allocation0]]
  $region61: #{tpu_custom_call.1} parent=0
    _
  %s10 = ssub.s32 1, %s8
  %s11 = scalar_select 0, %s10, %s8
  loop: start=0, step=1, limit=4
  $region2: #{tpu_custom_call.1} parent=0 // loop_pre_header
    _
  $region3: #{tpu_custom_call.1} parent=0 // loop_header
    %s13 = sphi 0, %s17
    %p14 = scmp.ge.s32.totalorder %s13, 4
    %s23 = sphi 0, %s25
    %s26 = sphi 0, %s23
    %s27 = sphi 0, %s26
    %s43 = sphi 0, %s27
    %s47 = sphi 0, %s47
    %s49 = sphi 0, %s47
    %s50 = sphi 0, %s49
    %s64 = sphi 0, %s50
    %s68 = sphi 0, %s68
    %s70 = sphi 0, %s68
    %s71 = sphi 0, %s70
    %s85 = sphi 0, %s71
    %s89 = sphi 0, %s89
    %s91 = sphi 0, %s89
    %s92 = sphi 0, %s91
    %s106 = sphi 0, %s92
    %s110 = sphi 0, %s110
    %s112 = sphi 0, %s110
    %s113 = sphi 0, %s112
    %s127 = sphi 0, %s113
    %s131 = sphi 0, %s131
    %s133 = sphi 0, %s131
    %s134 = sphi 0, %s133
    %s148 = sphi 0, %s134
    %s152 = sphi 0, %s152
    %s154 = sphi 0, %s152
    %s155 = sphi 0, %s154
    %s169 = sphi 0, %s155
    %s175 = sphi 0, %s177
    %s178 = sphi 0, %s175
    %s179 = sphi 0, %s178
    %s195 = sphi 0, %s179
  $region4: #{tpu_custom_call.1} parent=0 // loop_header_branch
    %16 = sbr.rel (%p14) target = $region8
  $region5: #{tpu_custom_call.1} parent=0 // loop_body
    %s18 = ssub.s32 %s13, 1
    %s19 = ssub.s32 %s13, 2
    %s20 = sadd.s32 %s13, 1
    %s21 = ssub.s32 %s13, %s20
    %p22 = scmp.eq.s32.totalorder %s21, 0
    %s24 = sadd.s32 %s23, 1
    %s25 = scalar_select %p22, %s23, %s24
    %p28 = pneg %p22
    %p29 = scmp.eq.s32.totalorder %s13, 1
    %p30 = por %p28, %p29
    %p31 = scmp.ne.s32.totalorder %s23, %s26
    %p32 = scmp.eq.s32.totalorder %s13, 0
    %p33 = por %p31, %p32
    %p34 = scmp.ne.s32.totalorder %s23, %s26
    %p35 = scmp.eq.s32.totalorder %s18, 1
    %p36 = por %p34, %p35
    %p37 = scmp.ne.s32.totalorder %s26, %s27
    %p38 = scmp.eq.s32.totalorder %s18, 0
    %p39 = por %p37, %p38
    %p40 = scmp.ne.s32.totalorder %s26, %s27
    %p41 = scmp.eq.s32.totalorder %s19, 1
    %p42 = por %p40, %p41
    %p44 = scmp.ne.s32.totalorder %s27, %s43
    %p45 = scmp.eq.s32.totalorder %s19, 0
    %p46 = por %p44, %p45
    %s48 = sadd.s32 %s47, 1
    %p51 = scmp.eq.s32.totalorder %s13, 1
    %p52 = scmp.ne.s32.totalorder %s47, %s49
    %p53 = scmp.eq.s32.totalorder %s13, 0
    %p54 = por %p52, %p53
    %p55 = scmp.ne.s32.totalorder %s47, %s49
    %p56 = scmp.eq.s32.totalorder %s18, 1
    %p57 = por %p55, %p56
    %p58 = scmp.ne.s32.totalorder %s49, %s50
    %p59 = scmp.eq.s32.totalorder %s18, 0
    %p60 = por %p58, %p59
    %p61 = scmp.ne.s32.totalorder %s49, %s50
    %p62 = scmp.eq.s32.totalorder %s19, 1
    %p63 = por %p61, %p62
    %p65 = scmp.ne.s32.totalorder %s50, %s64
    %p66 = scmp.eq.s32.totalorder %s19, 0
    %p67 = por %p65, %p66
    %s69 = sadd.s32 %s68, 1
    %p72 = scmp.eq.s32.totalorder %s13, 1
    %p73 = scmp.ne.s32.totalorder %s68, %s70
    %p74 = scmp.eq.s32.totalorder %s13, 0
    %p75 = por %p73, %p74
    %p76 = scmp.ne.s32.totalorder %s68, %s70
    %p77 = scmp.eq.s32.totalorder %s18, 1
    %p78 = por %p76, %p77
    %p79 = scmp.ne.s32.totalorder %s70, %s71
    %p80 = scmp.eq.s32.totalorder %s18, 0
    %p81 = por %p79, %p80
    %p82 = scmp.ne.s32.totalorder %s70, %s71
    %p83 = scmp.eq.s32.totalorder %s19, 1
    %p84 = por %p82, %p83
    %p86 = scmp.ne.s32.totalorder %s71, %s85
    %p87 = scmp.eq.s32.totalorder %s19, 0
    %p88 = por %p86, %p87
    %s90 = sadd.s32 %s89, 1
    %p93 = scmp.eq.s32.totalorder %s13, 1
    %p94 = scmp.ne.s32.totalorder %s89, %s91
    %p95 = scmp.eq.s32.totalorder %s13, 0
    %p96 = por %p94, %p95
    %p97 = scmp.ne.s32.totalorder %s89, %s91
    %p98 = scmp.eq.s32.totalorder %s18, 1
    %p99 = por %p97, %p98
    %p100 = scmp.ne.s32.totalorder %s91, %s92
    %p101 = scmp.eq.s32.totalorder %s18, 0
    %p102 = por %p100, %p101
    %p103 = scmp.ne.s32.totalorder %s91, %s92
    %p104 = scmp.eq.s32.totalorder %s19, 1
    %p105 = por %p103, %p104
    %p107 = scmp.ne.s32.totalorder %s92, %s106
    %p108 = scmp.eq.s32.totalorder %s19, 0
    %p109 = por %p107, %p108
    %s111 = sadd.s32 %s110, 1
    %p114 = scmp.eq.s32.totalorder %s13, 1
    %p115 = scmp.ne.s32.totalorder %s110, %s112
    %p116 = scmp.eq.s32.totalorder %s13, 0
    %p117 = por %p115, %p116
    %p118 = scmp.ne.s32.totalorder %s110, %s112
    %p119 = scmp.eq.s32.totalorder %s18, 1
    %p120 = por %p118, %p119
    %p121 = scmp.ne.s32.totalorder %s112, %s113
    %p122 = scmp.eq.s32.totalorder %s18, 0
    %p123 = por %p121, %p122
    %p124 = scmp.ne.s32.totalorder %s112, %s113
    %p125 = scmp.eq.s32.totalorder %s19, 1
    %p126 = por %p124, %p125
    %p128 = scmp.ne.s32.totalorder %s113, %s127
    %p129 = scmp.eq.s32.totalorder %s19, 0
    %p130 = por %p128, %p129
    %s132 = sadd.s32 %s131, 1
    %p135 = scmp.eq.s32.totalorder %s13, 1
    %p136 = scmp.ne.s32.totalorder %s131, %s133
    %p137 = scmp.eq.s32.totalorder %s13, 0
    %p138 = por %p136, %p137
    %p139 = scmp.ne.s32.totalorder %s131, %s133
    %p140 = scmp.eq.s32.totalorder %s18, 1
    %p141 = por %p139, %p140
    %p142 = scmp.ne.s32.totalorder %s133, %s134
    %p143 = scmp.eq.s32.totalorder %s18, 0
    %p144 = por %p142, %p143
    %p145 = scmp.ne.s32.totalorder %s133, %s134
    %p146 = scmp.eq.s32.totalorder %s19, 1
    %p147 = por %p145, %p146
    %p149 = scmp.ne.s32.totalorder %s134, %s148
    %p150 = scmp.eq.s32.totalorder %s19, 0
    %p151 = por %p149, %p150
    %s153 = sadd.s32 %s152, 1
    %p156 = scmp.eq.s32.totalorder %s13, 1
    %p157 = scmp.ne.s32.totalorder %s152, %s154
    %p158 = scmp.eq.s32.totalorder %s13, 0
    %p159 = por %p157, %p158
    %p160 = scmp.ne.s32.totalorder %s152, %s154
    %p161 = scmp.eq.s32.totalorder %s18, 1
    %p162 = por %p160, %p161
    %p163 = scmp.ne.s32.totalorder %s154, %s155
    %p164 = scmp.eq.s32.totalorder %s18, 0
    %p165 = por %p163, %p164
    %p166 = scmp.ne.s32.totalorder %s154, %s155
    %p167 = scmp.eq.s32.totalorder %s19, 1
    %p168 = por %p166, %p167
    %p170 = scmp.ne.s32.totalorder %s155, %s169
    %p171 = scmp.eq.s32.totalorder %s19, 0
    %p172 = por %p170, %p171
    %s173 = ssub.s32 %s13, %s20
    %p174 = scmp.eq.s32.totalorder %s173, 0
    %s176 = sadd.s32 %s175, 1
    %s177 = scalar_select %p174, %s175, %s176
    %p180 = pneg %p174
    %p181 = scmp.eq.s32.totalorder %s13, 1
    %p182 = por %p180, %p181
    %p183 = scmp.ne.s32.totalorder %s175, %s178
    %p184 = scmp.eq.s32.totalorder %s13, 0
    %p185 = por %p183, %p184
    %p186 = scmp.ne.s32.totalorder %s175, %s178
    %p187 = scmp.eq.s32.totalorder %s18, 1
    %p188 = por %p186, %p187
    %p189 = scmp.ne.s32.totalorder %s178, %s179
    %p190 = scmp.eq.s32.totalorder %s18, 0
    %p191 = por %p189, %p190
    %p192 = scmp.ne.s32.totalorder %s178, %s179
    %p193 = scmp.eq.s32.totalorder %s19, 1
    %p194 = por %p192, %p193
    %p196 = scmp.ne.s32.totalorder %s179, %s195
    %p197 = scmp.eq.s32.totalorder %s19, 0
    %p198 = por %p196, %p197
    %p199 = scmp.le.s32.totalorder 1, %s13
    %p200 = scmp.lt.s32.totalorder %s13, 3
    %p201 = pnand %p199, %p200
    %p202 = pneg %p201
    // Predicated region
    $region9: #{tpu_custom_call.1} parent=5 // pred_check
      _
    $region10: #{tpu_custom_call.1} parent=5 // pred_check_branch
      %204 = sbr.rel (%p201) target = $region12
    $region11: #{tpu_custom_call.1} parent=5 // pred_region
      %s205 = ssub.s32 %s13, 1
      // Predicated region
      $region13: #{tpu_custom_call.1} parent=11 // pred_check
        %p206 = pneg %p60
      $region14: #{tpu_custom_call.1} parent=11 // pred_check_branch
        %208 = sbr.rel (%p206) target = $region16
      $region15: #{tpu_custom_call.1} parent=11 // pred_region
        _
      $region16: #{tpu_custom_call.1} parent=11 // pred_fallthru
        _
      // Predicated region
      $region17: #{tpu_custom_call.1} parent=11 // pred_check
        %p209 = pneg %p81
      $region18: #{tpu_custom_call.1} parent=11 // pred_check_branch
        %211 = sbr.rel (%p209) target = $region20
      $region19: #{tpu_custom_call.1} parent=11 // pred_region
        _
      $region20: #{tpu_custom_call.1} parent=11 // pred_fallthru
        _
      // Predicated region
      $region21: #{tpu_custom_call.1} parent=11 // pred_check
        %p212 = pneg %p102
      $region22: #{tpu_custom_call.1} parent=11 // pred_check_branch
        %214 = sbr.rel (%p212) target = $region24
      $region23: #{tpu_custom_call.1} parent=11 // pred_region
        _
      $region24: #{tpu_custom_call.1} parent=11 // pred_fallthru
        _
      // Predicated region
      $region25: #{tpu_custom_call.1} parent=11 // pred_check
        %p215 = pneg %p123
      $region26: #{tpu_custom_call.1} parent=11 // pred_check_branch
        %217 = sbr.rel (%p215) target = $region28
      $region27: #{tpu_custom_call.1} parent=11 // pred_region
        _
      $region28: #{tpu_custom_call.1} parent=11 // pred_fallthru
        _
      // Predicated region
      $region29: #{tpu_custom_call.1} parent=11 // pred_check
        %p218 = pneg %p144
      $region30: #{tpu_custom_call.1} parent=11 // pred_check_branch
        %220 = sbr.rel (%p218) target = $region32
      $region31: #{tpu_custom_call.1} parent=11 // pred_region
        _
      $region32: #{tpu_custom_call.1} parent=11 // pred_fallthru
        _
      // Predicated region
      $region33: #{tpu_custom_call.1} parent=11 // pred_check
        %p221 = pneg %p165
      $region34: #{tpu_custom_call.1} parent=11 // pred_check_branch
        %223 = sbr.rel (%p221) target = $region36
      $region35: #{tpu_custom_call.1} parent=11 // pred_region
        _
      $region36: #{tpu_custom_call.1} parent=11 // pred_fallthru
        _
    $region12: #{tpu_custom_call.1} parent=5 // pred_fallthru
      _
    %p224 = scmp.lt.s32.totalorder %s13, 2
    // Predicated region
    $region37: #{tpu_custom_call.1} parent=5 // pred_check
      %p225 = pneg %p224
    $region38: #{tpu_custom_call.1} parent=5 // pred_check_branch
      %227 = sbr.rel (%p225) target = $region40
    $region39: #{tpu_custom_call.1} parent=5 // pred_region
      // Predicated region
      $region41: #{tpu_custom_call.1} parent=39 // pred_check
        %p228 = pneg %p33
      $region42: #{tpu_custom_call.1} parent=39 // pred_check_branch
        %230 = sbr.rel (%p228) target = $region44
      $region43: #{tpu_custom_call.1} parent=39 // pred_region
        %p231 = scmp.lt.s32.totalorder %s13, 1
        %s232 = scalar_select %p231, %s13, 1
        %s233 = smul.addr %s232, 64
        %s234 = smul.addr %s233, 8
        %s235 = scalar_lea.vmem %s0, %s234
      $region44: #{tpu_custom_call.1} parent=39 // pred_fallthru
        _
    $region40: #{tpu_custom_call.1} parent=5 // pred_fallthru
      _
    %p236 = scmp.le.s32.totalorder 1, %s13
    %p237 = scmp.lt.s32.totalorder %s13, 3
    %p238 = pnand %p236, %p237
    %p239 = pneg %p238
    // Predicated region
    $region45: #{tpu_custom_call.1} parent=5 // pred_check
      _
    $region46: #{tpu_custom_call.1} parent=5 // pred_check_branch
      %241 = sbr.rel (%p238) target = $region48
    $region47: #{tpu_custom_call.1} parent=5 // pred_region
      %s242 = ssub.s32 %s13, 1
      %p243 = scmp.lt.s32.totalorder %s18, 1
      %s244 = scalar_select %p243, %s18, 1
      %s245 = smul.addr %s244, 64
      %s246 = smul.addr %s245, 8
      %s247 = scalar_lea.vmem %s0, %s246
      %p248 = pneg %p39
      %p249 = pneg %p36
      %p250 = pneg %p60
      %p251 = pneg %p57
      %p252 = pneg %p81
      %p253 = pneg %p78
      %p254 = pneg %p102
      %p255 = pneg %p99
      %p256 = pneg %p123
      %p257 = pneg %p120
      %p258 = pneg %p144
      %p259 = pneg %p141
      %p260 = pneg %p165
      %p261 = pneg %p162
      %p262 = pneg %p191
      %p263 = pneg %p188
      %p264 = scmp.lt.s32.totalorder %s18, 1
      %s265 = scalar_select %p264, %s18, 1
      %s266 = smul.addr %s265, 8
      %s267 = scalar_lea.vmem %s7, %s266
      %p268 = scmp.lt.s32.totalorder %s18, 1
      %s269 = scalar_select %p268, %s18, 1
      %s270 = smul.addr %s269, 64
      %s271 = smul.addr %s270, 8
      %s272 = scalar_lea.vmem %s0, %s271
      %p273 = scmp.lt.s32.totalorder %s18, 1
      %s274 = scalar_select %p273, %s18, 1
      %s275 = smul.addr %s274, 8
      %s276 = scalar_lea.vmem %s7, %s275
      %v277 = vld [vmem:[%s272] sm:$0xff]
      %v278 = vld [vmem:[%s272 + $0x8] sm:$0xff]
      %v279 = vld [vmem:[%s272 + $0x10] sm:$0xff]
      %v280 = vld [vmem:[%s272 + $0x18] sm:$0xff]
      %v281 = vld [vmem:[%s272 + $0x20] sm:$0xff]
      %v282 = vld [vmem:[%s272 + $0x28] sm:$0xff]
      %v283 = vld [vmem:[%s272 + $0x30] sm:$0xff]
      %v284 = vld [vmem:[%s272 + $0x38] sm:$0xff]
      %v285 = vld [vmem:[%s272 + $0x40] sm:$0xff]
      %v286 = vld [vmem:[%s272 + $0x48] sm:$0xff]
      %v287 = vld [vmem:[%s272 + $0x50] sm:$0xff]
      %v288 = vld [vmem:[%s272 + $0x58] sm:$0xff]
      %v289 = vld [vmem:[%s272 + $0x60] sm:$0xff]
      %v290 = vld [vmem:[%s272 + $0x68] sm:$0xff]
      %v291 = vld [vmem:[%s272 + $0x70] sm:$0xff]
      %v292 = vld [vmem:[%s272 + $0x78] sm:$0xff]
      %v293 = vld [vmem:[%s272 + $0x80] sm:$0xff]
      %v294 = vld [vmem:[%s272 + $0x88] sm:$0xff]
      %v295 = vld [vmem:[%s272 + $0x90] sm:$0xff]
      %v296 = vld [vmem:[%s272 + $0x98] sm:$0xff]
      %v297 = vld [vmem:[%s272 + $0xa0] sm:$0xff]
      %v298 = vld [vmem:[%s272 + $0xa8] sm:$0xff]
      %v299 = vld [vmem:[%s272 + $0xb0] sm:$0xff]
      %v300 = vld [vmem:[%s272 + $0xb8] sm:$0xff]
      %v301 = vld [vmem:[%s272 + $0xc0] sm:$0xff]
      %v302 = vld [vmem:[%s272 + $0xc8] sm:$0xff]
      %v303 = vld [vmem:[%s272 + $0xd0] sm:$0xff]
      %v304 = vld [vmem:[%s272 + $0xd8] sm:$0xff]
      %v305 = vld [vmem:[%s272 + $0xe0] sm:$0xff]
      %v306 = vld [vmem:[%s272 + $0xe8] sm:$0xff]
      %v307 = vld [vmem:[%s272 + $0xf0] sm:$0xff]
      %v308 = vld [vmem:[%s272 + $0xf8] sm:$0xff]
      %v309 = vld [vmem:[%s272 + $0x100] sm:$0xff]
      %v310 = vld [vmem:[%s272 + $0x108] sm:$0xff]
      %v311 = vld [vmem:[%s272 + $0x110] sm:$0xff]
      %v312 = vld [vmem:[%s272 + $0x118] sm:$0xff]
      %v313 = vld [vmem:[%s272 + $0x120] sm:$0xff]
      %v314 = vld [vmem:[%s272 + $0x128] sm:$0xff]
      %v315 = vld [vmem:[%s272 + $0x130] sm:$0xff]
      %v316 = vld [vmem:[%s272 + $0x138] sm:$0xff]
      %v317 = vld [vmem:[%s272 + $0x140] sm:$0xff]
      %v318 = vld [vmem:[%s272 + $0x148] sm:$0xff]
      %v319 = vld [vmem:[%s272 + $0x150] sm:$0xff]
      %v320 = vld [vmem:[%s272 + $0x158] sm:$0xff]
      %v321 = vld [vmem:[%s272 + $0x160] sm:$0xff]
      %v322 = vld [vmem:[%s272 + $0x168] sm:$0xff]
      %v323 = vld [vmem:[%s272 + $0x170] sm:$0xff]
      %v324 = vld [vmem:[%s272 + $0x178] sm:$0xff]
      %v325 = vld [vmem:[%s272 + $0x180] sm:$0xff]
      %v326 = vld [vmem:[%s272 + $0x188] sm:$0xff]
      %v327 = vld [vmem:[%s272 + $0x190] sm:$0xff]
      %v328 = vld [vmem:[%s272 + $0x198] sm:$0xff]
      %v329 = vld [vmem:[%s272 + $0x1a0] sm:$0xff]
      %v330 = vld [vmem:[%s272 + $0x1a8] sm:$0xff]
      %v331 = vld [vmem:[%s272 + $0x1b0] sm:$0xff]
      %v332 = vld [vmem:[%s272 + $0x1b8] sm:$0xff]
      %v333 = vld [vmem:[%s272 + $0x1c0] sm:$0xff]
      %v334 = vld [vmem:[%s272 + $0x1c8] sm:$0xff]
      %v335 = vld [vmem:[%s272 + $0x1d0] sm:$0xff]
      %v336 = vld [vmem:[%s272 + $0x1d8] sm:$0xff]
      %v337 = vld [vmem:[%s272 + $0x1e0] sm:$0xff]
      %v338 = vld [vmem:[%s272 + $0x1e8] sm:$0xff]
      %v339 = vld [vmem:[%s272 + $0x1f0] sm:$0xff]
      %v340 = vld [vmem:[%s272 + $0x1f8] sm:$0xff]
      %v341 = vld [vmem:[%s1] sm:$0xff]
      %v342 = vld [vmem:[%s1 + $0x8] sm:$0xff]
      %v343 = vld [vmem:[%s1 + $0x10] sm:$0xff]
      %v344 = vld [vmem:[%s1 + $0x18] sm:$0xff]
      %v345 = vld [vmem:[%s1 + $0x20] sm:$0xff]
      %v346 = vld [vmem:[%s1 + $0x28] sm:$0xff]
      %v347 = vld [vmem:[%s1 + $0x30] sm:$0xff]
      %v348 = vld [vmem:[%s1 + $0x38] sm:$0xff]
      %s349 = scalar_lea.vmem %s1, 64
      %v350 = vld [vmem:[%s349] sm:$0xff]
      %v351 = vld [vmem:[%s349 + $0x8] sm:$0xff]
      %v352 = vld [vmem:[%s349 + $0x10] sm:$0xff]
      %v353 = vld [vmem:[%s349 + $0x18] sm:$0xff]
      %v354 = vld [vmem:[%s349 + $0x20] sm:$0xff]
      %v355 = vld [vmem:[%s349 + $0x28] sm:$0xff]
      %v356 = vld [vmem:[%s349 + $0x30] sm:$0xff]
      %v357 = vld [vmem:[%s349 + $0x38] sm:$0xff]
      %vm422 = vcmask 1046528
      %v423 = vrot.slane %v277, 1
      %v424 = vrot.slane %v278, 1
      %v425 = vsel %vm422, %v423, %v424
      %v426 = vrot.slane %v279, 1
      %v427 = vsel %vm422, %v424, %v426
      %v428 = vrot.slane %v280, 1
      %v429 = vsel %vm422, %v426, %v428
      %v430 = vrot.slane %v281, 1
      %v431 = vsel %vm422, %v428, %v430
      %v432 = vrot.slane %v282, 1
      %v433 = vsel %vm422, %v430, %v432
      %v434 = vrot.slane %v283, 1
      %v435 = vsel %vm422, %v432, %v434
      %v436 = vrot.slane %v284, 1
      %v437 = vsel %vm422, %v434, %v436
      %v438 = vrot.slane %v285, 1
      %v439 = vsel %vm422, %v436, %v438
      %v440 = vrot.slane %v286, 1
      %v441 = vsel %vm422, %v438, %v440
      %v442 = vrot.slane %v287, 1
      %v443 = vsel %vm422, %v440, %v442
      %v444 = vrot.slane %v288, 1
      %v445 = vsel %vm422, %v442, %v444
      %v446 = vrot.slane %v289, 1
      %v447 = vsel %vm422, %v444, %v446
      %v448 = vrot.slane %v290, 1
      %v449 = vsel %vm422, %v446, %v448
      %v450 = vrot.slane %v291, 1
      %v451 = vsel %vm422, %v448, %v450
      %v452 = vrot.slane %v292, 1
      %v453 = vsel %vm422, %v450, %v452
      %v454 = vrot.slane %v293, 1
      %v455 = vsel %vm422, %v452, %v454
      %v456 = vrot.slane %v294, 1
      %v457 = vsel %vm422, %v454, %v456
      %v458 = vrot.slane %v295, 1
      %v459 = vsel %vm422, %v456, %v458
      %v460 = vrot.slane %v296, 1
      %v461 = vsel %vm422, %v458, %v460
      %v462 = vrot.slane %v297, 1
      %v463 = vsel %vm422, %v460, %v462
      %v464 = vrot.slane %v298, 1
      %v465 = vsel %vm422, %v462, %v464
      %v466 = vrot.slane %v299, 1
      %v467 = vsel %vm422, %v464, %v466
      %v468 = vrot.slane %v300, 1
      %v469 = vsel %vm422, %v466, %v468
      %v470 = vrot.slane %v301, 1
      %v471 = vsel %vm422, %v468, %v470
      %v472 = vrot.slane %v302, 1
      %v473 = vsel %vm422, %v470, %v472
      %v474 = vrot.slane %v303, 1
      %v475 = vsel %vm422, %v472, %v474
      %v476 = vrot.slane %v304, 1
      %v477 = vsel %vm422, %v474, %v476
      %v478 = vrot.slane %v305, 1
      %v479 = vsel %vm422, %v476, %v478
      %v480 = vrot.slane %v306, 1
      %v481 = vsel %vm422, %v478, %v480
      %v482 = vrot.slane %v307, 1
      %v483 = vsel %vm422, %v480, %v482
      %v484 = vrot.slane %v308, 1
      %v485 = vsel %vm422, %v482, %v484
      %v486 = vrot.slane %v309, 1
      %v487 = vsel %vm422, %v484, %v486
      %v488 = vrot.slane %v310, 1
      %v489 = vsel %vm422, %v486, %v488
      %v490 = vrot.slane %v311, 1
      %v491 = vsel %vm422, %v488, %v490
      %v492 = vrot.slane %v312, 1
      %v493 = vsel %vm422, %v490, %v492
      %v494 = vrot.slane %v313, 1
      %v495 = vsel %vm422, %v492, %v494
      %v496 = vrot.slane %v314, 1
      %v497 = vsel %vm422, %v494, %v496
      %v498 = vrot.slane %v315, 1
      %v499 = vsel %vm422, %v496, %v498
      %v500 = vrot.slane %v316, 1
      %v501 = vsel %vm422, %v498, %v500
      %v502 = vrot.slane %v317, 1
      %v503 = vsel %vm422, %v500, %v502
      %v504 = vrot.slane %v318, 1
      %v505 = vsel %vm422, %v502, %v504
      %v506 = vrot.slane %v319, 1
      %v507 = vsel %vm422, %v504, %v506
      %v508 = vrot.slane %v320, 1
      %v509 = vsel %vm422, %v506, %v508
      %v510 = vrot.slane %v321, 1
      %v511 = vsel %vm422, %v508, %v510
      %v512 = vrot.slane %v322, 1
      %v513 = vsel %vm422, %v510, %v512
      %v514 = vrot.slane %v323, 1
      %v515 = vsel %vm422, %v512, %v514
      %v516 = vrot.slane %v324, 1
      %v517 = vsel %vm422, %v514, %v516
      %v518 = vrot.slane %v325, 1
      %v519 = vsel %vm422, %v516, %v518
      %v520 = vrot.slane %v326, 1
      %v521 = vsel %vm422, %v518, %v520
      %v522 = vrot.slane %v327, 1
      %v523 = vsel %vm422, %v520, %v522
      %v524 = vrot.slane %v328, 1
      %v525 = vsel %vm422, %v522, %v524
      %v526 = vrot.slane %v329, 1
      %v527 = vsel %vm422, %v524, %v526
      %v528 = vrot.slane %v330, 1
      %v529 = vsel %vm422, %v526, %v528
      %v530 = vrot.slane %v331, 1
      %v531 = vsel %vm422, %v528, %v530
      %v532 = vrot.slane %v332, 1
      %v533 = vsel %vm422, %v530, %v532
      %v534 = vrot.slane %v333, 1
      %v535 = vsel %vm422, %v532, %v534
      %v536 = vrot.slane %v334, 1
      %v537 = vsel %vm422, %v534, %v536
      %v538 = vrot.slane %v335, 1
      %v539 = vsel %vm422, %v536, %v538
      %v540 = vrot.slane %v336, 1
      %v541 = vsel %vm422, %v538, %v540
      %v542 = vrot.slane %v337, 1
      %v543 = vsel %vm422, %v540, %v542
      %v544 = vrot.slane %v338, 1
      %v545 = vsel %vm422, %v542, %v544
      %v546 = vrot.slane %v339, 1
      %v547 = vsel %vm422, %v544, %v546
      %v548 = vrot.slane %v340, 1
      %v549 = vsel %vm422, %v546, %v548
      %vm550 = vcmask 523264
      %v551 = vsel %vm550, %v425, 0
      %v553 = vsel %vm550, %v427, 0
      %v555 = vsel %vm550, %v429, 0
      %v557 = vsel %vm550, %v431, 0
      %v559 = vsel %vm550, %v433, 0
      %v561 = vsel %vm550, %v435, 0
      %v563 = vsel %vm550, %v437, 0
      %v565 = vsel %vm550, %v439, 0
      %v567 = vsel %vm550, %v441, 0
      %v569 = vsel %vm550, %v443, 0
      %v571 = vsel %vm550, %v445, 0
      %v573 = vsel %vm550, %v447, 0
      %v575 = vsel %vm550, %v449, 0
      %v577 = vsel %vm550, %v451, 0
      %v579 = vsel %vm550, %v453, 0
      %v581 = vsel %vm550, %v455, 0
      %v583 = vsel %vm550, %v457, 0
      %v585 = vsel %vm550, %v459, 0
      %v587 = vsel %vm550, %v461, 0
      %v589 = vsel %vm550, %v463, 0
      %v591 = vsel %vm550, %v465, 0
      %v593 = vsel %vm550, %v467, 0
      %v595 = vsel %vm550, %v469, 0
      %v597 = vsel %vm550, %v471, 0
      %v599 = vsel %vm550, %v473, 0
      %v601 = vsel %vm550, %v475, 0
      %v603 = vsel %vm550, %v477, 0
      %v605 = vsel %vm550, %v479, 0
      %v607 = vsel %vm550, %v481, 0
      %v609 = vsel %vm550, %v483, 0
      %v611 = vsel %vm550, %v485, 0
      %v613 = vsel %vm550, %v487, 0
      %v615 = vsel %vm550, %v489, 0
      %v617 = vsel %vm550, %v491, 0
      %v619 = vsel %vm550, %v493, 0
      %v621 = vsel %vm550, %v495, 0
      %v623 = vsel %vm550, %v497, 0
      %v625 = vsel %vm550, %v499, 0
      %v627 = vsel %vm550, %v501, 0
      %v629 = vsel %vm550, %v503, 0
      %v631 = vsel %vm550, %v505, 0
      %v633 = vsel %vm550, %v507, 0
      %v635 = vsel %vm550, %v509, 0
      %v637 = vsel %vm550, %v511, 0
      %v639 = vsel %vm550, %v513, 0
      %v641 = vsel %vm550, %v515, 0
      %v643 = vsel %vm550, %v517, 0
      %v645 = vsel %vm550, %v519, 0
      %v647 = vsel %vm550, %v521, 0
      %v649 = vsel %vm550, %v523, 0
      %v651 = vsel %vm550, %v525, 0
      %v653 = vsel %vm550, %v527, 0
      %v655 = vsel %vm550, %v529, 0
      %v657 = vsel %vm550, %v531, 0
      %v659 = vsel %vm550, %v533, 0
      %v661 = vsel %vm550, %v535, 0
      %v663 = vsel %vm550, %v537, 0
      %v665 = vsel %vm550, %v539, 0
      %v667 = vsel %vm550, %v541, 0
      %v669 = vsel %vm550, %v543, 0
      %v671 = vsel %vm550, %v545, 0
      %v673 = vsel %vm550, %v547, 0
      %v675 = vsel %vm550, %v549, 0
      %v677 = vsel %vm550, %v548, 0
      %679 = vmatprep.subr.mxu0 0.0
      %680 = vmatpush1.msra.mxu0 %v350
      %681 = vmatprep.subr.mxu0 0.0
      %682 = vmatpush1.msra.mxu0 %v351
      %683 = vmatprep.subr.mxu0 0.0
      %684 = vmatpush1.msra.mxu0 %v352
      %685 = vmatprep.subr.mxu0 0.0
      %686 = vmatpush1.msra.mxu0 %v353
      %687 = vmatprep.subr.mxu0 0.0
      %688 = vmatpush1.msra.mxu0 %v354
      %689 = vmatprep.subr.mxu0 0.0
      %690 = vmatpush1.msra.mxu0 %v355
      %691 = vmatprep.subr.mxu0 0.0
      %692 = vmatpush1.msra.mxu0 %v356
      %693 = vmatprep.subr.mxu0 0.0
      %694 = vmatpush1.msra.mxu0 %v357
      %695 = vmatprep.subr.mxu0 0.0
      %696 = vmatpush1.msra.mxu0 0.0
      %697 = vmatprep.subr.mxu0 0.0
      %698 = vmatpush1.msra.mxu0 0.0
      %699 = vmatprep.subr.mxu0 0.0
      %700 = vmatpush1.msra.mxu0 0.0
      %701 = vmatprep.subr.mxu0 0.0
      %702 = vmatpush1.msra.mxu0 0.0
      %703 = vmatprep.subr.mxu0 0.0
      %704 = vmatpush1.msra.mxu0 0.0
      %705 = vmatprep.subr.mxu0 0.0
      %706 = vmatpush1.msra.mxu0 0.0
      %707 = vmatprep.subr.mxu0 0.0
      %708 = vmatpush1.msra.mxu0 0.0
      %709 = vmatprep.subr.mxu0 0.0
      %710 = vmatpush1.msra.mxu0 0.0
      %711 = vmatprep.subr.mxu0 0.0
      %712 = vmatpush1.msra.mxu0 0.0
      %713 = vmatprep.subr.mxu0 0.0
      %714 = vmatpush1.msra.mxu0 0.0
      %715 = vmatprep.subr.mxu0 0.0
      %716 = vmatpush1.msra.mxu0 0.0
      %717 = vmatprep.subr.mxu0 0.0
      %718 = vmatpush1.msra.mxu0 0.0
      %719 = vmatprep.subr.mxu0 0.0
      %720 = vmatpush1.msra.mxu0 0.0
      %721 = vmatprep.subr.mxu0 0.0
      %722 = vmatpush1.msra.mxu0 0.0
      %723 = vmatprep.subr.mxu0 0.0
      %724 = vmatpush1.msra.mxu0 0.0
      %725 = vmatprep.subr.mxu0 0.0
      %726 = vmatpush1.msra.mxu0 0.0
      %727 = vmatprep.subr.mxu0 0.0
      %728 = vmatpush1.msra.mxu0 0.0
      %729 = vmatprep.subr.mxu0 0.0
      %730 = vmatpush1.msra.mxu0 0.0
      %731 = vmatprep.subr.mxu0 0.0
      %732 = vmatpush1.msra.mxu0 0.0
      %733 = vmatprep.subr.mxu0 0.0
      %734 = vmatpush1.msra.mxu0 0.0
      %735 = vmatprep.subr.mxu0 0.0
      %736 = vmatpush1.msra.mxu0 0.0
      %737 = vmatprep.subr.mxu0 0.0
      %738 = vmatpush1.msra.mxu0 0.0
      %739 = vmatprep.subr.mxu0 0.0
      %740 = vmatpush1.msra.mxu0 0.0
      %741 = vmatprep.subr.mxu0 0.0
      %742 = vmatpush1.msra.mxu0 0.0
      %743 = vmatprep.mubr.f32.mxu0 0.0
      %744 = vmatmul.mubr.f32.gmra.mrb[0].mxu0 %v551
      %v745 = vpop.f32.mrb[0].mxu0
      %v746 = vadd.f32 0.0, %v745
      %v747 = vpop.f32.mrb[0].mxu0
      %748 = vmatprep.mubr.f32.mxu0 0.0
      %749 = vmatmul.mubr.f32.gmra.mrb[0].mxu0 %v553
      %v750 = vpop.f32.mrb[0].mxu0
      %v751 = vadd.f32 0.0, %v750
      %v752 = vpop.f32.mrb[0].mxu0
      %753 = vmatprep.mubr.f32.mxu0 0.0
      %754 = vmatmul.mubr.f32.gmra.mrb[0].mxu0 %v555
      %v755 = vpop.f32.mrb[0].mxu0
      %v756 = vadd.f32 0.0, %v755
      %v757 = vpop.f32.mrb[0].mxu0
      %758 = vmatprep.mubr.f32.mxu0 0.0
      %759 = vmatmul.mubr.f32.gmra.mrb[0].mxu0 %v557
      %v760 = vpop.f32.mrb[0].mxu0
      %v761 = vadd.f32 0.0, %v760
      %v762 = vpop.f32.mrb[0].mxu0
      %763 = vmatprep.mubr.f32.mxu0 0.0
      %764 = vmatmul.mubr.f32.gmra.mrb[0].mxu0 %v559
      %v765 = vpop.f32.mrb[0].mxu0
      %v766 = vadd.f32 0.0, %v765
      %v767 = vpop.f32.mrb[0].mxu0
      %768 = vmatprep.mubr.f32.mxu0 0.0
      %769 = vmatmul.mubr.f32.gmra.mrb[0].mxu0 %v561
      %v770 = vpop.f32.mrb[0].mxu0
      %v771 = vadd.f32 0.0, %v770
      %v772 = vpop.f32.mrb[0].mxu0
      %773 = vmatprep.mubr.f32.mxu0 0.0
      %774 = vmatmul.mubr.f32.gmra.mrb[0].mxu0 %v563
      %v775 = vpop.f32.mrb[0].mxu0
      %v776 = vadd.f32 0.0, %v775
      %v777 = vpop.f32.mrb[0].mxu0
      %778 = vmatprep.mubr.f32.mxu0 0.0
      %779 = vmatmul.mubr.f32.gmra.mrb[0].mxu0 %v565
      %v780 = vpop.f32.mrb[0].mxu0
      %v781 = vadd.f32 0.0, %v780
      %v782 = vpop.f32.mrb[0].mxu0
      %783 = vmatprep.mubr.f32.mxu0 0.0
      %784 = vmatmul.mubr.f32.gmra.mrb[0].mxu0 %v567
      %v785 = vpop.f32.mrb[0].mxu0
      %v786 = vadd.f32 0.0, %v785
      %v787 = vpop.f32.mrb[0].mxu0
      %788 = vmatprep.mubr.f32.mxu0 0.0
      %789 = vmatmul.mubr.f32.gmra.mrb[0].mxu0 %v569
      %v790 = vpop.f32.mrb[0].mxu0
      %v791 = vadd.f32 0.0, %v790
      %v792 = vpop.f32.mrb[0].mxu0
      %793 = vmatprep.mubr.f32.mxu0 0.0
      %794 = vmatmul.mubr.f32.gmra.mrb[0].mxu0 %v571
      %v795 = vpop.f32.mrb[0].mxu0
      %v796 = vadd.f32 0.0, %v795
      %v797 = vpop.f32.mrb[0].mxu0
      %798 = vmatprep.mubr.f32.mxu0 0.0
      %799 = vmatmul.mubr.f32.gmra.mrb[0].mxu0 %v573
      %v800 = vpop.f32.mrb[0].mxu0
      %v801 = vadd.f32 0.0, %v800
      %v802 = vpop.f32.mrb[0].mxu0
      %803 = vmatprep.mubr.f32.mxu0 0.0
      %804 = vmatmul.mubr.f32.gmra.mrb[0].mxu0 %v575
      %v805 = vpop.f32.mrb[0].mxu0
      %v806 = vadd.f32 0.0, %v805
      %v807 = vpop.f32.mrb[0].mxu0
      %808 = vmatprep.mubr.f32.mxu0 0.0
      %809 = vmatmul.mubr.f32.gmra.mrb[0].mxu0 %v577
      %v810 = vpop.f32.mrb[0].mxu0
      %v811 = vadd.f32 0.0, %v810
      %v812 = vpop.f32.mrb[0].mxu0
      %813 = vmatprep.mubr.f32.mxu0 0.0
      %814 = vmatmul.mubr.f32.gmra.mrb[0].mxu0 %v579
      %v815 = vpop.f32.mrb[0].mxu0
      %v816 = vadd.f32 0.0, %v815
      %v817 = vpop.f32.mrb[0].mxu0
      %818 = vmatprep.mubr.f32.mxu0 0.0
      %819 = vmatmul.mubr.f32.gmra.mrb[0].mxu0 %v581
      %v820 = vpop.f32.mrb[0].mxu0
      %v821 = vadd.f32 0.0, %v820
      %v822 = vpop.f32.mrb[0].mxu0
      %823 = vmatprep.mubr.f32.mxu0 0.0
      %824 = vmatmul.mubr.f32.gmra.mrb[0].mxu0 %v583
      %v825 = vpop.f32.mrb[0].mxu0
      %v826 = vadd.f32 0.0, %v825
      %v827 = vpop.f32.mrb[0].mxu0
      %828 = vmatprep.mubr.f32.mxu0 0.0
      %829 = vmatmul.mubr.f32.gmra.mrb[0].mxu0 %v585
      %v830 = vpop.f32.mrb[0].mxu0
      %v831 = vadd.f32 0.0, %v830
      %v832 = vpop.f32.mrb[0].mxu0
      %833 = vmatprep.mubr.f32.mxu0 0.0
      %834 = vmatmul.mubr.f32.gmra.mrb[0].mxu0 %v587
      %v835 = vpop.f32.mrb[0].mxu0
      %v836 = vadd.f32 0.0, %v835
      %v837 = vpop.f32.mrb[0].mxu0
      %838 = vmatprep.mubr.f32.mxu0 0.0
      %839 = vmatmul.mubr.f32.gmra.mrb[0].mxu0 %v589
      %v840 = vpop.f32.mrb[0].mxu0
      %v841 = vadd.f32 0.0, %v840
      %v842 = vpop.f32.mrb[0].mxu0
      %843 = vmatprep.mubr.f32.mxu0 0.0
      %844 = vmatmul.mubr.f32.gmra.mrb[0].mxu0 %v591
      %v845 = vpop.f32.mrb[0].mxu0
      %v846 = vadd.f32 0.0, %v845
      %v847 = vpop.f32.mrb[0].mxu0
      %848 = vmatprep.mubr.f32.mxu0 0.0
      %849 = vmatmul.mubr.f32.gmra.mrb[0].mxu0 %v593
      %v850 = vpop.f32.mrb[0].mxu0
      %v851 = vadd.f32 0.0, %v850
      %v852 = vpop.f32.mrb[0].mxu0
      %853 = vmatprep.mubr.f32.mxu0 0.0
      %854 = vmatmul.mubr.f32.gmra.mrb[0].mxu0 %v595
      %v855 = vpop.f32.mrb[0].mxu0
      %v856 = vadd.f32 0.0, %v855
      %v857 = vpop.f32.mrb[0].mxu0
      %858 = vmatprep.mubr.f32.mxu0 0.0
      %859 = vmatmul.mubr.f32.gmra.mrb[0].mxu0 %v597
      %v860 = vpop.f32.mrb[0].mxu0
      %v861 = vadd.f32 0.0, %v860
      %v862 = vpop.f32.mrb[0].mxu0
      %863 = vmatprep.mubr.f32.mxu0 0.0
      %864 = vmatmul.mubr.f32.gmra.mrb[0].mxu0 %v599
      %v865 = vpop.f32.mrb[0].mxu0
      %v866 = vadd.f32 0.0, %v865
      %v867 = vpop.f32.mrb[0].mxu0
      %868 = vmatprep.mubr.f32.mxu0 0.0
      %869 = vmatmul.mubr.f32.gmra.mrb[0].mxu0 %v601
      %v870 = vpop.f32.mrb[0].mxu0
      %v871 = vadd.f32 0.0, %v870
      %v872 = vpop.f32.mrb[0].mxu0
      %873 = vmatprep.mubr.f32.mxu0 0.0
      %874 = vmatmul.mubr.f32.gmra.mrb[0].mxu0 %v603
      %v875 = vpop.f32.mrb[0].mxu0
      %v876 = vadd.f32 0.0, %v875
      %v877 = vpop.f32.mrb[0].mxu0
      %878 = vmatprep.mubr.f32.mxu0 0.0
      %879 = vmatmul.mubr.f32.gmra.mrb[0].mxu0 %v605
      %v880 = vpop.f32.mrb[0].mxu0
      %v881 = vadd.f32 0.0, %v880
      %v882 = vpop.f32.mrb[0].mxu0
      %883 = vmatprep.mubr.f32.mxu0 0.0
      %884 = vmatmul.mubr.f32.gmra.mrb[0].mxu0 %v607
      %v885 = vpop.f32.mrb[0].mxu0
      %v886 = vadd.f32 0.0, %v885
      %v887 = vpop.f32.mrb[0].mxu0
      %888 = vmatprep.mubr.f32.mxu0 0.0
      %889 = vmatmul.mubr.f32.gmra.mrb[0].mxu0 %v609
      %v890 = vpop.f32.mrb[0].mxu0
      %v891 = vadd.f32 0.0, %v890
      %v892 = vpop.f32.mrb[0].mxu0
      %893 = vmatprep.mubr.f32.mxu0 0.0
      %894 = vmatmul.mubr.f32.gmra.mrb[0].mxu0 %v611
      %v895 = vpop.f32.mrb[0].mxu0
      %v896 = vadd.f32 0.0, %v895
      %v897 = vpop.f32.mrb[0].mxu0
      %898 = vmatprep.mubr.f32.mxu0 0.0
      %899 = vmatmul.mubr.f32.gmra.mrb[0].mxu0 %v613
      %v900 = vpop.f32.mrb[0].mxu0
      %v901 = vadd.f32 0.0, %v900
      %v902 = vpop.f32.mrb[0].mxu0
      %903 = vmatprep.mubr.f32.mxu0 0.0
      %904 = vmatmul.mubr.f32.gmra.mrb[0].mxu0 %v615
      %v905 = vpop.f32.mrb[0].mxu0
      %v906 = vadd.f32 0.0, %v905
      %v907 = vpop.f32.mrb[0].mxu0
      %908 = vmatprep.mubr.f32.mxu0 0.0
      %909 = vmatmul.mubr.f32.gmra.mrb[0].mxu0 %v617
      %v910 = vpop.f32.mrb[0].mxu0
      %v911 = vadd.f32 0.0, %v910
      %v912 = vpop.f32.mrb[0].mxu0
      %913 = vmatprep.mubr.f32.mxu0 0.0
      %914 = vmatmul.mubr.f32.gmra.mrb[0].mxu0 %v619
      %v915 = vpop.f32.mrb[0].mxu0
      %v916 = vadd.f32 0.0, %v915
      %v917 = vpop.f32.mrb[0].mxu0
      %918 = vmatprep.mubr.f32.mxu0 0.0
      %919 = vmatmul.mubr.f32.gmra.mrb[0].mxu0 %v621
      %v920 = vpop.f32.mrb[0].mxu0
      %v921 = vadd.f32 0.0, %v920
      %v922 = vpop.f32.mrb[0].mxu0
      %923 = vmatprep.mubr.f32.mxu0 0.0
      %924 = vmatmul.mubr.f32.gmra.mrb[0].mxu0 %v623
      %v925 = vpop.f32.mrb[0].mxu0
      %v926 = vadd.f32 0.0, %v925
      %v927 = vpop.f32.mrb[0].mxu0
      %928 = vmatprep.mubr.f32.mxu0 0.0
      %929 = vmatmul.mubr.f32.gmra.mrb[0].mxu0 %v625
      %v930 = vpop.f32.mrb[0].mxu0
      %v931 = vadd.f32 0.0, %v930
      %v932 = vpop.f32.mrb[0].mxu0
      %933 = vmatprep.mubr.f32.mxu0 0.0
      %934 = vmatmul.mubr.f32.gmra.mrb[0].mxu0 %v627
      %v935 = vpop.f32.mrb[0].mxu0
      %v936 = vadd.f32 0.0, %v935
      %v937 = vpop.f32.mrb[0].mxu0
      %938 = vmatprep.mubr.f32.mxu0 0.0
      %939 = vmatmul.mubr.f32.gmra.mrb[0].mxu0 %v629
      %v940 = vpop.f32.mrb[0].mxu0
      %v941 = vadd.f32 0.0, %v940
      %v942 = vpop.f32.mrb[0].mxu0
      %943 = vmatprep.mubr.f32.mxu0 0.0
      %944 = vmatmul.mubr.f32.gmra.mrb[0].mxu0 %v631
      %v945 = vpop.f32.mrb[0].mxu0
      %v946 = vadd.f32 0.0, %v945
      %v947 = vpop.f32.mrb[0].mxu0
      %948 = vmatprep.mubr.f32.mxu0 0.0
      %949 = vmatmul.mubr.f32.gmra.mrb[0].mxu0 %v633
      %v950 = vpop.f32.mrb[0].mxu0
      %v951 = vadd.f32 0.0, %v950
      %v952 = vpop.f32.mrb[0].mxu0
      %953 = vmatprep.mubr.f32.mxu0 0.0
      %954 = vmatmul.mubr.f32.gmra.mrb[0].mxu0 %v635
      %v955 = vpop.f32.mrb[0].mxu0
      %v956 = vadd.f32 0.0, %v955
      %v957 = vpop.f32.mrb[0].mxu0
      %958 = vmatprep.mubr.f32.mxu0 0.0
      %959 = vmatmul.mubr.f32.gmra.mrb[0].mxu0 %v637
      %v960 = vpop.f32.mrb[0].mxu0
      %v961 = vadd.f32 0.0, %v960
      %v962 = vpop.f32.mrb[0].mxu0
      %963 = vmatprep.mubr.f32.mxu0 0.0
      %964 = vmatmul.mubr.f32.gmra.mrb[0].mxu0 %v639
      %v965 = vpop.f32.mrb[0].mxu0
      %v966 = vadd.f32 0.0, %v965
      %v967 = vpop.f32.mrb[0].mxu0
      %968 = vmatprep.mubr.f32.mxu0 0.0
      %969 = vmatmul.mubr.f32.gmra.mrb[0].mxu0 %v641
      %v970 = vpop.f32.mrb[0].mxu0
      %v971 = vadd.f32 0.0, %v970
      %v972 = vpop.f32.mrb[0].mxu0
      %973 = vmatprep.mubr.f32.mxu0 0.0
      %974 = vmatmul.mubr.f32.gmra.mrb[0].mxu0 %v643
      %v975 = vpop.f32.mrb[0].mxu0
      %v976 = vadd.f32 0.0, %v975
      %v977 = vpop.f32.mrb[0].mxu0
      %978 = vmatprep.mubr.f32.mxu0 0.0
      %979 = vmatmul.mubr.f32.gmra.mrb[0].mxu0 %v645
      %v980 = vpop.f32.mrb[0].mxu0
      %v981 = vadd.f32 0.0, %v980
      %v982 = vpop.f32.mrb[0].mxu0
      %983 = vmatprep.mubr.f32.mxu0 0.0
      %984 = vmatmul.mubr.f32.gmra.mrb[0].mxu0 %v647
      %v985 = vpop.f32.mrb[0].mxu0
      %v986 = vadd.f32 0.0, %v985
      %v987 = vpop.f32.mrb[0].mxu0
      %988 = vmatprep.mubr.f32.mxu0 0.0
      %989 = vmatmul.mubr.f32.gmra.mrb[0].mxu0 %v649
      %v990 = vpop.f32.mrb[0].mxu0
      %v991 = vadd.f32 0.0, %v990
      %v992 = vpop.f32.mrb[0].mxu0
      %993 = vmatprep.mubr.f32.mxu0 0.0
      %994 = vmatmul.mubr.f32.gmra.mrb[0].mxu0 %v651
      %v995 = vpop.f32.mrb[0].mxu0
      %v996 = vadd.f32 0.0, %v995
      %v997 = vpop.f32.mrb[0].mxu0
      %998 = vmatprep.mubr.f32.mxu0 0.0
      %999 = vmatmul.mubr.f32.gmra.mrb[0].mxu0 %v653
      %v1000 = vpop.f32.mrb[0].mxu0
      %v1001 = vadd.f32 0.0, %v1000
      %v1002 = vpop.f32.mrb[0].mxu0
      %1003 = vmatprep.mubr.f32.mxu0 0.0
      %1004 = vmatmul.mubr.f32.gmra.mrb[0].mxu0 %v655
      %v1005 = vpop.f32.mrb[0].mxu0
      %v1006 = vadd.f32 0.0, %v1005
      %v1007 = vpop.f32.mrb[0].mxu0
      %1008 = vmatprep.mubr.f32.mxu0 0.0
      %1009 = vmatmul.mubr.f32.gmra.mrb[0].mxu0 %v657
      %v1010 = vpop.f32.mrb[0].mxu0
      %v1011 = vadd.f32 0.0, %v1010
      %v1012 = vpop.f32.mrb[0].mxu0
      %1013 = vmatprep.mubr.f32.mxu0 0.0
      %1014 = vmatmul.mubr.f32.gmra.mrb[0].mxu0 %v659
      %v1015 = vpop.f32.mrb[0].mxu0
      %v1016 = vadd.f32 0.0, %v1015
      %v1017 = vpop.f32.mrb[0].mxu0
      %1018 = vmatprep.mubr.f32.mxu0 0.0
      %1019 = vmatmul.mubr.f32.gmra.mrb[0].mxu0 %v661
      %v1020 = vpop.f32.mrb[0].mxu0
      %v1021 = vadd.f32 0.0, %v1020
      %v1022 = vpop.f32.mrb[0].mxu0
      %1023 = vmatprep.mubr.f32.mxu0 0.0
      %1024 = vmatmul.mubr.f32.gmra.mrb[0].mxu0 %v663
      %v1025 = vpop.f32.mrb[0].mxu0
      %v1026 = vadd.f32 0.0, %v1025
      %v1027 = vpop.f32.mrb[0].mxu0
      %1028 = vmatprep.mubr.f32.mxu0 0.0
      %1029 = vmatmul.mubr.f32.gmra.mrb[0].mxu0 %v665
      %v1030 = vpop.f32.mrb[0].mxu0
      %v1031 = vadd.f32 0.0, %v1030
      %v1032 = vpop.f32.mrb[0].mxu0
      %1033 = vmatprep.mubr.f32.mxu0 0.0
      %1034 = vmatmul.mubr.f32.gmra.mrb[0].mxu0 %v667
      %v1035 = vpop.f32.mrb[0].mxu0
      %v1036 = vadd.f32 0.0, %v1035
      %v1037 = vpop.f32.mrb[0].mxu0
      %1038 = vmatprep.mubr.f32.mxu0 0.0
      %1039 = vmatmul.mubr.f32.gmra.mrb[0].mxu0 %v669
      %v1040 = vpop.f32.mrb[0].mxu0
      %v1041 = vadd.f32 0.0, %v1040
      %v1042 = vpop.f32.mrb[0].mxu0
      %1043 = vmatprep.mubr.f32.mxu0 0.0
      %1044 = vmatmul.mubr.f32.gmra.mrb[0].mxu0 %v671
      %v1045 = vpop.f32.mrb[0].mxu0
      %v1046 = vadd.f32 0.0, %v1045
      %v1047 = vpop.f32.mrb[0].mxu0
      %1048 = vmatprep.mubr.f32.mxu0 0.0
      %1049 = vmatmul.mubr.f32.gmra.mrb[0].mxu0 %v673
      %v1050 = vpop.f32.mrb[0].mxu0
      %v1051 = vadd.f32 0.0, %v1050
      %v1052 = vpop.f32.mrb[0].mxu0
      %1053 = vmatprep.mubr.f32.mxu0 0.0
      %1054 = vmatmul.mubr.f32.gmra.mrb[0].mxu0 %v675
      %v1055 = vpop.f32.mrb[0].mxu0
      %v1056 = vadd.f32 0.0, %v1055
      %v1057 = vpop.f32.mrb[0].mxu0
      %1058 = vmatprep.mubr.f32.mxu0 0.0
      %1059 = vmatmul.mubr.f32.gmra.mrb[0].mxu0 %v677
      %v1060 = vpop.f32.mrb[0].mxu0
      %v1061 = vadd.f32 0.0, %v1060
      %v1062 = vpop.f32.mrb[0].mxu0
      %1063 = vdwg.mxu0
      %v1064 = vsel %vm550, %v277, 0
      %v1066 = vsel %vm550, %v278, 0
      %v1068 = vsel %vm550, %v279, 0
      %v1070 = vsel %vm550, %v280, 0
      %v1072 = vsel %vm550, %v281, 0
      %v1074 = vsel %vm550, %v282, 0
      %v1076 = vsel %vm550, %v283, 0
      %v1078 = vsel %vm550, %v284, 0
      %v1080 = vsel %vm550, %v285, 0
      %v1082 = vsel %vm550, %v286, 0
      %v1084 = vsel %vm550, %v287, 0
      %v1086 = vsel %vm550, %v288, 0
      %v1088 = vsel %vm550, %v289, 0
      %v1090 = vsel %vm550, %v290, 0
      %v1092 = vsel %vm550, %v291, 0
      %v1094 = vsel %vm550, %v292, 0
      %v1096 = vsel %vm550, %v293, 0
      %v1098 = vsel %vm550, %v294, 0
      %v1100 = vsel %vm550, %v295, 0
      %v1102 = vsel %vm550, %v296, 0
      %v1104 = vsel %vm550, %v297, 0
      %v1106 = vsel %vm550, %v298, 0
      %v1108 = vsel %vm550, %v299, 0
      %v1110 = vsel %vm550, %v300, 0
      %v1112 = vsel %vm550, %v301, 0
      %v1114 = vsel %vm550, %v302, 0
      %v1116 = vsel %vm550, %v303, 0
      %v1118 = vsel %vm550, %v304, 0
      %v1120 = vsel %vm550, %v305, 0
      %v1122 = vsel %vm550, %v306, 0
      %v1124 = vsel %vm550, %v307, 0
      %v1126 = vsel %vm550, %v308, 0
      %v1128 = vsel %vm550, %v309, 0
      %v1130 = vsel %vm550, %v310, 0
      %v1132 = vsel %vm550, %v311, 0
      %v1134 = vsel %vm550, %v312, 0
      %v1136 = vsel %vm550, %v313, 0
      %v1138 = vsel %vm550, %v314, 0
      %v1140 = vsel %vm550, %v315, 0
      %v1142 = vsel %vm550, %v316, 0
      %v1144 = vsel %vm550, %v317, 0
      %v1146 = vsel %vm550, %v318, 0
      %v1148 = vsel %vm550, %v319, 0
      %v1150 = vsel %vm550, %v320, 0
      %v1152 = vsel %vm550, %v321, 0
      %v1154 = vsel %vm550, %v322, 0
      %v1156 = vsel %vm550, %v323, 0
      %v1158 = vsel %vm550, %v324, 0
      %v1160 = vsel %vm550, %v325, 0
      %v1162 = vsel %vm550, %v326, 0
      %v1164 = vsel %vm550, %v327, 0
      %v1166 = vsel %vm550, %v328, 0
      %v1168 = vsel %vm550, %v329, 0
      %v1170 = vsel %vm550, %v330, 0
      %v1172 = vsel %vm550, %v331, 0
      %v1174 = vsel %vm550, %v332, 0
      %v1176 = vsel %vm550, %v333, 0
      %v1178 = vsel %vm550, %v334, 0
      %v1180 = vsel %vm550, %v335, 0
      %v1182 = vsel %vm550, %v336, 0
      %v1184 = vsel %vm550, %v337, 0
      %v1186 = vsel %vm550, %v338, 0
      %v1188 = vsel %vm550, %v339, 0
      %v1190 = vsel %vm550, %v340, 0
      %1192 = vmatprep.subr.mxu0 0.0
      %1193 = vmatpush1.msra.mxu0 %v341
      %1194 = vmatprep.subr.mxu0 0.0
      %1195 = vmatpush1.msra.mxu0 %v342
      %1196 = vmatprep.subr.mxu0 0.0
      %1197 = vmatpush1.msra.mxu0 %v343
      %1198 = vmatprep.subr.mxu0 0.0
      %1199 = vmatpush1.msra.mxu0 %v344
      %1200 = vmatprep.subr.mxu0 0.0
      %1201 = vmatpush1.msra.mxu0 %v345
      %1202 = vmatprep.subr.mxu0 0.0
      %1203 = vmatpush1.msra.mxu0 %v346
      %1204 = vmatprep.subr.mxu0 0.0
      %1205 = vmatpush1.msra.mxu0 %v347
      %1206 = vmatprep.subr.mxu0 0.0
      %1207 = vmatpush1.msra.mxu0 %v348
      %1208 = vmatprep.subr.mxu0 0.0
      %1209 = vmatpush1.msra.mxu0 0.0
      %1210 = vmatprep.subr.mxu0 0.0
      %1211 = vmatpush1.msra.mxu0 0.0
      %1212 = vmatprep.subr.mxu0 0.0
      %1213 = vmatpush1.msra.mxu0 0.0
      %1214 = vmatprep.subr.mxu0 0.0
      %1215 = vmatpush1.msra.mxu0 0.0
      %1216 = vmatprep.subr.mxu0 0.0
      %1217 = vmatpush1.msra.mxu0 0.0
      %1218 = vmatprep.subr.mxu0 0.0
      %1219 = vmatpush1.msra.mxu0 0.0
      %1220 = vmatprep.subr.mxu0 0.0
      %1221 = vmatpush1.msra.mxu0 0.0
      %1222 = vmatprep.subr.mxu0 0.0
      %1223 = vmatpush1.msra.mxu0 0.0
      %1224 = vmatprep.subr.mxu0 0.0
      %1225 = vmatpush1.msra.mxu0 0.0
      %1226 = vmatprep.subr.mxu0 0.0
      %1227 = vmatpush1.msra.mxu0 0.0
      %1228 = vmatprep.subr.mxu0 0.0
      %1229 = vmatpush1.msra.mxu0 0.0
      %1230 = vmatprep.subr.mxu0 0.0
      %1231 = vmatpush1.msra.mxu0 0.0
      %1232 = vmatprep.subr.mxu0 0.0
      %1233 = vmatpush1.msra.mxu0 0.0
      %1234 = vmatprep.subr.mxu0 0.0
      %1235 = vmatpush1.msra.mxu0 0.0
      %1236 = vmatprep.subr.mxu0 0.0
      %1237 = vmatpush1.msra.mxu0 0.0
      %1238 = vmatprep.subr.mxu0 0.0
      %1239 = vmatpush1.msra.mxu0 0.0
      %1240 = vmatprep.subr.mxu0 0.0
      %1241 = vmatpush1.msra.mxu0 0.0
      %1242 = vmatprep.subr.mxu0 0.0
      %1243 = vmatpush1.msra.mxu0 0.0
      %1244 = vmatprep.subr.mxu0 0.0
      %1245 = vmatpush1.msra.mxu0 0.0
      %1246 = vmatprep.subr.mxu0 0.0
      %1247 = vmatpush1.msra.mxu0 0.0
      %1248 = vmatprep.subr.mxu0 0.0
      %1249 = vmatpush1.msra.mxu0 0.0
      %1250 = vmatprep.subr.mxu0 0.0
      %1251 = vmatpush1.msra.mxu0 0.0
      %1252 = vmatprep.subr.mxu0 0.0
      %1253 = vmatpush1.msra.mxu0 0.0
      %1254 = vmatprep.subr.mxu0 0.0
      %1255 = vmatpush1.msra.mxu0 0.0
      %1256 = vmatprep.mubr.f32.mxu0 0.0
      %1257 = vmatmul.mubr.f32.gmra.mrb[0].mxu0 %v1064
      %v1258 = vpop.f32.mrb[0].mxu0
      %v1259 = vadd.f32 %v746, %v1258
      %v1260 = vpop.f32.mrb[0].mxu0
      %1261 = vmatprep.mubr.f32.mxu0 0.0
      %1262 = vmatmul.mubr.f32.gmra.mrb[0].mxu0 %v1066
      %v1263 = vpop.f32.mrb[0].mxu0
      %v1264 = vadd.f32 %v751, %v1263
      %v1265 = vpop.f32.mrb[0].mxu0
      %1266 = vmatprep.mubr.f32.mxu0 0.0
      %1267 = vmatmul.mubr.f32.gmra.mrb[0].mxu0 %v1068
      %v1268 = vpop.f32.mrb[0].mxu0
      %v1269 = vadd.f32 %v756, %v1268
      %v1270 = vpop.f32.mrb[0].mxu0
      %1271 = vmatprep.mubr.f32.mxu0 0.0
      %1272 = vmatmul.mubr.f32.gmra.mrb[0].mxu0 %v1070
      %v1273 = vpop.f32.mrb[0].mxu0
      %v1274 = vadd.f32 %v761, %v1273
      %v1275 = vpop.f32.mrb[0].mxu0
      %1276 = vmatprep.mubr.f32.mxu0 0.0
      %1277 = vmatmul.mubr.f32.gmra.mrb[0].mxu0 %v1072
      %v1278 = vpop.f32.mrb[0].mxu0
      %v1279 = vadd.f32 %v766, %v1278
      %v1280 = vpop.f32.mrb[0].mxu0
      %1281 = vmatprep.mubr.f32.mxu0 0.0
      %1282 = vmatmul.mubr.f32.gmra.mrb[0].mxu0 %v1074
      %v1283 = vpop.f32.mrb[0].mxu0
      %v1284 = vadd.f32 %v771, %v1283
      %v1285 = vpop.f32.mrb[0].mxu0
      %1286 = vmatprep.mubr.f32.mxu0 0.0
      %1287 = vmatmul.mubr.f32.gmra.mrb[0].mxu0 %v1076
      %v1288 = vpop.f32.mrb[0].mxu0
      %v1289 = vadd.f32 %v776, %v1288
      %v1290 = vpop.f32.mrb[0].mxu0
      %1291 = vmatprep.mubr.f32.mxu0 0.0
      %1292 = vmatmul.mubr.f32.gmra.mrb[0].mxu0 %v1078
      %v1293 = vpop.f32.mrb[0].mxu0
      %v1294 = vadd.f32 %v781, %v1293
      %v1295 = vpop.f32.mrb[0].mxu0
      %1296 = vmatprep.mubr.f32.mxu0 0.0
      %1297 = vmatmul.mubr.f32.gmra.mrb[0].mxu0 %v1080
      %v1298 = vpop.f32.mrb[0].mxu0
      %v1299 = vadd.f32 %v786, %v1298
      %v1300 = vpop.f32.mrb[0].mxu0
      %1301 = vmatprep.mubr.f32.mxu0 0.0
      %1302 = vmatmul.mubr.f32.gmra.mrb[0].mxu0 %v1082
      %v1303 = vpop.f32.mrb[0].mxu0
      %v1304 = vadd.f32 %v791, %v1303
      %v1305 = vpop.f32.mrb[0].mxu0
      %1306 = vmatprep.mubr.f32.mxu0 0.0
      %1307 = vmatmul.mubr.f32.gmra.mrb[0].mxu0 %v1084
      %v1308 = vpop.f32.mrb[0].mxu0
      %v1309 = vadd.f32 %v796, %v1308
      %v1310 = vpop.f32.mrb[0].mxu0
      %1311 = vmatprep.mubr.f32.mxu0 0.0
      %1312 = vmatmul.mubr.f32.gmra.mrb[0].mxu0 %v1086
      %v1313 = vpop.f32.mrb[0].mxu0
      %v1314 = vadd.f32 %v801, %v1313
      %v1315 = vpop.f32.mrb[0].mxu0
      %1316 = vmatprep.mubr.f32.mxu0 0.0
      %1317 = vmatmul.mubr.f32.gmra.mrb[0].mxu0 %v1088
      %v1318 = vpop.f32.mrb[0].mxu0
      %v1319 = vadd.f32 %v806, %v1318
      %v1320 = vpop.f32.mrb[0].mxu0
      %1321 = vmatprep.mubr.f32.mxu0 0.0
      %1322 = vmatmul.mubr.f32.gmra.mrb[0].mxu0 %v1090
      %v1323 = vpop.f32.mrb[0].mxu0
      %v1324 = vadd.f32 %v811, %v1323
      %v1325 = vpop.f32.mrb[0].mxu0
      %1326 = vmatprep.mubr.f32.mxu0 0.0
      %1327 = vmatmul.mubr.f32.gmra.mrb[0].mxu0 %v1092
      %v1328 = vpop.f32.mrb[0].mxu0
      %v1329 = vadd.f32 %v816, %v1328
      %v1330 = vpop.f32.mrb[0].mxu0
      %1331 = vmatprep.mubr.f32.mxu0 0.0
      %1332 = vmatmul.mubr.f32.gmra.mrb[0].mxu0 %v1094
      %v1333 = vpop.f32.mrb[0].mxu0
      %v1334 = vadd.f32 %v821, %v1333
      %v1335 = vpop.f32.mrb[0].mxu0
      %1336 = vmatprep.mubr.f32.mxu0 0.0
      %1337 = vmatmul.mubr.f32.gmra.mrb[0].mxu0 %v1096
      %v1338 = vpop.f32.mrb[0].mxu0
      %v1339 = vadd.f32 %v826, %v1338
      %v1340 = vpop.f32.mrb[0].mxu0
      %1341 = vmatprep.mubr.f32.mxu0 0.0
      %1342 = vmatmul.mubr.f32.gmra.mrb[0].mxu0 %v1098
      %v1343 = vpop.f32.mrb[0].mxu0
      %v1344 = vadd.f32 %v831, %v1343
      %v1345 = vpop.f32.mrb[0].mxu0
      %1346 = vmatprep.mubr.f32.mxu0 0.0
      %1347 = vmatmul.mubr.f32.gmra.mrb[0].mxu0 %v1100
      %v1348 = vpop.f32.mrb[0].mxu0
      %v1349 = vadd.f32 %v836, %v1348
      %v1350 = vpop.f32.mrb[0].mxu0
      %1351 = vmatprep.mubr.f32.mxu0 0.0
      %1352 = vmatmul.mubr.f32.gmra.mrb[0].mxu0 %v1102
      %v1353 = vpop.f32.mrb[0].mxu0
      %v1354 = vadd.f32 %v841, %v1353
      %v1355 = vpop.f32.mrb[0].mxu0
      %1356 = vmatprep.mubr.f32.mxu0 0.0
      %1357 = vmatmul.mubr.f32.gmra.mrb[0].mxu0 %v1104
      %v1358 = vpop.f32.mrb[0].mxu0
      %v1359 = vadd.f32 %v846, %v1358
      %v1360 = vpop.f32.mrb[0].mxu0
      %1361 = vmatprep.mubr.f32.mxu0 0.0
      %1362 = vmatmul.mubr.f32.gmra.mrb[0].mxu0 %v1106
      %v1363 = vpop.f32.mrb[0].mxu0
      %v1364 = vadd.f32 %v851, %v1363
      %v1365 = vpop.f32.mrb[0].mxu0
      %1366 = vmatprep.mubr.f32.mxu0 0.0
      %1367 = vmatmul.mubr.f32.gmra.mrb[0].mxu0 %v1108
      %v1368 = vpop.f32.mrb[0].mxu0
      %v1369 = vadd.f32 %v856, %v1368
      %v1370 = vpop.f32.mrb[0].mxu0
      %1371 = vmatprep.mubr.f32.mxu0 0.0
      %1372 = vmatmul.mubr.f32.gmra.mrb[0].mxu0 %v1110
      %v1373 = vpop.f32.mrb[0].mxu0
      %v1374 = vadd.f32 %v861, %v1373
      %v1375 = vpop.f32.mrb[0].mxu0
      %1376 = vmatprep.mubr.f32.mxu0 0.0
      %1377 = vmatmul.mubr.f32.gmra.mrb[0].mxu0 %v1112
      %v1378 = vpop.f32.mrb[0].mxu0
      %v1379 = vadd.f32 %v866, %v1378
      %v1380 = vpop.f32.mrb[0].mxu0
      %1381 = vmatprep.mubr.f32.mxu0 0.0
      %1382 = vmatmul.mubr.f32.gmra.mrb[0].mxu0 %v1114
      %v1383 = vpop.f32.mrb[0].mxu0
      %v1384 = vadd.f32 %v871, %v1383
      %v1385 = vpop.f32.mrb[0].mxu0
      %1386 = vmatprep.mubr.f32.mxu0 0.0
      %1387 = vmatmul.mubr.f32.gmra.mrb[0].mxu0 %v1116
      %v1388 = vpop.f32.mrb[0].mxu0
      %v1389 = vadd.f32 %v876, %v1388
      %v1390 = vpop.f32.mrb[0].mxu0
      %1391 = vmatprep.mubr.f32.mxu0 0.0
      %1392 = vmatmul.mubr.f32.gmra.mrb[0].mxu0 %v1118
      %v1393 = vpop.f32.mrb[0].mxu0
      %v1394 = vadd.f32 %v881, %v1393
      %v1395 = vpop.f32.mrb[0].mxu0
      %1396 = vmatprep.mubr.f32.mxu0 0.0
      %1397 = vmatmul.mubr.f32.gmra.mrb[0].mxu0 %v1120
      %v1398 = vpop.f32.mrb[0].mxu0
      %v1399 = vadd.f32 %v886, %v1398
      %v1400 = vpop.f32.mrb[0].mxu0
      %1401 = vmatprep.mubr.f32.mxu0 0.0
      %1402 = vmatmul.mubr.f32.gmra.mrb[0].mxu0 %v1122
      %v1403 = vpop.f32.mrb[0].mxu0
      %v1404 = vadd.f32 %v891, %v1403
      %v1405 = vpop.f32.mrb[0].mxu0
      %1406 = vmatprep.mubr.f32.mxu0 0.0
      %1407 = vmatmul.mubr.f32.gmra.mrb[0].mxu0 %v1124
      %v1408 = vpop.f32.mrb[0].mxu0
      %v1409 = vadd.f32 %v896, %v1408
      %v1410 = vpop.f32.mrb[0].mxu0
      %1411 = vmatprep.mubr.f32.mxu0 0.0
      %1412 = vmatmul.mubr.f32.gmra.mrb[0].mxu0 %v1126
      %v1413 = vpop.f32.mrb[0].mxu0
      %v1414 = vadd.f32 %v901, %v1413
      %v1415 = vpop.f32.mrb[0].mxu0
      %1416 = vmatprep.mubr.f32.mxu0 0.0
      %1417 = vmatmul.mubr.f32.gmra.mrb[0].mxu0 %v1128
      %v1418 = vpop.f32.mrb[0].mxu0
      %v1419 = vadd.f32 %v906, %v1418
      %v1420 = vpop.f32.mrb[0].mxu0
      %1421 = vmatprep.mubr.f32.mxu0 0.0
      %1422 = vmatmul.mubr.f32.gmra.mrb[0].mxu0 %v1130
      %v1423 = vpop.f32.mrb[0].mxu0
      %v1424 = vadd.f32 %v911, %v1423
      %v1425 = vpop.f32.mrb[0].mxu0
      %1426 = vmatprep.mubr.f32.mxu0 0.0
      %1427 = vmatmul.mubr.f32.gmra.mrb[0].mxu0 %v1132
      %v1428 = vpop.f32.mrb[0].mxu0
      %v1429 = vadd.f32 %v916, %v1428
      %v1430 = vpop.f32.mrb[0].mxu0
      %1431 = vmatprep.mubr.f32.mxu0 0.0
      %1432 = vmatmul.mubr.f32.gmra.mrb[0].mxu0 %v1134
      %v1433 = vpop.f32.mrb[0].mxu0
      %v1434 = vadd.f32 %v921, %v1433
      %v1435 = vpop.f32.mrb[0].mxu0
      %1436 = vmatprep.mubr.f32.mxu0 0.0
      %1437 = vmatmul.mubr.f32.gmra.mrb[0].mxu0 %v1136
      %v1438 = vpop.f32.mrb[0].mxu0
      %v1439 = vadd.f32 %v926, %v1438
      %v1440 = vpop.f32.mrb[0].mxu0
      %1441 = vmatprep.mubr.f32.mxu0 0.0
      %1442 = vmatmul.mubr.f32.gmra.mrb[0].mxu0 %v1138
      %v1443 = vpop.f32.mrb[0].mxu0
      %v1444 = vadd.f32 %v931, %v1443
      %v1445 = vpop.f32.mrb[0].mxu0
      %1446 = vmatprep.mubr.f32.mxu0 0.0
      %1447 = vmatmul.mubr.f32.gmra.mrb[0].mxu0 %v1140
      %v1448 = vpop.f32.mrb[0].mxu0
      %v1449 = vadd.f32 %v936, %v1448
      %v1450 = vpop.f32.mrb[0].mxu0
      %1451 = vmatprep.mubr.f32.mxu0 0.0
      %1452 = vmatmul.mubr.f32.gmra.mrb[0].mxu0 %v1142
      %v1453 = vpop.f32.mrb[0].mxu0
      %v1454 = vadd.f32 %v941, %v1453
      %v1455 = vpop.f32.mrb[0].mxu0
      %1456 = vmatprep.mubr.f32.mxu0 0.0
      %1457 = vmatmul.mubr.f32.gmra.mrb[0].mxu0 %v1144
      %v1458 = vpop.f32.mrb[0].mxu0
      %v1459 = vadd.f32 %v946, %v1458
      %v1460 = vpop.f32.mrb[0].mxu0
      %1461 = vmatprep.mubr.f32.mxu0 0.0
      %1462 = vmatmul.mubr.f32.gmra.mrb[0].mxu0 %v1146
      %v1463 = vpop.f32.mrb[0].mxu0
      %v1464 = vadd.f32 %v951, %v1463
      %v1465 = vpop.f32.mrb[0].mxu0
      %1466 = vmatprep.mubr.f32.mxu0 0.0
      %1467 = vmatmul.mubr.f32.gmra.mrb[0].mxu0 %v1148
      %v1468 = vpop.f32.mrb[0].mxu0
      %v1469 = vadd.f32 %v956, %v1468
      %v1470 = vpop.f32.mrb[0].mxu0
      %1471 = vmatprep.mubr.f32.mxu0 0.0
      %1472 = vmatmul.mubr.f32.gmra.mrb[0].mxu0 %v1150
      %v1473 = vpop.f32.mrb[0].mxu0
      %v1474 = vadd.f32 %v961, %v1473
      %v1475 = vpop.f32.mrb[0].mxu0
      %1476 = vmatprep.mubr.f32.mxu0 0.0
      %1477 = vmatmul.mubr.f32.gmra.mrb[0].mxu0 %v1152
      %v1478 = vpop.f32.mrb[0].mxu0
      %v1479 = vadd.f32 %v966, %v1478
      %v1480 = vpop.f32.mrb[0].mxu0
      %1481 = vmatprep.mubr.f32.mxu0 0.0
      %1482 = vmatmul.mubr.f32.gmra.mrb[0].mxu0 %v1154
      %v1483 = vpop.f32.mrb[0].mxu0
      %v1484 = vadd.f32 %v971, %v1483
      %v1485 = vpop.f32.mrb[0].mxu0
      %1486 = vmatprep.mubr.f32.mxu0 0.0
      %1487 = vmatmul.mubr.f32.gmra.mrb[0].mxu0 %v1156
      %v1488 = vpop.f32.mrb[0].mxu0
      %v1489 = vadd.f32 %v976, %v1488
      %v1490 = vpop.f32.mrb[0].mxu0
      %1491 = vmatprep.mubr.f32.mxu0 0.0
      %1492 = vmatmul.mubr.f32.gmra.mrb[0].mxu0 %v1158
      %v1493 = vpop.f32.mrb[0].mxu0
      %v1494 = vadd.f32 %v981, %v1493
      %v1495 = vpop.f32.mrb[0].mxu0
      %1496 = vmatprep.mubr.f32.mxu0 0.0
      %1497 = vmatmul.mubr.f32.gmra.mrb[0].mxu0 %v1160
      %v1498 = vpop.f32.mrb[0].mxu0
      %v1499 = vadd.f32 %v986, %v1498
      %v1500 = vpop.f32.mrb[0].mxu0
      %1501 = vmatprep.mubr.f32.mxu0 0.0
      %1502 = vmatmul.mubr.f32.gmra.mrb[0].mxu0 %v1162
      %v1503 = vpop.f32.mrb[0].mxu0
      %v1504 = vadd.f32 %v991, %v1503
      %v1505 = vpop.f32.mrb[0].mxu0
      %1506 = vmatprep.mubr.f32.mxu0 0.0
      %1507 = vmatmul.mubr.f32.gmra.mrb[0].mxu0 %v1164
      %v1508 = vpop.f32.mrb[0].mxu0
      %v1509 = vadd.f32 %v996, %v1508
      %v1510 = vpop.f32.mrb[0].mxu0
      %1511 = vmatprep.mubr.f32.mxu0 0.0
      %1512 = vmatmul.mubr.f32.gmra.mrb[0].mxu0 %v1166
      %v1513 = vpop.f32.mrb[0].mxu0
      %v1514 = vadd.f32 %v1001, %v1513
      %v1515 = vpop.f32.mrb[0].mxu0
      %1516 = vmatprep.mubr.f32.mxu0 0.0
      %1517 = vmatmul.mubr.f32.gmra.mrb[0].mxu0 %v1168
      %v1518 = vpop.f32.mrb[0].mxu0
      %v1519 = vadd.f32 %v1006, %v1518
      %v1520 = vpop.f32.mrb[0].mxu0
      %1521 = vmatprep.mubr.f32.mxu0 0.0
      %1522 = vmatmul.mubr.f32.gmra.mrb[0].mxu0 %v1170
      %v1523 = vpop.f32.mrb[0].mxu0
      %v1524 = vadd.f32 %v1011, %v1523
      %v1525 = vpop.f32.mrb[0].mxu0
      %1526 = vmatprep.mubr.f32.mxu0 0.0
      %1527 = vmatmul.mubr.f32.gmra.mrb[0].mxu0 %v1172
      %v1528 = vpop.f32.mrb[0].mxu0
      %v1529 = vadd.f32 %v1016, %v1528
      %v1530 = vpop.f32.mrb[0].mxu0
      %1531 = vmatprep.mubr.f32.mxu0 0.0
      %1532 = vmatmul.mubr.f32.gmra.mrb[0].mxu0 %v1174
      %v1533 = vpop.f32.mrb[0].mxu0
      %v1534 = vadd.f32 %v1021, %v1533
      %v1535 = vpop.f32.mrb[0].mxu0
      %1536 = vmatprep.mubr.f32.mxu0 0.0
      %1537 = vmatmul.mubr.f32.gmra.mrb[0].mxu0 %v1176
      %v1538 = vpop.f32.mrb[0].mxu0
      %v1539 = vadd.f32 %v1026, %v1538
      %v1540 = vpop.f32.mrb[0].mxu0
      %1541 = vmatprep.mubr.f32.mxu0 0.0
      %1542 = vmatmul.mubr.f32.gmra.mrb[0].mxu0 %v1178
      %v1543 = vpop.f32.mrb[0].mxu0
      %v1544 = vadd.f32 %v1031, %v1543
      %v1545 = vpop.f32.mrb[0].mxu0
      %1546 = vmatprep.mubr.f32.mxu0 0.0
      %1547 = vmatmul.mubr.f32.gmra.mrb[0].mxu0 %v1180
      %v1548 = vpop.f32.mrb[0].mxu0
      %v1549 = vadd.f32 %v1036, %v1548
      %v1550 = vpop.f32.mrb[0].mxu0
      %1551 = vmatprep.mubr.f32.mxu0 0.0
      %1552 = vmatmul.mubr.f32.gmra.mrb[0].mxu0 %v1182
      %v1553 = vpop.f32.mrb[0].mxu0
      %v1554 = vadd.f32 %v1041, %v1553
      %v1555 = vpop.f32.mrb[0].mxu0
      %1556 = vmatprep.mubr.f32.mxu0 0.0
      %1557 = vmatmul.mubr.f32.gmra.mrb[0].mxu0 %v1184
      %v1558 = vpop.f32.mrb[0].mxu0
      %v1559 = vadd.f32 %v1046, %v1558
      %v1560 = vpop.f32.mrb[0].mxu0
      %1561 = vmatprep.mubr.f32.mxu0 0.0
      %1562 = vmatmul.mubr.f32.gmra.mrb[0].mxu0 %v1186
      %v1563 = vpop.f32.mrb[0].mxu0
      %v1564 = vadd.f32 %v1051, %v1563
      %v1565 = vpop.f32.mrb[0].mxu0
      %1566 = vmatprep.mubr.f32.mxu0 0.0
      %1567 = vmatmul.mubr.f32.gmra.mrb[0].mxu0 %v1188
      %v1568 = vpop.f32.mrb[0].mxu0
      %v1569 = vadd.f32 %v1056, %v1568
      %v1570 = vpop.f32.mrb[0].mxu0
      %1571 = vmatprep.mubr.f32.mxu0 0.0
      %1572 = vmatmul.mubr.f32.gmra.mrb[0].mxu0 %v1190
      %v1573 = vpop.f32.mrb[0].mxu0
      %v1574 = vadd.f32 %v1061, %v1573
      %v1575 = vpop.f32.mrb[0].mxu0
      %1576 = vdwg.mxu0
      %s1577 = scalar_lea.vmem %s1, 128
      %v1578 = vld [vmem:[%s1577] sm:$0xff]
      %v1579 = vld [vmem:[%s1577 + $0x8] sm:$0xff]
      %v1580 = vld [vmem:[%s1577 + $0x10] sm:$0xff]
      %v1581 = vld [vmem:[%s1577 + $0x18] sm:$0xff]
      %v1582 = vld [vmem:[%s1577 + $0x20] sm:$0xff]
      %v1583 = vld [vmem:[%s1577 + $0x28] sm:$0xff]
      %v1584 = vld [vmem:[%s1577 + $0x30] sm:$0xff]
      %v1585 = vld [vmem:[%s1577 + $0x38] sm:$0xff]
      %vm1586 = vcmask 1045504
      %v1587 = vrot.slane %v277, 2
      %v1588 = vrot.slane %v278, 2
      %v1589 = vsel %vm1586, %v1587, %v1588
      %v1590 = vrot.slane %v279, 2
      %v1591 = vsel %vm1586, %v1588, %v1590
      %v1592 = vrot.slane %v280, 2
      %v1593 = vsel %vm1586, %v1590, %v1592
      %v1594 = vrot.slane %v281, 2
      %v1595 = vsel %vm1586, %v1592, %v1594
      %v1596 = vrot.slane %v282, 2
      %v1597 = vsel %vm1586, %v1594, %v1596
      %v1598 = vrot.slane %v283, 2
      %v1599 = vsel %vm1586, %v1596, %v1598
      %v1600 = vrot.slane %v284, 2
      %v1601 = vsel %vm1586, %v1598, %v1600
      %v1602 = vrot.slane %v285, 2
      %v1603 = vsel %vm1586, %v1600, %v1602
      %v1604 = vrot.slane %v286, 2
      %v1605 = vsel %vm1586, %v1602, %v1604
      %v1606 = vrot.slane %v287, 2
      %v1607 = vsel %vm1586, %v1604, %v1606
      %v1608 = vrot.slane %v288, 2
      %v1609 = vsel %vm1586, %v1606, %v1608
      %v1610 = vrot.slane %v289, 2
      %v1611 = vsel %vm1586, %v1608, %v1610
      %v1612 = vrot.slane %v290, 2
      %v1613 = vsel %vm1586, %v1610, %v1612
      %v1614 = vrot.slane %v291, 2
      %v1615 = vsel %vm1586, %v1612, %v1614
      %v1616 = vrot.slane %v292, 2
      %v1617 = vsel %vm1586, %v1614, %v1616
      %v1618 = vrot.slane %v293, 2
      %v1619 = vsel %vm1586, %v1616, %v1618
      %v1620 = vrot.slane %v294, 2
      %v1621 = vsel %vm1586, %v1618, %v1620
      %v1622 = vrot.slane %v295, 2
      %v1623 = vsel %vm1586, %v1620, %v1622
      %v1624 = vrot.slane %v296, 2
      %v1625 = vsel %vm1586, %v1622, %v1624
      %v1626 = vrot.slane %v297, 2
      %v1627 = vsel %vm1586, %v1624, %v1626
      %v1628 = vrot.slane %v298, 2
      %v1629 = vsel %vm1586, %v1626, %v1628
      %v1630 = vrot.slane %v299, 2
      %v1631 = vsel %vm1586, %v1628, %v1630
      %v1632 = vrot.slane %v300, 2
      %v1633 = vsel %vm1586, %v1630, %v1632
      %v1634 = vrot.slane %v301, 2
      %v1635 = vsel %vm1586, %v1632, %v1634
      %v1636 = vrot.slane %v302, 2
      %v1637 = vsel %vm1586, %v1634, %v1636
      %v1638 = vrot.slane %v303, 2
      %v1639 = vsel %vm1586, %v1636, %v1638
      %v1640 = vrot.slane %v304, 2
      %v1641 = vsel %vm1586, %v1638, %v1640
      %v1642 = vrot.slane %v305, 2
      %v1643 = vsel %vm1586, %v1640, %v1642
      %v1644 = vrot.slane %v306, 2
      %v1645 = vsel %vm1586, %v1642, %v1644
      %v1646 = vrot.slane %v307, 2
      %v1647 = vsel %vm1586, %v1644, %v1646
      %v1648 = vrot.slane %v308, 2
      %v1649 = vsel %vm1586, %v1646, %v1648
      %v1650 = vrot.slane %v309, 2
      %v1651 = vsel %vm1586, %v1648, %v1650
      %v1652 = vrot.slane %v310, 2
      %v1653 = vsel %vm1586, %v1650, %v1652
      %v1654 = vrot.slane %v311, 2
      %v1655 = vsel %vm1586, %v1652, %v1654
      %v1656 = vrot.slane %v312, 2
      %v1657 = vsel %vm1586, %v1654, %v1656
      %v1658 = vrot.slane %v313, 2
      %v1659 = vsel %vm1586, %v1656, %v1658
      %v1660 = vrot.slane %v314, 2
      %v1661 = vsel %vm1586, %v1658, %v1660
      %v1662 = vrot.slane %v315, 2
      %v1663 = vsel %vm1586, %v1660, %v1662
      %v1664 = vrot.slane %v316, 2
      %v1665 = vsel %vm1586, %v1662, %v1664
      %v1666 = vrot.slane %v317, 2
      %v1667 = vsel %vm1586, %v1664, %v1666
      %v1668 = vrot.slane %v318, 2
      %v1669 = vsel %vm1586, %v1666, %v1668
      %v1670 = vrot.slane %v319, 2
      %v1671 = vsel %vm1586, %v1668, %v1670
      %v1672 = vrot.slane %v320, 2
      %v1673 = vsel %vm1586, %v1670, %v1672
      %v1674 = vrot.slane %v321, 2
      %v1675 = vsel %vm1586, %v1672, %v1674
      %v1676 = vrot.slane %v322, 2
      %v1677 = vsel %vm1586, %v1674, %v1676
      %v1678 = vrot.slane %v323, 2
      %v1679 = vsel %vm1586, %v1676, %v1678
      %v1680 = vrot.slane %v324, 2
      %v1681 = vsel %vm1586, %v1678, %v1680
      %v1682 = vrot.slane %v325, 2
      %v1683 = vsel %vm1586, %v1680, %v1682
      %v1684 = vrot.slane %v326, 2
      %v1685 = vsel %vm1586, %v1682, %v1684
      %v1686 = vrot.slane %v327, 2
      %v1687 = vsel %vm1586, %v1684, %v1686
      %v1688 = vrot.slane %v328, 2
      %v1689 = vsel %vm1586, %v1686, %v1688
      %v1690 = vrot.slane %v329, 2
      %v1691 = vsel %vm1586, %v1688, %v1690
      %v1692 = vrot.slane %v330, 2
      %v1693 = vsel %vm1586, %v1690, %v1692
      %v1694 = vrot.slane %v331, 2
      %v1695 = vsel %vm1586, %v1692, %v1694
      %v1696 = vrot.slane %v332, 2
      %v1697 = vsel %vm1586, %v1694, %v1696
      %v1698 = vrot.slane %v333, 2
      %v1699 = vsel %vm1586, %v1696, %v1698
      %v1700 = vrot.slane %v334, 2
      %v1701 = vsel %vm1586, %v1698, %v1700
      %v1702 = vrot.slane %v335, 2
      %v1703 = vsel %vm1586, %v1700, %v1702
      %v1704 = vrot.slane %v336, 2
      %v1705 = vsel %vm1586, %v1702, %v1704
      %v1706 = vrot.slane %v337, 2
      %v1707 = vsel %vm1586, %v1704, %v1706
      %v1708 = vrot.slane %v338, 2
      %v1709 = vsel %vm1586, %v1706, %v1708
      %v1710 = vrot.slane %v339, 2
      %v1711 = vsel %vm1586, %v1708, %v1710
      %v1712 = vrot.slane %v340, 2
      %v1713 = vsel %vm1586, %v1710, %v1712
      %v1714 = vsel %vm550, %v1589, 0
      %v1716 = vsel %vm550, %v1591, 0
      %v1718 = vsel %vm550, %v1593, 0
      %v1720 = vsel %vm550, %v1595, 0
      %v1722 = vsel %vm550, %v1597, 0
      %v1724 = vsel %vm550, %v1599, 0
      %v1726 = vsel %vm550, %v1601, 0
      %v1728 = vsel %vm550, %v1603, 0
      %v1730 = vsel %vm550, %v1605, 0
      %v1732 = vsel %vm550, %v1607, 0
      %v1734 = vsel %vm550, %v1609, 0
      %v1736 = vsel %vm550, %v1611, 0
      %v1738 = vsel %vm550, %v1613, 0
      %v1740 = vsel %vm550, %v1615, 0
      %v1742 = vsel %vm550, %v1617, 0
      %v1744 = vsel %vm550, %v1619, 0
      %v1746 = vsel %vm550, %v1621, 0
      %v1748 = vsel %vm550, %v1623, 0
      %v1750 = vsel %vm550, %v1625, 0
      %v1752 = vsel %vm550, %v1627, 0
      %v1754 = vsel %vm550, %v1629, 0
      %v1756 = vsel %vm550, %v1631, 0
      %v1758 = vsel %vm550, %v1633, 0
      %v1760 = vsel %vm550, %v1635, 0
      %v1762 = vsel %vm550, %v1637, 0
      %v1764 = vsel %vm550, %v1639, 0
      %v1766 = vsel %vm550, %v1641, 0
      %v1768 = vsel %vm550, %v1643, 0
      %v1770 = vsel %vm550, %v1645, 0
      %v1772 = vsel %vm550, %v1647, 0
      %v1774 = vsel %vm550, %v1649, 0
      %v1776 = vsel %vm550, %v1651, 0
      %v1778 = vsel %vm550, %v1653, 0
      %v1780 = vsel %vm550, %v1655, 0
      %v1782 = vsel %vm550, %v1657, 0
      %v1784 = vsel %vm550, %v1659, 0
      %v1786 = vsel %vm550, %v1661, 0
      %v1788 = vsel %vm550, %v1663, 0
      %v1790 = vsel %vm550, %v1665, 0
      %v1792 = vsel %vm550, %v1667, 0
      %v1794 = vsel %vm550, %v1669, 0
      %v1796 = vsel %vm550, %v1671, 0
      %v1798 = vsel %vm550, %v1673, 0
      %v1800 = vsel %vm550, %v1675, 0
      %v1802 = vsel %vm550, %v1677, 0
      %v1804 = vsel %vm550, %v1679, 0
      %v1806 = vsel %vm550, %v1681, 0
      %v1808 = vsel %vm550, %v1683, 0
      %v1810 = vsel %vm550, %v1685, 0
      %v1812 = vsel %vm550, %v1687, 0
      %v1814 = vsel %vm550, %v1689, 0
      %v1816 = vsel %vm550, %v1691, 0
      %v1818 = vsel %vm550, %v1693, 0
      %v1820 = vsel %vm550, %v1695, 0
      %v1822 = vsel %vm550, %v1697, 0
      %v1824 = vsel %vm550, %v1699, 0
      %v1826 = vsel %vm550, %v1701, 0
      %v1828 = vsel %vm550, %v1703, 0
      %v1830 = vsel %vm550, %v1705, 0
      %v1832 = vsel %vm550, %v1707, 0
      %v1834 = vsel %vm550, %v1709, 0
      %v1836 = vsel %vm550, %v1711, 0
      %v1838 = vsel %vm550, %v1713, 0
      %v1840 = vsel %vm550, %v1712, 0
      %1842 = vmatprep.subr.mxu0 0.0
      %1843 = vmatpush1.msra.mxu0 %v1578
      %1844 = vmatprep.subr.mxu0 0.0
      %1845 = vmatpush1.msra.mxu0 %v1579
      %1846 = vmatprep.subr.mxu0 0.0
      %1847 = vmatpush1.msra.mxu0 %v1580
      %1848 = vmatprep.subr.mxu0 0.0
      %1849 = vmatpush1.msra.mxu0 %v1581
      %1850 = vmatprep.subr.mxu0 0.0
      %1851 = vmatpush1.msra.mxu0 %v1582
      %1852 = vmatprep.subr.mxu0 0.0
      %1853 = vmatpush1.msra.mxu0 %v1583
      %1854 = vmatprep.subr.mxu0 0.0
      %1855 = vmatpush1.msra.mxu0 %v1584
      %1856 = vmatprep.subr.mxu0 0.0
      %1857 = vmatpush1.msra.mxu0 %v1585
      %1858 = vmatprep.subr.mxu0 0.0
      %1859 = vmatpush1.msra.mxu0 0.0
      %1860 = vmatprep.subr.mxu0 0.0
      %1861 = vmatpush1.msra.mxu0 0.0
      %1862 = vmatprep.subr.mxu0 0.0
      %1863 = vmatpush1.msra.mxu0 0.0
      %1864 = vmatprep.subr.mxu0 0.0
      %1865 = vmatpush1.msra.mxu0 0.0
      %1866 = vmatprep.subr.mxu0 0.0
      %1867 = vmatpush1.msra.mxu0 0.0
      %1868 = vmatprep.subr.mxu0 0.0
      %1869 = vmatpush1.msra.mxu0 0.0
      %1870 = vmatprep.subr.mxu0 0.0
      %1871 = vmatpush1.msra.mxu0 0.0
      %1872 = vmatprep.subr.mxu0 0.0
      %1873 = vmatpush1.msra.mxu0 0.0
      %1874 = vmatprep.subr.mxu0 0.0
      %1875 = vmatpush1.msra.mxu0 0.0
      %1876 = vmatprep.subr.mxu0 0.0
      %1877 = vmatpush1.msra.mxu0 0.0
      %1878 = vmatprep.subr.mxu0 0.0
      %1879 = vmatpush1.msra.mxu0 0.0
      %1880 = vmatprep.subr.mxu0 0.0
      %1881 = vmatpush1.msra.mxu0 0.0
      %1882 = vmatprep.subr.mxu0 0.0
      %1883 = vmatpush1.msra.mxu0 0.0
      %1884 = vmatprep.subr.mxu0 0.0
      %1885 = vmatpush1.msra.mxu0 0.0
      %1886 = vmatprep.subr.mxu0 0.0
      %1887 = vmatpush1.msra.mxu0 0.0
      %1888 = vmatprep.subr.mxu0 0.0
      %1889 = vmatpush1.msra.mxu0 0.0
      %1890 = vmatprep.subr.mxu0 0.0
      %1891 = vmatpush1.msra.mxu0 0.0
      %1892 = vmatprep.subr.mxu0 0.0
      %1893 = vmatpush1.msra.mxu0 0.0
      %1894 = vmatprep.subr.mxu0 0.0
      %1895 = vmatpush1.msra.mxu0 0.0
      %1896 = vmatprep.subr.mxu0 0.0
      %1897 = vmatpush1.msra.mxu0 0.0
      %1898 = vmatprep.subr.mxu0 0.0
      %1899 = vmatpush1.msra.mxu0 0.0
      %1900 = vmatprep.subr.mxu0 0.0
      %1901 = vmatpush1.msra.mxu0 0.0
      %1902 = vmatprep.subr.mxu0 0.0
      %1903 = vmatpush1.msra.mxu0 0.0
      %1904 = vmatprep.subr.mxu0 0.0
      %1905 = vmatpush1.msra.mxu0 0.0
      %1906 = vmatprep.mubr.f32.mxu0 0.0
      %1907 = vmatmul.mubr.f32.gmra.mrb[0].mxu0 %v1714
      %v1908 = vpop.f32.mrb[0].mxu0
      %v1909 = vadd.f32 0.0, %v1908
      %v1910 = vpop.f32.mrb[0].mxu0
      %1911 = vmatprep.mubr.f32.mxu0 0.0
      %1912 = vmatmul.mubr.f32.gmra.mrb[0].mxu0 %v1716
      %v1913 = vpop.f32.mrb[0].mxu0
      %v1914 = vadd.f32 0.0, %v1913
      %v1915 = vpop.f32.mrb[0].mxu0
      %1916 = vmatprep.mubr.f32.mxu0 0.0
      %1917 = vmatmul.mubr.f32.gmra.mrb[0].mxu0 %v1718
      %v1918 = vpop.f32.mrb[0].mxu0
      %v1919 = vadd.f32 0.0, %v1918
      %v1920 = vpop.f32.mrb[0].mxu0
      %1921 = vmatprep.mubr.f32.mxu0 0.0
      %1922 = vmatmul.mubr.f32.gmra.mrb[0].mxu0 %v1720
      %v1923 = vpop.f32.mrb[0].mxu0
      %v1924 = vadd.f32 0.0, %v1923
      %v1925 = vpop.f32.mrb[0].mxu0
      %1926 = vmatprep.mubr.f32.mxu0 0.0
      %1927 = vmatmul.mubr.f32.gmra.mrb[0].mxu0 %v1722
      %v1928 = vpop.f32.mrb[0].mxu0
      %v1929 = vadd.f32 0.0, %v1928
      %v1930 = vpop.f32.mrb[0].mxu0
      %1931 = vmatprep.mubr.f32.mxu0 0.0
      %1932 = vmatmul.mubr.f32.gmra.mrb[0].mxu0 %v1724
      %v1933 = vpop.f32.mrb[0].mxu0
      %v1934 = vadd.f32 0.0, %v1933
      %v1935 = vpop.f32.mrb[0].mxu0
      %1936 = vmatprep.mubr.f32.mxu0 0.0
      %1937 = vmatmul.mubr.f32.gmra.mrb[0].mxu0 %v1726
      %v1938 = vpop.f32.mrb[0].mxu0
      %v1939 = vadd.f32 0.0, %v1938
      %v1940 = vpop.f32.mrb[0].mxu0
      %1941 = vmatprep.mubr.f32.mxu0 0.0
      %1942 = vmatmul.mubr.f32.gmra.mrb[0].mxu0 %v1728
      %v1943 = vpop.f32.mrb[0].mxu0
      %v1944 = vadd.f32 0.0, %v1943
      %v1945 = vpop.f32.mrb[0].mxu0
      %1946 = vmatprep.mubr.f32.mxu0 0.0
      %1947 = vmatmul.mubr.f32.gmra.mrb[0].mxu0 %v1730
      %v1948 = vpop.f32.mrb[0].mxu0
      %v1949 = vadd.f32 0.0, %v1948
      %v1950 = vpop.f32.mrb[0].mxu0
      %1951 = vmatprep.mubr.f32.mxu0 0.0
      %1952 = vmatmul.mubr.f32.gmra.mrb[0].mxu0 %v1732
      %v1953 = vpop.f32.mrb[0].mxu0
      %v1954 = vadd.f32 0.0, %v1953
      %v1955 = vpop.f32.mrb[0].mxu0
      %1956 = vmatprep.mubr.f32.mxu0 0.0
      %1957 = vmatmul.mubr.f32.gmra.mrb[0].mxu0 %v1734
      %v1958 = vpop.f32.mrb[0].mxu0
      %v1959 = vadd.f32 0.0, %v1958
      %v1960 = vpop.f32.mrb[0].mxu0
      %1961 = vmatprep.mubr.f32.mxu0 0.0
      %1962 = vmatmul.mubr.f32.gmra.mrb[0].mxu0 %v1736
      %v1963 = vpop.f32.mrb[0].mxu0
      %v1964 = vadd.f32 0.0, %v1963
      %v1965 = vpop.f32.mrb[0].mxu0
      %1966 = vmatprep.mubr.f32.mxu0 0.0
      %1967 = vmatmul.mubr.f32.gmra.mrb[0].mxu0 %v1738
      %v1968 = vpop.f32.mrb[0].mxu0
      %v1969 = vadd.f32 0.0, %v1968
      %v1970 = vpop.f32.mrb[0].mxu0
      %1971 = vmatprep.mubr.f32.mxu0 0.0
      %1972 = vmatmul.mubr.f32.gmra.mrb[0].mxu0 %v1740
      %v1973 = vpop.f32.mrb[0].mxu0
      %v1974 = vadd.f32 0.0, %v1973
      %v1975 = vpop.f32.mrb[0].mxu0
      %1976 = vmatprep.mubr.f32.mxu0 0.0
      %1977 = vmatmul.mubr.f32.gmra.mrb[0].mxu0 %v1742
      %v1978 = vpop.f32.mrb[0].mxu0
      %v1979 = vadd.f32 0.0, %v1978
      %v1980 = vpop.f32.mrb[0].mxu0
      %1981 = vmatprep.mubr.f32.mxu0 0.0
      %1982 = vmatmul.mubr.f32.gmra.mrb[0].mxu0 %v1744
      %v1983 = vpop.f32.mrb[0].mxu0
      %v1984 = vadd.f32 0.0, %v1983
      %v1985 = vpop.f32.mrb[0].mxu0
      %1986 = vmatprep.mubr.f32.mxu0 0.0
      %1987 = vmatmul.mubr.f32.gmra.mrb[0].mxu0 %v1746
      %v1988 = vpop.f32.mrb[0].mxu0
      %v1989 = vadd.f32 0.0, %v1988
      %v1990 = vpop.f32.mrb[0].mxu0
      %1991 = vmatprep.mubr.f32.mxu0 0.0
      %1992 = vmatmul.mubr.f32.gmra.mrb[0].mxu0 %v1748
      %v1993 = vpop.f32.mrb[0].mxu0
      %v1994 = vadd.f32 0.0, %v1993
      %v1995 = vpop.f32.mrb[0].mxu0
      %1996 = vmatprep.mubr.f32.mxu0 0.0
      %1997 = vmatmul.mubr.f32.gmra.mrb[0].mxu0 %v1750
      %v1998 = vpop.f32.mrb[0].mxu0
      %v1999 = vadd.f32 0.0, %v1998
      %v2000 = vpop.f32.mrb[0].mxu0
      %2001 = vmatprep.mubr.f32.mxu0 0.0
      %2002 = vmatmul.mubr.f32.gmra.mrb[0].mxu0 %v1752
      %v2003 = vpop.f32.mrb[0].mxu0
      %v2004 = vadd.f32 0.0, %v2003
      %v2005 = vpop.f32.mrb[0].mxu0
      %2006 = vmatprep.mubr.f32.mxu0 0.0
      %2007 = vmatmul.mubr.f32.gmra.mrb[0].mxu0 %v1754
      %v2008 = vpop.f32.mrb[0].mxu0
      %v2009 = vadd.f32 0.0, %v2008
      %v2010 = vpop.f32.mrb[0].mxu0
      %2011 = vmatprep.mubr.f32.mxu0 0.0
      %2012 = vmatmul.mubr.f32.gmra.mrb[0].mxu0 %v1756
      %v2013 = vpop.f32.mrb[0].mxu0
      %v2014 = vadd.f32 0.0, %v2013
      %v2015 = vpop.f32.mrb[0].mxu0
      %2016 = vmatprep.mubr.f32.mxu0 0.0
      %2017 = vmatmul.mubr.f32.gmra.mrb[0].mxu0 %v1758
      %v2018 = vpop.f32.mrb[0].mxu0
      %v2019 = vadd.f32 0.0, %v2018
      %v2020 = vpop.f32.mrb[0].mxu0
      %2021 = vmatprep.mubr.f32.mxu0 0.0
      %2022 = vmatmul.mubr.f32.gmra.mrb[0].mxu0 %v1760
      %v2023 = vpop.f32.mrb[0].mxu0
      %v2024 = vadd.f32 0.0, %v2023
      %v2025 = vpop.f32.mrb[0].mxu0
      %2026 = vmatprep.mubr.f32.mxu0 0.0
      %2027 = vmatmul.mubr.f32.gmra.mrb[0].mxu0 %v1762
      %v2028 = vpop.f32.mrb[0].mxu0
      %v2029 = vadd.f32 0.0, %v2028
      %v2030 = vpop.f32.mrb[0].mxu0
      %2031 = vmatprep.mubr.f32.mxu0 0.0
      %2032 = vmatmul.mubr.f32.gmra.mrb[0].mxu0 %v1764
      %v2033 = vpop.f32.mrb[0].mxu0
      %v2034 = vadd.f32 0.0, %v2033
      %v2035 = vpop.f32.mrb[0].mxu0
      %2036 = vmatprep.mubr.f32.mxu0 0.0
      %2037 = vmatmul.mubr.f32.gmra.mrb[0].mxu0 %v1766
      %v2038 = vpop.f32.mrb[0].mxu0
      %v2039 = vadd.f32 0.0, %v2038
      %v2040 = vpop.f32.mrb[0].mxu0
      %2041 = vmatprep.mubr.f32.mxu0 0.0
      %2042 = vmatmul.mubr.f32.gmra.mrb[0].mxu0 %v1768
      %v2043 = vpop.f32.mrb[0].mxu0
      %v2044 = vadd.f32 0.0, %v2043
      %v2045 = vpop.f32.mrb[0].mxu0
      %2046 = vmatprep.mubr.f32.mxu0 0.0
      %2047 = vmatmul.mubr.f32.gmra.mrb[0].mxu0 %v1770
      %v2048 = vpop.f32.mrb[0].mxu0
      %v2049 = vadd.f32 0.0, %v2048
      %v2050 = vpop.f32.mrb[0].mxu0
      %2051 = vmatprep.mubr.f32.mxu0 0.0
      %2052 = vmatmul.mubr.f32.gmra.mrb[0].mxu0 %v1772
      %v2053 = vpop.f32.mrb[0].mxu0
      %v2054 = vadd.f32 0.0, %v2053
      %v2055 = vpop.f32.mrb[0].mxu0
      %2056 = vmatprep.mubr.f32.mxu0 0.0
      %2057 = vmatmul.mubr.f32.gmra.mrb[0].mxu0 %v1774
      %v2058 = vpop.f32.mrb[0].mxu0
      %v2059 = vadd.f32 0.0, %v2058
      %v2060 = vpop.f32.mrb[0].mxu0
      %2061 = vmatprep.mubr.f32.mxu0 0.0
      %2062 = vmatmul.mubr.f32.gmra.mrb[0].mxu0 %v1776
      %v2063 = vpop.f32.mrb[0].mxu0
      %v2064 = vadd.f32 0.0, %v2063
      %v2065 = vpop.f32.mrb[0].mxu0
      %2066 = vmatprep.mubr.f32.mxu0 0.0
      %2067 = vmatmul.mubr.f32.gmra.mrb[0].mxu0 %v1778
      %v2068 = vpop.f32.mrb[0].mxu0
      %v2069 = vadd.f32 0.0, %v2068
      %v2070 = vpop.f32.mrb[0].mxu0
      %2071 = vmatprep.mubr.f32.mxu0 0.0
      %2072 = vmatmul.mubr.f32.gmra.mrb[0].mxu0 %v1780
      %v2073 = vpop.f32.mrb[0].mxu0
      %v2074 = vadd.f32 0.0, %v2073
      %v2075 = vpop.f32.mrb[0].mxu0
      %2076 = vmatprep.mubr.f32.mxu0 0.0
      %2077 = vmatmul.mubr.f32.gmra.mrb[0].mxu0 %v1782
      %v2078 = vpop.f32.mrb[0].mxu0
      %v2079 = vadd.f32 0.0, %v2078
      %v2080 = vpop.f32.mrb[0].mxu0
      %2081 = vmatprep.mubr.f32.mxu0 0.0
      %2082 = vmatmul.mubr.f32.gmra.mrb[0].mxu0 %v1784
      %v2083 = vpop.f32.mrb[0].mxu0
      %v2084 = vadd.f32 0.0, %v2083
      %v2085 = vpop.f32.mrb[0].mxu0
      %2086 = vmatprep.mubr.f32.mxu0 0.0
      %2087 = vmatmul.mubr.f32.gmra.mrb[0].mxu0 %v1786
      %v2088 = vpop.f32.mrb[0].mxu0
      %v2089 = vadd.f32 0.0, %v2088
      %v2090 = vpop.f32.mrb[0].mxu0
      %2091 = vmatprep.mubr.f32.mxu0 0.0
      %2092 = vmatmul.mubr.f32.gmra.mrb[0].mxu0 %v1788
      %v2093 = vpop.f32.mrb[0].mxu0
      %v2094 = vadd.f32 0.0, %v2093
      %v2095 = vpop.f32.mrb[0].mxu0
      %2096 = vmatprep.mubr.f32.mxu0 0.0
      %2097 = vmatmul.mubr.f32.gmra.mrb[0].mxu0 %v1790
      %v2098 = vpop.f32.mrb[0].mxu0
      %v2099 = vadd.f32 0.0, %v2098
      %v2100 = vpop.f32.mrb[0].mxu0
      %2101 = vmatprep.mubr.f32.mxu0 0.0
      %2102 = vmatmul.mubr.f32.gmra.mrb[0].mxu0 %v1792
      %v2103 = vpop.f32.mrb[0].mxu0
      %v2104 = vadd.f32 0.0, %v2103
      %v2105 = vpop.f32.mrb[0].mxu0
      %2106 = vmatprep.mubr.f32.mxu0 0.0
      %2107 = vmatmul.mubr.f32.gmra.mrb[0].mxu0 %v1794
      %v2108 = vpop.f32.mrb[0].mxu0
      %v2109 = vadd.f32 0.0, %v2108
      %v2110 = vpop.f32.mrb[0].mxu0
      %2111 = vmatprep.mubr.f32.mxu0 0.0
      %2112 = vmatmul.mubr.f32.gmra.mrb[0].mxu0 %v1796
      %v2113 = vpop.f32.mrb[0].mxu0
      %v2114 = vadd.f32 0.0, %v2113
      %v2115 = vpop.f32.mrb[0].mxu0
      %2116 = vmatprep.mubr.f32.mxu0 0.0
      %2117 = vmatmul.mubr.f32.gmra.mrb[0].mxu0 %v1798
      %v2118 = vpop.f32.mrb[0].mxu0
      %v2119 = vadd.f32 0.0, %v2118
      %v2120 = vpop.f32.mrb[0].mxu0
      %2121 = vmatprep.mubr.f32.mxu0 0.0
      %2122 = vmatmul.mubr.f32.gmra.mrb[0].mxu0 %v1800
      %v2123 = vpop.f32.mrb[0].mxu0
      %v2124 = vadd.f32 0.0, %v2123
      %v2125 = vpop.f32.mrb[0].mxu0
      %2126 = vmatprep.mubr.f32.mxu0 0.0
      %2127 = vmatmul.mubr.f32.gmra.mrb[0].mxu0 %v1802
      %v2128 = vpop.f32.mrb[0].mxu0
      %v2129 = vadd.f32 0.0, %v2128
      %v2130 = vpop.f32.mrb[0].mxu0
      %2131 = vmatprep.mubr.f32.mxu0 0.0
      %2132 = vmatmul.mubr.f32.gmra.mrb[0].mxu0 %v1804
      %v2133 = vpop.f32.mrb[0].mxu0
      %v2134 = vadd.f32 0.0, %v2133
      %v2135 = vpop.f32.mrb[0].mxu0
      %2136 = vmatprep.mubr.f32.mxu0 0.0
      %2137 = vmatmul.mubr.f32.gmra.mrb[0].mxu0 %v1806
      %v2138 = vpop.f32.mrb[0].mxu0
      %v2139 = vadd.f32 0.0, %v2138
      %v2140 = vpop.f32.mrb[0].mxu0
      %2141 = vmatprep.mubr.f32.mxu0 0.0
      %2142 = vmatmul.mubr.f32.gmra.mrb[0].mxu0 %v1808
      %v2143 = vpop.f32.mrb[0].mxu0
      %v2144 = vadd.f32 0.0, %v2143
      %v2145 = vpop.f32.mrb[0].mxu0
      %2146 = vmatprep.mubr.f32.mxu0 0.0
      %2147 = vmatmul.mubr.f32.gmra.mrb[0].mxu0 %v1810
      %v2148 = vpop.f32.mrb[0].mxu0
      %v2149 = vadd.f32 0.0, %v2148
      %v2150 = vpop.f32.mrb[0].mxu0
      %2151 = vmatprep.mubr.f32.mxu0 0.0
      %2152 = vmatmul.mubr.f32.gmra.mrb[0].mxu0 %v1812
      %v2153 = vpop.f32.mrb[0].mxu0
      %v2154 = vadd.f32 0.0, %v2153
      %v2155 = vpop.f32.mrb[0].mxu0
      %2156 = vmatprep.mubr.f32.mxu0 0.0
      %2157 = vmatmul.mubr.f32.gmra.mrb[0].mxu0 %v1814
      %v2158 = vpop.f32.mrb[0].mxu0
      %v2159 = vadd.f32 0.0, %v2158
      %v2160 = vpop.f32.mrb[0].mxu0
      %2161 = vmatprep.mubr.f32.mxu0 0.0
      %2162 = vmatmul.mubr.f32.gmra.mrb[0].mxu0 %v1816
      %v2163 = vpop.f32.mrb[0].mxu0
      %v2164 = vadd.f32 0.0, %v2163
      %v2165 = vpop.f32.mrb[0].mxu0
      %2166 = vmatprep.mubr.f32.mxu0 0.0
      %2167 = vmatmul.mubr.f32.gmra.mrb[0].mxu0 %v1818
      %v2168 = vpop.f32.mrb[0].mxu0
      %v2169 = vadd.f32 0.0, %v2168
      %v2170 = vpop.f32.mrb[0].mxu0
      %2171 = vmatprep.mubr.f32.mxu0 0.0
      %2172 = vmatmul.mubr.f32.gmra.mrb[0].mxu0 %v1820
      %v2173 = vpop.f32.mrb[0].mxu0
      %v2174 = vadd.f32 0.0, %v2173
      %v2175 = vpop.f32.mrb[0].mxu0
      %2176 = vmatprep.mubr.f32.mxu0 0.0
      %2177 = vmatmul.mubr.f32.gmra.mrb[0].mxu0 %v1822
      %v2178 = vpop.f32.mrb[0].mxu0
      %v2179 = vadd.f32 0.0, %v2178
      %v2180 = vpop.f32.mrb[0].mxu0
      %2181 = vmatprep.mubr.f32.mxu0 0.0
      %2182 = vmatmul.mubr.f32.gmra.mrb[0].mxu0 %v1824
      %v2183 = vpop.f32.mrb[0].mxu0
      %v2184 = vadd.f32 0.0, %v2183
      %v2185 = vpop.f32.mrb[0].mxu0
      %2186 = vmatprep.mubr.f32.mxu0 0.0
      %2187 = vmatmul.mubr.f32.gmra.mrb[0].mxu0 %v1826
      %v2188 = vpop.f32.mrb[0].mxu0
      %v2189 = vadd.f32 0.0, %v2188
      %v2190 = vpop.f32.mrb[0].mxu0
      %2191 = vmatprep.mubr.f32.mxu0 0.0
      %2192 = vmatmul.mubr.f32.gmra.mrb[0].mxu0 %v1828
      %v2193 = vpop.f32.mrb[0].mxu0
      %v2194 = vadd.f32 0.0, %v2193
      %v2195 = vpop.f32.mrb[0].mxu0
      %2196 = vmatprep.mubr.f32.mxu0 0.0
      %2197 = vmatmul.mubr.f32.gmra.mrb[0].mxu0 %v1830
      %v2198 = vpop.f32.mrb[0].mxu0
      %v2199 = vadd.f32 0.0, %v2198
      %v2200 = vpop.f32.mrb[0].mxu0
      %2201 = vmatprep.mubr.f32.mxu0 0.0
      %2202 = vmatmul.mubr.f32.gmra.mrb[0].mxu0 %v1832
      %v2203 = vpop.f32.mrb[0].mxu0
      %v2204 = vadd.f32 0.0, %v2203
      %v2205 = vpop.f32.mrb[0].mxu0
      %2206 = vmatprep.mubr.f32.mxu0 0.0
      %2207 = vmatmul.mubr.f32.gmra.mrb[0].mxu0 %v1834
      %v2208 = vpop.f32.mrb[0].mxu0
      %v2209 = vadd.f32 0.0, %v2208
      %v2210 = vpop.f32.mrb[0].mxu0
      %2211 = vmatprep.mubr.f32.mxu0 0.0
      %2212 = vmatmul.mubr.f32.gmra.mrb[0].mxu0 %v1836
      %v2213 = vpop.f32.mrb[0].mxu0
      %v2214 = vadd.f32 0.0, %v2213
      %v2215 = vpop.f32.mrb[0].mxu0
      %2216 = vmatprep.mubr.f32.mxu0 0.0
      %2217 = vmatmul.mubr.f32.gmra.mrb[0].mxu0 %v1838
      %v2218 = vpop.f32.mrb[0].mxu0
      %v2219 = vadd.f32 0.0, %v2218
      %v2220 = vpop.f32.mrb[0].mxu0
      %2221 = vmatprep.mubr.f32.mxu0 0.0
      %2222 = vmatmul.mubr.f32.gmra.mrb[0].mxu0 %v1840
      %v2223 = vpop.f32.mrb[0].mxu0
      %v2224 = vadd.f32 0.0, %v2223
      %v2225 = vpop.f32.mrb[0].mxu0
      %2226 = vdwg.mxu0
      %v2227 = vadd.f32 %v1259, %v1909
      %v2228 = vadd.f32 %v1264, %v1914
      %v2229 = vadd.f32 %v1269, %v1919
      %v2230 = vadd.f32 %v1274, %v1924
      %v2231 = vadd.f32 %v1279, %v1929
      %v2232 = vadd.f32 %v1284, %v1934
      %v2233 = vadd.f32 %v1289, %v1939
      %v2234 = vadd.f32 %v1294, %v1944
      %v2235 = vadd.f32 %v1299, %v1949
      %v2236 = vadd.f32 %v1304, %v1954
      %v2237 = vadd.f32 %v1309, %v1959
      %v2238 = vadd.f32 %v1314, %v1964
      %v2239 = vadd.f32 %v1319, %v1969
      %v2240 = vadd.f32 %v1324, %v1974
      %v2241 = vadd.f32 %v1329, %v1979
      %v2242 = vadd.f32 %v1334, %v1984
      %v2243 = vadd.f32 %v1339, %v1989
      %v2244 = vadd.f32 %v1344, %v1994
      %v2245 = vadd.f32 %v1349, %v1999
      %v2246 = vadd.f32 %v1354, %v2004
      %v2247 = vadd.f32 %v1359, %v2009
      %v2248 = vadd.f32 %v1364, %v2014
      %v2249 = vadd.f32 %v1369, %v2019
      %v2250 = vadd.f32 %v1374, %v2024
      %v2251 = vadd.f32 %v1379, %v2029
      %v2252 = vadd.f32 %v1384, %v2034
      %v2253 = vadd.f32 %v1389, %v2039
      %v2254 = vadd.f32 %v1394, %v2044
      %v2255 = vadd.f32 %v1399, %v2049
      %v2256 = vadd.f32 %v1404, %v2054
      %v2257 = vadd.f32 %v1409, %v2059
      %v2258 = vadd.f32 %v1414, %v2064
      %v2259 = vadd.f32 %v1419, %v2069
      %v2260 = vadd.f32 %v1424, %v2074
      %v2261 = vadd.f32 %v1429, %v2079
      %v2262 = vadd.f32 %v1434, %v2084
      %v2263 = vadd.f32 %v1439, %v2089
      %v2264 = vadd.f32 %v1444, %v2094
      %v2265 = vadd.f32 %v1449, %v2099
      %v2266 = vadd.f32 %v1454, %v2104
      %v2267 = vadd.f32 %v1459, %v2109
      %v2268 = vadd.f32 %v1464, %v2114
      %v2269 = vadd.f32 %v1469, %v2119
      %v2270 = vadd.f32 %v1474, %v2124
      %v2271 = vadd.f32 %v1479, %v2129
      %v2272 = vadd.f32 %v1484, %v2134
      %v2273 = vadd.f32 %v1489, %v2139
      %v2274 = vadd.f32 %v1494, %v2144
      %v2275 = vadd.f32 %v1499, %v2149
      %v2276 = vadd.f32 %v1504, %v2154
      %v2277 = vadd.f32 %v1509, %v2159
      %v2278 = vadd.f32 %v1514, %v2164
      %v2279 = vadd.f32 %v1519, %v2169
      %v2280 = vadd.f32 %v1524, %v2174
      %v2281 = vadd.f32 %v1529, %v2179
      %v2282 = vadd.f32 %v1534, %v2184
      %v2283 = vadd.f32 %v1539, %v2189
      %v2284 = vadd.f32 %v1544, %v2194
      %v2285 = vadd.f32 %v1549, %v2199
      %v2286 = vadd.f32 %v1554, %v2204
      %v2287 = vadd.f32 %v1559, %v2209
      %v2288 = vadd.f32 %v1564, %v2214
      %v2289 = vadd.f32 %v1569, %v2219
      %v2290 = vadd.f32 %v1574, %v2224
      %v2291 = vld [vmem:[%s2] sm:$0x1]
      %v2293 = vlaneseq
      %v2294 = vshrl.u32 %v2293, 7
      %v2295 = vsub.s32 0, %v2294
      %v2296 = vrot.slane %v2291, %v2295
      %v2298 = vadd.f32 %v2227, %v2296
      %v2299 = vadd.f32 %v2228, %v2296
      %v2300 = vadd.f32 %v2229, %v2296
      %v2301 = vadd.f32 %v2230, %v2296
      %v2302 = vadd.f32 %v2231, %v2296
      %v2303 = vadd.f32 %v2232, %v2296
      %v2304 = vadd.f32 %v2233, %v2296
      %v2305 = vadd.f32 %v2234, %v2296
      %v2306 = vadd.f32 %v2235, %v2296
      %v2307 = vadd.f32 %v2236, %v2296
      %v2308 = vadd.f32 %v2237, %v2296
      %v2309 = vadd.f32 %v2238, %v2296
      %v2310 = vadd.f32 %v2239, %v2296
      %v2311 = vadd.f32 %v2240, %v2296
      %v2312 = vadd.f32 %v2241, %v2296
      %v2313 = vadd.f32 %v2242, %v2296
      %v2314 = vadd.f32 %v2243, %v2296
      %v2315 = vadd.f32 %v2244, %v2296
      %v2316 = vadd.f32 %v2245, %v2296
      %v2317 = vadd.f32 %v2246, %v2296
      %v2318 = vadd.f32 %v2247, %v2296
      %v2319 = vadd.f32 %v2248, %v2296
      %v2320 = vadd.f32 %v2249, %v2296
      %v2321 = vadd.f32 %v2250, %v2296
      %v2322 = vadd.f32 %v2251, %v2296
      %v2323 = vadd.f32 %v2252, %v2296
      %v2324 = vadd.f32 %v2253, %v2296
      %v2325 = vadd.f32 %v2254, %v2296
      %v2326 = vadd.f32 %v2255, %v2296
      %v2327 = vadd.f32 %v2256, %v2296
      %v2328 = vadd.f32 %v2257, %v2296
      %v2329 = vadd.f32 %v2258, %v2296
      %v2330 = vadd.f32 %v2259, %v2296
      %v2331 = vadd.f32 %v2260, %v2296
      %v2332 = vadd.f32 %v2261, %v2296
      %v2333 = vadd.f32 %v2262, %v2296
      %v2334 = vadd.f32 %v2263, %v2296
      %v2335 = vadd.f32 %v2264, %v2296
      %v2336 = vadd.f32 %v2265, %v2296
      %v2337 = vadd.f32 %v2266, %v2296
      %v2338 = vadd.f32 %v2267, %v2296
      %v2339 = vadd.f32 %v2268, %v2296
      %v2340 = vadd.f32 %v2269, %v2296
      %v2341 = vadd.f32 %v2270, %v2296
      %v2342 = vadd.f32 %v2271, %v2296
      %v2343 = vadd.f32 %v2272, %v2296
      %v2344 = vadd.f32 %v2273, %v2296
      %v2345 = vadd.f32 %v2274, %v2296
      %v2346 = vadd.f32 %v2275, %v2296
      %v2347 = vadd.f32 %v2276, %v2296
      %v2348 = vadd.f32 %v2277, %v2296
      %v2349 = vadd.f32 %v2278, %v2296
      %v2350 = vadd.f32 %v2279, %v2296
      %v2351 = vadd.f32 %v2280, %v2296
      %v2352 = vadd.f32 %v2281, %v2296
      %v2353 = vadd.f32 %v2282, %v2296
      %v2354 = vadd.f32 %v2283, %v2296
      %v2355 = vadd.f32 %v2284, %v2296
      %v2356 = vadd.f32 %v2285, %v2296
      %v2357 = vadd.f32 %v2286, %v2296
      %v2358 = vadd.f32 %v2287, %v2296
      %v2359 = vadd.f32 %v2288, %v2296
      %v2360 = vadd.f32 %v2289, %v2296
      %v2361 = vadd.f32 %v2290, %v2296
      %v2362 = vmax.f32 %v2298, 0.0
      %v2363 = vmax.f32 %v2299, 0.0
      %v2364 = vmax.f32 %v2300, 0.0
      %v2365 = vmax.f32 %v2301, 0.0
      %v2366 = vmax.f32 %v2302, 0.0
      %v2367 = vmax.f32 %v2303, 0.0
      %v2368 = vmax.f32 %v2304, 0.0
      %v2369 = vmax.f32 %v2305, 0.0
      %v2370 = vmax.f32 %v2306, 0.0
      %v2371 = vmax.f32 %v2307, 0.0
      %v2372 = vmax.f32 %v2308, 0.0
      %v2373 = vmax.f32 %v2309, 0.0
      %v2374 = vmax.f32 %v2310, 0.0
      %v2375 = vmax.f32 %v2311, 0.0
      %v2376 = vmax.f32 %v2312, 0.0
      %v2377 = vmax.f32 %v2313, 0.0
      %v2378 = vmax.f32 %v2314, 0.0
      %v2379 = vmax.f32 %v2315, 0.0
      %v2380 = vmax.f32 %v2316, 0.0
      %v2381 = vmax.f32 %v2317, 0.0
      %v2382 = vmax.f32 %v2318, 0.0
      %v2383 = vmax.f32 %v2319, 0.0
      %v2384 = vmax.f32 %v2320, 0.0
      %v2385 = vmax.f32 %v2321, 0.0
      %v2386 = vmax.f32 %v2322, 0.0
      %v2387 = vmax.f32 %v2323, 0.0
      %v2388 = vmax.f32 %v2324, 0.0
      %v2389 = vmax.f32 %v2325, 0.0
      %v2390 = vmax.f32 %v2326, 0.0
      %v2391 = vmax.f32 %v2327, 0.0
      %v2392 = vmax.f32 %v2328, 0.0
      %v2393 = vmax.f32 %v2329, 0.0
      %v2394 = vmax.f32 %v2330, 0.0
      %v2395 = vmax.f32 %v2331, 0.0
      %v2396 = vmax.f32 %v2332, 0.0
      %v2397 = vmax.f32 %v2333, 0.0
      %v2398 = vmax.f32 %v2334, 0.0
      %v2399 = vmax.f32 %v2335, 0.0
      %v2400 = vmax.f32 %v2336, 0.0
      %v2401 = vmax.f32 %v2337, 0.0
      %v2402 = vmax.f32 %v2338, 0.0
      %v2403 = vmax.f32 %v2339, 0.0
      %v2404 = vmax.f32 %v2340, 0.0
      %v2405 = vmax.f32 %v2341, 0.0
      %v2406 = vmax.f32 %v2342, 0.0
      %v2407 = vmax.f32 %v2343, 0.0
      %v2408 = vmax.f32 %v2344, 0.0
      %v2409 = vmax.f32 %v2345, 0.0
      %v2410 = vmax.f32 %v2346, 0.0
      %v2411 = vmax.f32 %v2347, 0.0
      %v2412 = vmax.f32 %v2348, 0.0
      %v2413 = vmax.f32 %v2349, 0.0
      %v2414 = vmax.f32 %v2350, 0.0
      %v2415 = vmax.f32 %v2351, 0.0
      %v2416 = vmax.f32 %v2352, 0.0
      %v2417 = vmax.f32 %v2353, 0.0
      %v2418 = vmax.f32 %v2354, 0.0
      %v2419 = vmax.f32 %v2355, 0.0
      %v2420 = vmax.f32 %v2356, 0.0
      %v2421 = vmax.f32 %v2357, 0.0
      %v2422 = vmax.f32 %v2358, 0.0
      %v2423 = vmax.f32 %v2359, 0.0
      %v2424 = vmax.f32 %v2360, 0.0
      %v2425 = vmax.f32 %v2361, 0.0
      %v2426 = vld [vmem:[%s3] sm:$0xff]
      %v2427 = vld [vmem:[%s3 + $0x8] sm:$0xff]
      %v2428 = vld [vmem:[%s3 + $0x10] sm:$0xff]
      %v2429 = vld [vmem:[%s3 + $0x18] sm:$0xff]
      %v2430 = vld [vmem:[%s3 + $0x20] sm:$0xff]
      %v2431 = vld [vmem:[%s3 + $0x28] sm:$0xff]
      %v2432 = vld [vmem:[%s3 + $0x30] sm:$0xff]
      %v2433 = vld [vmem:[%s3 + $0x38] sm:$0xff]
      %v2434 = vld [vmem:[%s3 + $0x40] sm:$0xff]
      %v2435 = vld [vmem:[%s3 + $0x48] sm:$0xff]
      %v2436 = vld [vmem:[%s3 + $0x50] sm:$0xf]
      %s2437 = scalar_lea.vmem %s3, 88
      %v2438 = vld [vmem:[%s2437] sm:$0xff]
      %v2439 = vld [vmem:[%s2437 + $0x8] sm:$0xff]
      %v2440 = vld [vmem:[%s2437 + $0x10] sm:$0xff]
      %v2441 = vld [vmem:[%s2437 + $0x18] sm:$0xff]
      %v2442 = vld [vmem:[%s2437 + $0x20] sm:$0xff]
      %v2443 = vld [vmem:[%s2437 + $0x28] sm:$0xff]
      %v2444 = vld [vmem:[%s2437 + $0x30] sm:$0xff]
      %v2445 = vld [vmem:[%s2437 + $0x38] sm:$0xff]
      %v2446 = vld [vmem:[%s2437 + $0x40] sm:$0xff]
      %v2447 = vld [vmem:[%s2437 + $0x48] sm:$0xff]
      %v2448 = vld [vmem:[%s2437 + $0x50] sm:$0xf]
      %v2513 = vrot.slane %v2362, 1
      %v2514 = vrot.slane %v2363, 1
      %v2515 = vsel %vm422, %v2513, %v2514
      %v2516 = vrot.slane %v2364, 1
      %v2517 = vsel %vm422, %v2514, %v2516
      %v2518 = vrot.slane %v2365, 1
      %v2519 = vsel %vm422, %v2516, %v2518
      %v2520 = vrot.slane %v2366, 1
      %v2521 = vsel %vm422, %v2518, %v2520
      %v2522 = vrot.slane %v2367, 1
      %v2523 = vsel %vm422, %v2520, %v2522
      %v2524 = vrot.slane %v2368, 1
      %v2525 = vsel %vm422, %v2522, %v2524
      %v2526 = vrot.slane %v2369, 1
      %v2527 = vsel %vm422, %v2524, %v2526
      %v2528 = vrot.slane %v2370, 1
      %v2529 = vsel %vm422, %v2526, %v2528
      %v2530 = vrot.slane %v2371, 1
      %v2531 = vsel %vm422, %v2528, %v2530
      %v2532 = vrot.slane %v2372, 1
      %v2533 = vsel %vm422, %v2530, %v2532
      %v2534 = vrot.slane %v2373, 1
      %v2535 = vsel %vm422, %v2532, %v2534
      %v2536 = vrot.slane %v2374, 1
      %v2537 = vsel %vm422, %v2534, %v2536
      %v2538 = vrot.slane %v2375, 1
      %v2539 = vsel %vm422, %v2536, %v2538
      %v2540 = vrot.slane %v2376, 1
      %v2541 = vsel %vm422, %v2538, %v2540
      %v2542 = vrot.slane %v2377, 1
      %v2543 = vsel %vm422, %v2540, %v2542
      %v2544 = vrot.slane %v2378, 1
      %v2545 = vsel %vm422, %v2542, %v2544
      %v2546 = vrot.slane %v2379, 1
      %v2547 = vsel %vm422, %v2544, %v2546
      %v2548 = vrot.slane %v2380, 1
      %v2549 = vsel %vm422, %v2546, %v2548
      %v2550 = vrot.slane %v2381, 1
      %v2551 = vsel %vm422, %v2548, %v2550
      %v2552 = vrot.slane %v2382, 1
      %v2553 = vsel %vm422, %v2550, %v2552
      %v2554 = vrot.slane %v2383, 1
      %v2555 = vsel %vm422, %v2552, %v2554
      %v2556 = vrot.slane %v2384, 1
      %v2557 = vsel %vm422, %v2554, %v2556
      %v2558 = vrot.slane %v2385, 1
      %v2559 = vsel %vm422, %v2556, %v2558
      %v2560 = vrot.slane %v2386, 1
      %v2561 = vsel %vm422, %v2558, %v2560
      %v2562 = vrot.slane %v2387, 1
      %v2563 = vsel %vm422, %v2560, %v2562
      %v2564 = vrot.slane %v2388, 1
      %v2565 = vsel %vm422, %v2562, %v2564
      %v2566 = vrot.slane %v2389, 1
      %v2567 = vsel %vm422, %v2564, %v2566
      %v2568 = vrot.slane %v2390, 1
      %v2569 = vsel %vm422, %v2566, %v2568
      %v2570 = vrot.slane %v2391, 1
      %v2571 = vsel %vm422, %v2568, %v2570
      %v2572 = vrot.slane %v2392, 1
      %v2573 = vsel %vm422, %v2570, %v2572
      %v2574 = vrot.slane %v2393, 1
      %v2575 = vsel %vm422, %v2572, %v2574
      %v2576 = vrot.slane %v2394, 1
      %v2577 = vsel %vm422, %v2574, %v2576
      %v2578 = vrot.slane %v2395, 1
      %v2579 = vsel %vm422, %v2576, %v2578
      %v2580 = vrot.slane %v2396, 1
      %v2581 = vsel %vm422, %v2578, %v2580
      %v2582 = vrot.slane %v2397, 1
      %v2583 = vsel %vm422, %v2580, %v2582
      %v2584 = vrot.slane %v2398, 1
      %v2585 = vsel %vm422, %v2582, %v2584
      %v2586 = vrot.slane %v2399, 1
      %v2587 = vsel %vm422, %v2584, %v2586
      %v2588 = vrot.slane %v2400, 1
      %v2589 = vsel %vm422, %v2586, %v2588
      %v2590 = vrot.slane %v2401, 1
      %v2591 = vsel %vm422, %v2588, %v2590
      %v2592 = vrot.slane %v2402, 1
      %v2593 = vsel %vm422, %v2590, %v2592
      %v2594 = vrot.slane %v2403, 1
      %v2595 = vsel %vm422, %v2592, %v2594
      %v2596 = vrot.slane %v2404, 1
      %v2597 = vsel %vm422, %v2594, %v2596
      %v2598 = vrot.slane %v2405, 1
      %v2599 = vsel %vm422, %v2596, %v2598
      %v2600 = vrot.slane %v2406, 1
      %v2601 = vsel %vm422, %v2598, %v2600
      %v2602 = vrot.slane %v2407, 1
      %v2603 = vsel %vm422, %v2600, %v2602
      %v2604 = vrot.slane %v2408, 1
      %v2605 = vsel %vm422, %v2602, %v2604
      %v2606 = vrot.slane %v2409, 1
      %v2607 = vsel %vm422, %v2604, %v2606
      %v2608 = vrot.slane %v2410, 1
      %v2609 = vsel %vm422, %v2606, %v2608
      %v2610 = vrot.slane %v2411, 1
      %v2611 = vsel %vm422, %v2608, %v2610
      %v2612 = vrot.slane %v2412, 1
      %v2613 = vsel %vm422, %v2610, %v2612
      %v2614 = vrot.slane %v2413, 1
      %v2615 = vsel %vm422, %v2612, %v2614
      %v2616 = vrot.slane %v2414, 1
      %v2617 = vsel %vm422, %v2614, %v2616
      %v2618 = vrot.slane %v2415, 1
      %v2619 = vsel %vm422, %v2616, %v2618
      %v2620 = vrot.slane %v2416, 1
      %v2621 = vsel %vm422, %v2618, %v2620
      %v2622 = vrot.slane %v2417, 1
      %v2623 = vsel %vm422, %v2620, %v2622
      %v2624 = vrot.slane %v2418, 1
      %v2625 = vsel %vm422, %v2622, %v2624
      %v2626 = vrot.slane %v2419, 1
      %v2627 = vsel %vm422, %v2624, %v2626
      %v2628 = vrot.slane %v2420, 1
      %v2629 = vsel %vm422, %v2626, %v2628
      %v2630 = vrot.slane %v2421, 1
      %v2631 = vsel %vm422, %v2628, %v2630
      %v2632 = vrot.slane %v2422, 1
      %v2633 = vsel %vm422, %v2630, %v2632
      %v2634 = vrot.slane %v2423, 1
      %v2635 = vsel %vm422, %v2632, %v2634
      %v2636 = vrot.slane %v2424, 1
      %v2637 = vsel %vm422, %v2634, %v2636
      %v2638 = vrot.slane %v2425, 1
      %v2639 = vsel %vm422, %v2636, %v2638
      %vm2640 = vcmask 687104
      %v2641 = vsel %vm2640, %v2515, 0
      %v2643 = vsel %vm2640, %v2517, 0
      %v2645 = vsel %vm2640, %v2519, 0
      %v2647 = vsel %vm2640, %v2521, 0
      %v2649 = vsel %vm2640, %v2523, 0
      %v2651 = vsel %vm2640, %v2525, 0
      %v2653 = vsel %vm2640, %v2527, 0
      %v2655 = vsel %vm2640, %v2529, 0
      %v2657 = vsel %vm2640, %v2531, 0
      %v2659 = vsel %vm2640, %v2533, 0
      %v2661 = vsel %vm2640, %v2535, 0
      %v2663 = vsel %vm2640, %v2537, 0
      %v2665 = vsel %vm2640, %v2539, 0
      %v2667 = vsel %vm2640, %v2541, 0
      %v2669 = vsel %vm2640, %v2543, 0
      %v2671 = vsel %vm2640, %v2545, 0
      %v2673 = vsel %vm2640, %v2547, 0
      %v2675 = vsel %vm2640, %v2549, 0
      %v2677 = vsel %vm2640, %v2551, 0
      %v2679 = vsel %vm2640, %v2553, 0
      %v2681 = vsel %vm2640, %v2555, 0
      %v2683 = vsel %vm2640, %v2557, 0
      %v2685 = vsel %vm2640, %v2559, 0
      %v2687 = vsel %vm2640, %v2561, 0
      %v2689 = vsel %vm2640, %v2563, 0
      %v2691 = vsel %vm2640, %v2565, 0
      %v2693 = vsel %vm2640, %v2567, 0
      %v2695 = vsel %vm2640, %v2569, 0
      %v2697 = vsel %vm2640, %v2571, 0
      %v2699 = vsel %vm2640, %v2573, 0
      %v2701 = vsel %vm2640, %v2575, 0
      %v2703 = vsel %vm2640, %v2577, 0
      %v2705 = vsel %vm2640, %v2579, 0
      %v2707 = vsel %vm2640, %v2581, 0
      %v2709 = vsel %vm2640, %v2583, 0
      %v2711 = vsel %vm2640, %v2585, 0
      %v2713 = vsel %vm2640, %v2587, 0
      %v2715 = vsel %vm2640, %v2589, 0
      %v2717 = vsel %vm2640, %v2591, 0
      %v2719 = vsel %vm2640, %v2593, 0
      %v2721 = vsel %vm2640, %v2595, 0
      %v2723 = vsel %vm2640, %v2597, 0
      %v2725 = vsel %vm2640, %v2599, 0
      %v2727 = vsel %vm2640, %v2601, 0
      %v2729 = vsel %vm2640, %v2603, 0
      %v2731 = vsel %vm2640, %v2605, 0
      %v2733 = vsel %vm2640, %v2607, 0
      %v2735 = vsel %vm2640, %v2609, 0
      %v2737 = vsel %vm2640, %v2611, 0
      %v2739 = vsel %vm2640, %v2613, 0
      %v2741 = vsel %vm2640, %v2615, 0
      %v2743 = vsel %vm2640, %v2617, 0
      %v2745 = vsel %vm2640, %v2619, 0
      %v2747 = vsel %vm2640, %v2621, 0
      %v2749 = vsel %vm2640, %v2623, 0
      %v2751 = vsel %vm2640, %v2625, 0
      %v2753 = vsel %vm2640, %v2627, 0
      %v2755 = vsel %vm2640, %v2629, 0
      %v2757 = vsel %vm2640, %v2631, 0
      %v2759 = vsel %vm2640, %v2633, 0
      %v2761 = vsel %vm2640, %v2635, 0
      %v2763 = vsel %vm2640, %v2637, 0
      %v2765 = vsel %vm2640, %v2639, 0
      %v2767 = vsel %vm2640, %v2638, 0
      %vm2769 = vcmask 1043456
      %v2771 = vsel %vm2769, %v2448, 0
      %2773 = vmatprep.subr.mxu0 0.0
      %2774 = vmatpush1.msra.mxu0 %v2438
      %2775 = vmatprep.subr.mxu0 0.0
      %2776 = vmatpush1.msra.mxu0 %v2439
      %2777 = vmatprep.subr.mxu0 0.0
      %2778 = vmatpush1.msra.mxu0 %v2440
      %2779 = vmatprep.subr.mxu0 0.0
      %2780 = vmatpush1.msra.mxu0 %v2441
      %2781 = vmatprep.subr.mxu0 0.0
      %2782 = vmatpush1.msra.mxu0 %v2442
      %2783 = vmatprep.subr.mxu0 0.0
      %2784 = vmatpush1.msra.mxu0 %v2443
      %2785 = vmatprep.subr.mxu0 0.0
      %2786 = vmatpush1.msra.mxu0 %v2444
      %2787 = vmatprep.subr.mxu0 0.0
      %2788 = vmatpush1.msra.mxu0 %v2445
      %2789 = vmatprep.subr.mxu0 0.0
      %2790 = vmatpush1.msra.mxu0 %v2446
      %2791 = vmatprep.subr.mxu0 0.0
      %2792 = vmatpush1.msra.mxu0 %v2447
      %2793 = vmatprep.subr.mxu0 0.0
      %2794 = vmatpush1.msra.mxu0 %v2771
      %2795 = vmatprep.subr.mxu0 0.0
      %2796 = vmatpush1.msra.mxu0 0.0
      %2797 = vmatprep.subr.mxu0 0.0
      %2798 = vmatpush1.msra.mxu0 0.0
      %2799 = vmatprep.subr.mxu0 0.0
      %2800 = vmatpush1.msra.mxu0 0.0
      %2801 = vmatprep.subr.mxu0 0.0
      %2802 = vmatpush1.msra.mxu0 0.0
      %2803 = vmatprep.subr.mxu0 0.0
      %2804 = vmatpush1.msra.mxu0 0.0
      %2805 = vmatprep.subr.mxu0 0.0
      %2806 = vmatpush1.msra.mxu0 0.0
      %2807 = vmatprep.subr.mxu0 0.0
      %2808 = vmatpush1.msra.mxu0 0.0
      %2809 = vmatprep.subr.mxu0 0.0
      %2810 = vmatpush1.msra.mxu0 0.0
      %2811 = vmatprep.subr.mxu0 0.0
      %2812 = vmatpush1.msra.mxu0 0.0
      %2813 = vmatprep.subr.mxu0 0.0
      %2814 = vmatpush1.msra.mxu0 0.0
      %2815 = vmatprep.subr.mxu0 0.0
      %2816 = vmatpush1.msra.mxu0 0.0
      %2817 = vmatprep.subr.mxu0 0.0
      %2818 = vmatpush1.msra.mxu0 0.0
      %2819 = vmatprep.subr.mxu0 0.0
      %2820 = vmatpush1.msra.mxu0 0.0
      %2821 = vmatprep.subr.mxu0 0.0
      %2822 = vmatpush1.msra.mxu0 0.0
      %2823 = vmatprep.subr.mxu0 0.0
      %2824 = vmatpush1.msra.mxu0 0.0
      %2825 = vmatprep.subr.mxu0 0.0
      %2826 = vmatpush1.msra.mxu0 0.0
      %2827 = vmatprep.subr.mxu0 0.0
      %2828 = vmatpush1.msra.mxu0 0.0
      %2829 = vmatprep.subr.mxu0 0.0
      %2830 = vmatpush1.msra.mxu0 0.0
      %2831 = vmatprep.subr.mxu0 0.0
      %2832 = vmatpush1.msra.mxu0 0.0
      %2833 = vmatprep.subr.mxu0 0.0
      %2834 = vmatpush1.msra.mxu0 0.0
      %2835 = vmatprep.subr.mxu0 0.0
      %2836 = vmatpush1.msra.mxu0 0.0
      %2837 = vmatprep.mubr.f32.mxu0 0.0
      %2838 = vmatmul.mubr.f32.gmra.mrb[0].mxu0 %v2641
      %v2839 = vpop.f32.mrb[0].mxu0
      %v2840 = vadd.f32 0.0, %v2839
      %v2841 = vpop.f32.mrb[0].mxu0
      %2842 = vmatprep.mubr.f32.mxu0 0.0
      %2843 = vmatmul.mubr.f32.gmra.mrb[0].mxu0 %v2643
      %v2844 = vpop.f32.mrb[0].mxu0
      %v2845 = vadd.f32 0.0, %v2844
      %v2846 = vpop.f32.mrb[0].mxu0
      %2847 = vmatprep.mubr.f32.mxu0 0.0
      %2848 = vmatmul.mubr.f32.gmra.mrb[0].mxu0 %v2645
      %v2849 = vpop.f32.mrb[0].mxu0
      %v2850 = vadd.f32 0.0, %v2849
      %v2851 = vpop.f32.mrb[0].mxu0
      %2852 = vmatprep.mubr.f32.mxu0 0.0
      %2853 = vmatmul.mubr.f32.gmra.mrb[0].mxu0 %v2647
      %v2854 = vpop.f32.mrb[0].mxu0
      %v2855 = vadd.f32 0.0, %v2854
      %v2856 = vpop.f32.mrb[0].mxu0
      %2857 = vmatprep.mubr.f32.mxu0 0.0
      %2858 = vmatmul.mubr.f32.gmra.mrb[0].mxu0 %v2649
      %v2859 = vpop.f32.mrb[0].mxu0
      %v2860 = vadd.f32 0.0, %v2859
      %v2861 = vpop.f32.mrb[0].mxu0
      %2862 = vmatprep.mubr.f32.mxu0 0.0
      %2863 = vmatmul.mubr.f32.gmra.mrb[0].mxu0 %v2651
      %v2864 = vpop.f32.mrb[0].mxu0
      %v2865 = vadd.f32 0.0, %v2864
      %v2866 = vpop.f32.mrb[0].mxu0
      %2867 = vmatprep.mubr.f32.mxu0 0.0
      %2868 = vmatmul.mubr.f32.gmra.mrb[0].mxu0 %v2653
      %v2869 = vpop.f32.mrb[0].mxu0
      %v2870 = vadd.f32 0.0, %v2869
      %v2871 = vpop.f32.mrb[0].mxu0
      %2872 = vmatprep.mubr.f32.mxu0 0.0
      %2873 = vmatmul.mubr.f32.gmra.mrb[0].mxu0 %v2655
      %v2874 = vpop.f32.mrb[0].mxu0
      %v2875 = vadd.f32 0.0, %v2874
      %v2876 = vpop.f32.mrb[0].mxu0
      %2877 = vmatprep.mubr.f32.mxu0 0.0
      %2878 = vmatmul.mubr.f32.gmra.mrb[0].mxu0 %v2657
      %v2879 = vpop.f32.mrb[0].mxu0
      %v2880 = vadd.f32 0.0, %v2879
      %v2881 = vpop.f32.mrb[0].mxu0
      %2882 = vmatprep.mubr.f32.mxu0 0.0
      %2883 = vmatmul.mubr.f32.gmra.mrb[0].mxu0 %v2659
      %v2884 = vpop.f32.mrb[0].mxu0
      %v2885 = vadd.f32 0.0, %v2884
      %v2886 = vpop.f32.mrb[0].mxu0
      %2887 = vmatprep.mubr.f32.mxu0 0.0
      %2888 = vmatmul.mubr.f32.gmra.mrb[0].mxu0 %v2661
      %v2889 = vpop.f32.mrb[0].mxu0
      %v2890 = vadd.f32 0.0, %v2889
      %v2891 = vpop.f32.mrb[0].mxu0
      %2892 = vmatprep.mubr.f32.mxu0 0.0
      %2893 = vmatmul.mubr.f32.gmra.mrb[0].mxu0 %v2663
      %v2894 = vpop.f32.mrb[0].mxu0
      %v2895 = vadd.f32 0.0, %v2894
      %v2896 = vpop.f32.mrb[0].mxu0
      %2897 = vmatprep.mubr.f32.mxu0 0.0
      %2898 = vmatmul.mubr.f32.gmra.mrb[0].mxu0 %v2665
      %v2899 = vpop.f32.mrb[0].mxu0
      %v2900 = vadd.f32 0.0, %v2899
      %v2901 = vpop.f32.mrb[0].mxu0
      %2902 = vmatprep.mubr.f32.mxu0 0.0
      %2903 = vmatmul.mubr.f32.gmra.mrb[0].mxu0 %v2667
      %v2904 = vpop.f32.mrb[0].mxu0
      %v2905 = vadd.f32 0.0, %v2904
      %v2906 = vpop.f32.mrb[0].mxu0
      %2907 = vmatprep.mubr.f32.mxu0 0.0
      %2908 = vmatmul.mubr.f32.gmra.mrb[0].mxu0 %v2669
      %v2909 = vpop.f32.mrb[0].mxu0
      %v2910 = vadd.f32 0.0, %v2909
      %v2911 = vpop.f32.mrb[0].mxu0
      %2912 = vmatprep.mubr.f32.mxu0 0.0
      %2913 = vmatmul.mubr.f32.gmra.mrb[0].mxu0 %v2671
      %v2914 = vpop.f32.mrb[0].mxu0
      %v2915 = vadd.f32 0.0, %v2914
      %v2916 = vpop.f32.mrb[0].mxu0
      %2917 = vmatprep.mubr.f32.mxu0 0.0
      %2918 = vmatmul.mubr.f32.gmra.mrb[0].mxu0 %v2673
      %v2919 = vpop.f32.mrb[0].mxu0
      %v2920 = vadd.f32 0.0, %v2919
      %v2921 = vpop.f32.mrb[0].mxu0
      %2922 = vmatprep.mubr.f32.mxu0 0.0
      %2923 = vmatmul.mubr.f32.gmra.mrb[0].mxu0 %v2675
      %v2924 = vpop.f32.mrb[0].mxu0
      %v2925 = vadd.f32 0.0, %v2924
      %v2926 = vpop.f32.mrb[0].mxu0
      %2927 = vmatprep.mubr.f32.mxu0 0.0
      %2928 = vmatmul.mubr.f32.gmra.mrb[0].mxu0 %v2677
      %v2929 = vpop.f32.mrb[0].mxu0
      %v2930 = vadd.f32 0.0, %v2929
      %v2931 = vpop.f32.mrb[0].mxu0
      %2932 = vmatprep.mubr.f32.mxu0 0.0
      %2933 = vmatmul.mubr.f32.gmra.mrb[0].mxu0 %v2679
      %v2934 = vpop.f32.mrb[0].mxu0
      %v2935 = vadd.f32 0.0, %v2934
      %v2936 = vpop.f32.mrb[0].mxu0
      %2937 = vmatprep.mubr.f32.mxu0 0.0
      %2938 = vmatmul.mubr.f32.gmra.mrb[0].mxu0 %v2681
      %v2939 = vpop.f32.mrb[0].mxu0
      %v2940 = vadd.f32 0.0, %v2939
      %v2941 = vpop.f32.mrb[0].mxu0
      %2942 = vmatprep.mubr.f32.mxu0 0.0
      %2943 = vmatmul.mubr.f32.gmra.mrb[0].mxu0 %v2683
      %v2944 = vpop.f32.mrb[0].mxu0
      %v2945 = vadd.f32 0.0, %v2944
      %v2946 = vpop.f32.mrb[0].mxu0
      %2947 = vmatprep.mubr.f32.mxu0 0.0
      %2948 = vmatmul.mubr.f32.gmra.mrb[0].mxu0 %v2685
      %v2949 = vpop.f32.mrb[0].mxu0
      %v2950 = vadd.f32 0.0, %v2949
      %v2951 = vpop.f32.mrb[0].mxu0
      %2952 = vmatprep.mubr.f32.mxu0 0.0
      %2953 = vmatmul.mubr.f32.gmra.mrb[0].mxu0 %v2687
      %v2954 = vpop.f32.mrb[0].mxu0
      %v2955 = vadd.f32 0.0, %v2954
      %v2956 = vpop.f32.mrb[0].mxu0
      %2957 = vmatprep.mubr.f32.mxu0 0.0
      %2958 = vmatmul.mubr.f32.gmra.mrb[0].mxu0 %v2689
      %v2959 = vpop.f32.mrb[0].mxu0
      %v2960 = vadd.f32 0.0, %v2959
      %v2961 = vpop.f32.mrb[0].mxu0
      %2962 = vmatprep.mubr.f32.mxu0 0.0
      %2963 = vmatmul.mubr.f32.gmra.mrb[0].mxu0 %v2691
      %v2964 = vpop.f32.mrb[0].mxu0
      %v2965 = vadd.f32 0.0, %v2964
      %v2966 = vpop.f32.mrb[0].mxu0
      %2967 = vmatprep.mubr.f32.mxu0 0.0
      %2968 = vmatmul.mubr.f32.gmra.mrb[0].mxu0 %v2693
      %v2969 = vpop.f32.mrb[0].mxu0
      %v2970 = vadd.f32 0.0, %v2969
      %v2971 = vpop.f32.mrb[0].mxu0
      %2972 = vmatprep.mubr.f32.mxu0 0.0
      %2973 = vmatmul.mubr.f32.gmra.mrb[0].mxu0 %v2695
      %v2974 = vpop.f32.mrb[0].mxu0
      %v2975 = vadd.f32 0.0, %v2974
      %v2976 = vpop.f32.mrb[0].mxu0
      %2977 = vmatprep.mubr.f32.mxu0 0.0
      %2978 = vmatmul.mubr.f32.gmra.mrb[0].mxu0 %v2697
      %v2979 = vpop.f32.mrb[0].mxu0
      %v2980 = vadd.f32 0.0, %v2979
      %v2981 = vpop.f32.mrb[0].mxu0
      %2982 = vmatprep.mubr.f32.mxu0 0.0
      %2983 = vmatmul.mubr.f32.gmra.mrb[0].mxu0 %v2699
      %v2984 = vpop.f32.mrb[0].mxu0
      %v2985 = vadd.f32 0.0, %v2984
      %v2986 = vpop.f32.mrb[0].mxu0
      %2987 = vmatprep.mubr.f32.mxu0 0.0
      %2988 = vmatmul.mubr.f32.gmra.mrb[0].mxu0 %v2701
      %v2989 = vpop.f32.mrb[0].mxu0
      %v2990 = vadd.f32 0.0, %v2989
      %v2991 = vpop.f32.mrb[0].mxu0
      %2992 = vmatprep.mubr.f32.mxu0 0.0
      %2993 = vmatmul.mubr.f32.gmra.mrb[0].mxu0 %v2703
      %v2994 = vpop.f32.mrb[0].mxu0
      %v2995 = vadd.f32 0.0, %v2994
      %v2996 = vpop.f32.mrb[0].mxu0
      %2997 = vmatprep.mubr.f32.mxu0 0.0
      %2998 = vmatmul.mubr.f32.gmra.mrb[0].mxu0 %v2705
      %v2999 = vpop.f32.mrb[0].mxu0
      %v3000 = vadd.f32 0.0, %v2999
      %v3001 = vpop.f32.mrb[0].mxu0
      %3002 = vmatprep.mubr.f32.mxu0 0.0
      %3003 = vmatmul.mubr.f32.gmra.mrb[0].mxu0 %v2707
      %v3004 = vpop.f32.mrb[0].mxu0
      %v3005 = vadd.f32 0.0, %v3004
      %v3006 = vpop.f32.mrb[0].mxu0
      %3007 = vmatprep.mubr.f32.mxu0 0.0
      %3008 = vmatmul.mubr.f32.gmra.mrb[0].mxu0 %v2709
      %v3009 = vpop.f32.mrb[0].mxu0
      %v3010 = vadd.f32 0.0, %v3009
      %v3011 = vpop.f32.mrb[0].mxu0
      %3012 = vmatprep.mubr.f32.mxu0 0.0
      %3013 = vmatmul.mubr.f32.gmra.mrb[0].mxu0 %v2711
      %v3014 = vpop.f32.mrb[0].mxu0
      %v3015 = vadd.f32 0.0, %v3014
      %v3016 = vpop.f32.mrb[0].mxu0
      %3017 = vmatprep.mubr.f32.mxu0 0.0
      %3018 = vmatmul.mubr.f32.gmra.mrb[0].mxu0 %v2713
      %v3019 = vpop.f32.mrb[0].mxu0
      %v3020 = vadd.f32 0.0, %v3019
      %v3021 = vpop.f32.mrb[0].mxu0
      %3022 = vmatprep.mubr.f32.mxu0 0.0
      %3023 = vmatmul.mubr.f32.gmra.mrb[0].mxu0 %v2715
      %v3024 = vpop.f32.mrb[0].mxu0
      %v3025 = vadd.f32 0.0, %v3024
      %v3026 = vpop.f32.mrb[0].mxu0
      %3027 = vmatprep.mubr.f32.mxu0 0.0
      %3028 = vmatmul.mubr.f32.gmra.mrb[0].mxu0 %v2717
      %v3029 = vpop.f32.mrb[0].mxu0
      %v3030 = vadd.f32 0.0, %v3029
      %v3031 = vpop.f32.mrb[0].mxu0
      %3032 = vmatprep.mubr.f32.mxu0 0.0
      %3033 = vmatmul.mubr.f32.gmra.mrb[0].mxu0 %v2719
      %v3034 = vpop.f32.mrb[0].mxu0
      %v3035 = vadd.f32 0.0, %v3034
      %v3036 = vpop.f32.mrb[0].mxu0
      %3037 = vmatprep.mubr.f32.mxu0 0.0
      %3038 = vmatmul.mubr.f32.gmra.mrb[0].mxu0 %v2721
      %v3039 = vpop.f32.mrb[0].mxu0
      %v3040 = vadd.f32 0.0, %v3039
      %v3041 = vpop.f32.mrb[0].mxu0
      %3042 = vmatprep.mubr.f32.mxu0 0.0
      %3043 = vmatmul.mubr.f32.gmra.mrb[0].mxu0 %v2723
      %v3044 = vpop.f32.mrb[0].mxu0
      %v3045 = vadd.f32 0.0, %v3044
      %v3046 = vpop.f32.mrb[0].mxu0
      %3047 = vmatprep.mubr.f32.mxu0 0.0
      %3048 = vmatmul.mubr.f32.gmra.mrb[0].mxu0 %v2725
      %v3049 = vpop.f32.mrb[0].mxu0
      %v3050 = vadd.f32 0.0, %v3049
      %v3051 = vpop.f32.mrb[0].mxu0
      %3052 = vmatprep.mubr.f32.mxu0 0.0
      %3053 = vmatmul.mubr.f32.gmra.mrb[0].mxu0 %v2727
      %v3054 = vpop.f32.mrb[0].mxu0
      %v3055 = vadd.f32 0.0, %v3054
      %v3056 = vpop.f32.mrb[0].mxu0
      %3057 = vmatprep.mubr.f32.mxu0 0.0
      %3058 = vmatmul.mubr.f32.gmra.mrb[0].mxu0 %v2729
      %v3059 = vpop.f32.mrb[0].mxu0
      %v3060 = vadd.f32 0.0, %v3059
      %v3061 = vpop.f32.mrb[0].mxu0
      %3062 = vmatprep.mubr.f32.mxu0 0.0
      %3063 = vmatmul.mubr.f32.gmra.mrb[0].mxu0 %v2731
      %v3064 = vpop.f32.mrb[0].mxu0
      %v3065 = vadd.f32 0.0, %v3064
      %v3066 = vpop.f32.mrb[0].mxu0
      %3067 = vmatprep.mubr.f32.mxu0 0.0
      %3068 = vmatmul.mubr.f32.gmra.mrb[0].mxu0 %v2733
      %v3069 = vpop.f32.mrb[0].mxu0
      %v3070 = vadd.f32 0.0, %v3069
      %v3071 = vpop.f32.mrb[0].mxu0
      %3072 = vmatprep.mubr.f32.mxu0 0.0
      %3073 = vmatmul.mubr.f32.gmra.mrb[0].mxu0 %v2735
      %v3074 = vpop.f32.mrb[0].mxu0
      %v3075 = vadd.f32 0.0, %v3074
      %v3076 = vpop.f32.mrb[0].mxu0
      %3077 = vmatprep.mubr.f32.mxu0 0.0
      %3078 = vmatmul.mubr.f32.gmra.mrb[0].mxu0 %v2737
      %v3079 = vpop.f32.mrb[0].mxu0
      %v3080 = vadd.f32 0.0, %v3079
      %v3081 = vpop.f32.mrb[0].mxu0
      %3082 = vmatprep.mubr.f32.mxu0 0.0
      %3083 = vmatmul.mubr.f32.gmra.mrb[0].mxu0 %v2739
      %v3084 = vpop.f32.mrb[0].mxu0
      %v3085 = vadd.f32 0.0, %v3084
      %v3086 = vpop.f32.mrb[0].mxu0
      %3087 = vmatprep.mubr.f32.mxu0 0.0
      %3088 = vmatmul.mubr.f32.gmra.mrb[0].mxu0 %v2741
      %v3089 = vpop.f32.mrb[0].mxu0
      %v3090 = vadd.f32 0.0, %v3089
      %v3091 = vpop.f32.mrb[0].mxu0
      %3092 = vmatprep.mubr.f32.mxu0 0.0
      %3093 = vmatmul.mubr.f32.gmra.mrb[0].mxu0 %v2743
      %v3094 = vpop.f32.mrb[0].mxu0
      %v3095 = vadd.f32 0.0, %v3094
      %v3096 = vpop.f32.mrb[0].mxu0
      %3097 = vmatprep.mubr.f32.mxu0 0.0
      %3098 = vmatmul.mubr.f32.gmra.mrb[0].mxu0 %v2745
      %v3099 = vpop.f32.mrb[0].mxu0
      %v3100 = vadd.f32 0.0, %v3099
      %v3101 = vpop.f32.mrb[0].mxu0
      %3102 = vmatprep.mubr.f32.mxu0 0.0
      %3103 = vmatmul.mubr.f32.gmra.mrb[0].mxu0 %v2747
      %v3104 = vpop.f32.mrb[0].mxu0
      %v3105 = vadd.f32 0.0, %v3104
      %v3106 = vpop.f32.mrb[0].mxu0
      %3107 = vmatprep.mubr.f32.mxu0 0.0
      %3108 = vmatmul.mubr.f32.gmra.mrb[0].mxu0 %v2749
      %v3109 = vpop.f32.mrb[0].mxu0
      %v3110 = vadd.f32 0.0, %v3109
      %v3111 = vpop.f32.mrb[0].mxu0
      %3112 = vmatprep.mubr.f32.mxu0 0.0
      %3113 = vmatmul.mubr.f32.gmra.mrb[0].mxu0 %v2751
      %v3114 = vpop.f32.mrb[0].mxu0
      %v3115 = vadd.f32 0.0, %v3114
      %v3116 = vpop.f32.mrb[0].mxu0
      %3117 = vmatprep.mubr.f32.mxu0 0.0
      %3118 = vmatmul.mubr.f32.gmra.mrb[0].mxu0 %v2753
      %v3119 = vpop.f32.mrb[0].mxu0
      %v3120 = vadd.f32 0.0, %v3119
      %v3121 = vpop.f32.mrb[0].mxu0
      %3122 = vmatprep.mubr.f32.mxu0 0.0
      %3123 = vmatmul.mubr.f32.gmra.mrb[0].mxu0 %v2755
      %v3124 = vpop.f32.mrb[0].mxu0
      %v3125 = vadd.f32 0.0, %v3124
      %v3126 = vpop.f32.mrb[0].mxu0
      %3127 = vmatprep.mubr.f32.mxu0 0.0
      %3128 = vmatmul.mubr.f32.gmra.mrb[0].mxu0 %v2757
      %v3129 = vpop.f32.mrb[0].mxu0
      %v3130 = vadd.f32 0.0, %v3129
      %v3131 = vpop.f32.mrb[0].mxu0
      %3132 = vmatprep.mubr.f32.mxu0 0.0
      %3133 = vmatmul.mubr.f32.gmra.mrb[0].mxu0 %v2759
      %v3134 = vpop.f32.mrb[0].mxu0
      %v3135 = vadd.f32 0.0, %v3134
      %v3136 = vpop.f32.mrb[0].mxu0
      %3137 = vmatprep.mubr.f32.mxu0 0.0
      %3138 = vmatmul.mubr.f32.gmra.mrb[0].mxu0 %v2761
      %v3139 = vpop.f32.mrb[0].mxu0
      %v3140 = vadd.f32 0.0, %v3139
      %v3141 = vpop.f32.mrb[0].mxu0
      %3142 = vmatprep.mubr.f32.mxu0 0.0
      %3143 = vmatmul.mubr.f32.gmra.mrb[0].mxu0 %v2763
      %v3144 = vpop.f32.mrb[0].mxu0
      %v3145 = vadd.f32 0.0, %v3144
      %v3146 = vpop.f32.mrb[0].mxu0
      %3147 = vmatprep.mubr.f32.mxu0 0.0
      %3148 = vmatmul.mubr.f32.gmra.mrb[0].mxu0 %v2765
      %v3149 = vpop.f32.mrb[0].mxu0
      %v3150 = vadd.f32 0.0, %v3149
      %v3151 = vpop.f32.mrb[0].mxu0
      %3152 = vmatprep.mubr.f32.mxu0 0.0
      %3153 = vmatmul.mubr.f32.gmra.mrb[0].mxu0 %v2767
      %v3154 = vpop.f32.mrb[0].mxu0
      %v3155 = vadd.f32 0.0, %v3154
      %v3156 = vpop.f32.mrb[0].mxu0
      %3157 = vdwg.mxu0
      %v3158 = vsel %vm2640, %v2362, 0
      %v3160 = vsel %vm2640, %v2363, 0
      %v3162 = vsel %vm2640, %v2364, 0
      %v3164 = vsel %vm2640, %v2365, 0
      %v3166 = vsel %vm2640, %v2366, 0
      %v3168 = vsel %vm2640, %v2367, 0
      %v3170 = vsel %vm2640, %v2368, 0
      %v3172 = vsel %vm2640, %v2369, 0
      %v3174 = vsel %vm2640, %v2370, 0
      %v3176 = vsel %vm2640, %v2371, 0
      %v3178 = vsel %vm2640, %v2372, 0
      %v3180 = vsel %vm2640, %v2373, 0
      %v3182 = vsel %vm2640, %v2374, 0
      %v3184 = vsel %vm2640, %v2375, 0
      %v3186 = vsel %vm2640, %v2376, 0
      %v3188 = vsel %vm2640, %v2377, 0
      %v3190 = vsel %vm2640, %v2378, 0
      %v3192 = vsel %vm2640, %v2379, 0
      %v3194 = vsel %vm2640, %v2380, 0
      %v3196 = vsel %vm2640, %v2381, 0
      %v3198 = vsel %vm2640, %v2382, 0
      %v3200 = vsel %vm2640, %v2383, 0
      %v3202 = vsel %vm2640, %v2384, 0
      %v3204 = vsel %vm2640, %v2385, 0
      %v3206 = vsel %vm2640, %v2386, 0
      %v3208 = vsel %vm2640, %v2387, 0
      %v3210 = vsel %vm2640, %v2388, 0
      %v3212 = vsel %vm2640, %v2389, 0
      %v3214 = vsel %vm2640, %v2390, 0
      %v3216 = vsel %vm2640, %v2391, 0
      %v3218 = vsel %vm2640, %v2392, 0
      %v3220 = vsel %vm2640, %v2393, 0
      %v3222 = vsel %vm2640, %v2394, 0
      %v3224 = vsel %vm2640, %v2395, 0
      %v3226 = vsel %vm2640, %v2396, 0
      %v3228 = vsel %vm2640, %v2397, 0
      %v3230 = vsel %vm2640, %v2398, 0
      %v3232 = vsel %vm2640, %v2399, 0
      %v3234 = vsel %vm2640, %v2400, 0
      %v3236 = vsel %vm2640, %v2401, 0
      %v3238 = vsel %vm2640, %v2402, 0
      %v3240 = vsel %vm2640, %v2403, 0
      %v3242 = vsel %vm2640, %v2404, 0
      %v3244 = vsel %vm2640, %v2405, 0
      %v3246 = vsel %vm2640, %v2406, 0
      %v3248 = vsel %vm2640, %v2407, 0
      %v3250 = vsel %vm2640, %v2408, 0
      %v3252 = vsel %vm2640, %v2409, 0
      %v3254 = vsel %vm2640, %v2410, 0
      %v3256 = vsel %vm2640, %v2411, 0
      %v3258 = vsel %vm2640, %v2412, 0
      %v3260 = vsel %vm2640, %v2413, 0
      %v3262 = vsel %vm2640, %v2414, 0
      %v3264 = vsel %vm2640, %v2415, 0
      %v3266 = vsel %vm2640, %v2416, 0
      %v3268 = vsel %vm2640, %v2417, 0
      %v3270 = vsel %vm2640, %v2418, 0
      %v3272 = vsel %vm2640, %v2419, 0
      %v3274 = vsel %vm2640, %v2420, 0
      %v3276 = vsel %vm2640, %v2421, 0
      %v3278 = vsel %vm2640, %v2422, 0
      %v3280 = vsel %vm2640, %v2423, 0
      %v3282 = vsel %vm2640, %v2424, 0
      %v3284 = vsel %vm2640, %v2425, 0
      %v3287 = vsel %vm2769, %v2436, 0
      %3289 = vmatprep.subr.mxu0 0.0
      %3290 = vmatpush1.msra.mxu0 %v2426
      %3291 = vmatprep.subr.mxu0 0.0
      %3292 = vmatpush1.msra.mxu0 %v2427
      %3293 = vmatprep.subr.mxu0 0.0
      %3294 = vmatpush1.msra.mxu0 %v2428
      %3295 = vmatprep.subr.mxu0 0.0
      %3296 = vmatpush1.msra.mxu0 %v2429
      %3297 = vmatprep.subr.mxu0 0.0
      %3298 = vmatpush1.msra.mxu0 %v2430
      %3299 = vmatprep.subr.mxu0 0.0
      %3300 = vmatpush1.msra.mxu0 %v2431
      %3301 = vmatprep.subr.mxu0 0.0
      %3302 = vmatpush1.msra.mxu0 %v2432
      %3303 = vmatprep.subr.mxu0 0.0
      %3304 = vmatpush1.msra.mxu0 %v2433
      %3305 = vmatprep.subr.mxu0 0.0
      %3306 = vmatpush1.msra.mxu0 %v2434
      %3307 = vmatprep.subr.mxu0 0.0
      %3308 = vmatpush1.msra.mxu0 %v2435
      %3309 = vmatprep.subr.mxu0 0.0
      %3310 = vmatpush1.msra.mxu0 %v3287
      %3311 = vmatprep.subr.mxu0 0.0
      %3312 = vmatpush1.msra.mxu0 0.0
      %3313 = vmatprep.subr.mxu0 0.0
      %3314 = vmatpush1.msra.mxu0 0.0
      %3315 = vmatprep.subr.mxu0 0.0
      %3316 = vmatpush1.msra.mxu0 0.0
      %3317 = vmatprep.subr.mxu0 0.0
      %3318 = vmatpush1.msra.mxu0 0.0
      %3319 = vmatprep.subr.mxu0 0.0
      %3320 = vmatpush1.msra.mxu0 0.0
      %3321 = vmatprep.subr.mxu0 0.0
      %3322 = vmatpush1.msra.mxu0 0.0
      %3323 = vmatprep.subr.mxu0 0.0
      %3324 = vmatpush1.msra.mxu0 0.0
      %3325 = vmatprep.subr.mxu0 0.0
      %3326 = vmatpush1.msra.mxu0 0.0
      %3327 = vmatprep.subr.mxu0 0.0
      %3328 = vmatpush1.msra.mxu0 0.0
      %3329 = vmatprep.subr.mxu0 0.0
      %3330 = vmatpush1.msra.mxu0 0.0
      %3331 = vmatprep.subr.mxu0 0.0
      %3332 = vmatpush1.msra.mxu0 0.0
      %3333 = vmatprep.subr.mxu0 0.0
      %3334 = vmatpush1.msra.mxu0 0.0
      %3335 = vmatprep.subr.mxu0 0.0
      %3336 = vmatpush1.msra.mxu0 0.0
      %3337 = vmatprep.subr.mxu0 0.0
      %3338 = vmatpush1.msra.mxu0 0.0
      %3339 = vmatprep.subr.mxu0 0.0
      %3340 = vmatpush1.msra.mxu0 0.0
      %3341 = vmatprep.subr.mxu0 0.0
      %3342 = vmatpush1.msra.mxu0 0.0
      %3343 = vmatprep.subr.mxu0 0.0
      %3344 = vmatpush1.msra.mxu0 0.0
      %3345 = vmatprep.subr.mxu0 0.0
      %3346 = vmatpush1.msra.mxu0 0.0
      %3347 = vmatprep.subr.mxu0 0.0
      %3348 = vmatpush1.msra.mxu0 0.0
      %3349 = vmatprep.subr.mxu0 0.0
      %3350 = vmatpush1.msra.mxu0 0.0
      %3351 = vmatprep.subr.mxu0 0.0
      %3352 = vmatpush1.msra.mxu0 0.0
      %3353 = vmatprep.mubr.f32.mxu0 0.0
      %3354 = vmatmul.mubr.f32.gmra.mrb[0].mxu0 %v3158
      %v3355 = vpop.f32.mrb[0].mxu0
      %v3356 = vadd.f32 %v2840, %v3355
      %v3357 = vpop.f32.mrb[0].mxu0
      %3358 = vmatprep.mubr.f32.mxu0 0.0
      %3359 = vmatmul.mubr.f32.gmra.mrb[0].mxu0 %v3160
      %v3360 = vpop.f32.mrb[0].mxu0
      %v3361 = vadd.f32 %v2845, %v3360
      %v3362 = vpop.f32.mrb[0].mxu0
      %3363 = vmatprep.mubr.f32.mxu0 0.0
      %3364 = vmatmul.mubr.f32.gmra.mrb[0].mxu0 %v3162
      %v3365 = vpop.f32.mrb[0].mxu0
      %v3366 = vadd.f32 %v2850, %v3365
      %v3367 = vpop.f32.mrb[0].mxu0
      %3368 = vmatprep.mubr.f32.mxu0 0.0
      %3369 = vmatmul.mubr.f32.gmra.mrb[0].mxu0 %v3164
      %v3370 = vpop.f32.mrb[0].mxu0
      %v3371 = vadd.f32 %v2855, %v3370
      %v3372 = vpop.f32.mrb[0].mxu0
      %3373 = vmatprep.mubr.f32.mxu0 0.0
      %3374 = vmatmul.mubr.f32.gmra.mrb[0].mxu0 %v3166
      %v3375 = vpop.f32.mrb[0].mxu0
      %v3376 = vadd.f32 %v2860, %v3375
      %v3377 = vpop.f32.mrb[0].mxu0
      %3378 = vmatprep.mubr.f32.mxu0 0.0
      %3379 = vmatmul.mubr.f32.gmra.mrb[0].mxu0 %v3168
      %v3380 = vpop.f32.mrb[0].mxu0
      %v3381 = vadd.f32 %v2865, %v3380
      %v3382 = vpop.f32.mrb[0].mxu0
      %3383 = vmatprep.mubr.f32.mxu0 0.0
      %3384 = vmatmul.mubr.f32.gmra.mrb[0].mxu0 %v3170
      %v3385 = vpop.f32.mrb[0].mxu0
      %v3386 = vadd.f32 %v2870, %v3385
      %v3387 = vpop.f32.mrb[0].mxu0
      %3388 = vmatprep.mubr.f32.mxu0 0.0
      %3389 = vmatmul.mubr.f32.gmra.mrb[0].mxu0 %v3172
      %v3390 = vpop.f32.mrb[0].mxu0
      %v3391 = vadd.f32 %v2875, %v3390
      %v3392 = vpop.f32.mrb[0].mxu0
      %3393 = vmatprep.mubr.f32.mxu0 0.0
      %3394 = vmatmul.mubr.f32.gmra.mrb[0].mxu0 %v3174
      %v3395 = vpop.f32.mrb[0].mxu0
      %v3396 = vadd.f32 %v2880, %v3395
      %v3397 = vpop.f32.mrb[0].mxu0
      %3398 = vmatprep.mubr.f32.mxu0 0.0
      %3399 = vmatmul.mubr.f32.gmra.mrb[0].mxu0 %v3176
      %v3400 = vpop.f32.mrb[0].mxu0
      %v3401 = vadd.f32 %v2885, %v3400
      %v3402 = vpop.f32.mrb[0].mxu0
      %3403 = vmatprep.mubr.f32.mxu0 0.0
      %3404 = vmatmul.mubr.f32.gmra.mrb[0].mxu0 %v3178
      %v3405 = vpop.f32.mrb[0].mxu0
      %v3406 = vadd.f32 %v2890, %v3405
      %v3407 = vpop.f32.mrb[0].mxu0
      %3408 = vmatprep.mubr.f32.mxu0 0.0
      %3409 = vmatmul.mubr.f32.gmra.mrb[0].mxu0 %v3180
      %v3410 = vpop.f32.mrb[0].mxu0
      %v3411 = vadd.f32 %v2895, %v3410
      %v3412 = vpop.f32.mrb[0].mxu0
      %3413 = vmatprep.mubr.f32.mxu0 0.0
      %3414 = vmatmul.mubr.f32.gmra.mrb[0].mxu0 %v3182
      %v3415 = vpop.f32.mrb[0].mxu0
      %v3416 = vadd.f32 %v2900, %v3415
      %v3417 = vpop.f32.mrb[0].mxu0
      %3418 = vmatprep.mubr.f32.mxu0 0.0
      %3419 = vmatmul.mubr.f32.gmra.mrb[0].mxu0 %v3184
      %v3420 = vpop.f32.mrb[0].mxu0
      %v3421 = vadd.f32 %v2905, %v3420
      %v3422 = vpop.f32.mrb[0].mxu0
      %3423 = vmatprep.mubr.f32.mxu0 0.0
      %3424 = vmatmul.mubr.f32.gmra.mrb[0].mxu0 %v3186
      %v3425 = vpop.f32.mrb[0].mxu0
      %v3426 = vadd.f32 %v2910, %v3425
      %v3427 = vpop.f32.mrb[0].mxu0
      %3428 = vmatprep.mubr.f32.mxu0 0.0
      %3429 = vmatmul.mubr.f32.gmra.mrb[0].mxu0 %v3188
      %v3430 = vpop.f32.mrb[0].mxu0
      %v3431 = vadd.f32 %v2915, %v3430
      %v3432 = vpop.f32.mrb[0].mxu0
      %3433 = vmatprep.mubr.f32.mxu0 0.0
      %3434 = vmatmul.mubr.f32.gmra.mrb[0].mxu0 %v3190
      %v3435 = vpop.f32.mrb[0].mxu0
      %v3436 = vadd.f32 %v2920, %v3435
      %v3437 = vpop.f32.mrb[0].mxu0
      %3438 = vmatprep.mubr.f32.mxu0 0.0
      %3439 = vmatmul.mubr.f32.gmra.mrb[0].mxu0 %v3192
      %v3440 = vpop.f32.mrb[0].mxu0
      %v3441 = vadd.f32 %v2925, %v3440
      %v3442 = vpop.f32.mrb[0].mxu0
      %3443 = vmatprep.mubr.f32.mxu0 0.0
      %3444 = vmatmul.mubr.f32.gmra.mrb[0].mxu0 %v3194
      %v3445 = vpop.f32.mrb[0].mxu0
      %v3446 = vadd.f32 %v2930, %v3445
      %v3447 = vpop.f32.mrb[0].mxu0
      %3448 = vmatprep.mubr.f32.mxu0 0.0
      %3449 = vmatmul.mubr.f32.gmra.mrb[0].mxu0 %v3196
      %v3450 = vpop.f32.mrb[0].mxu0
      %v3451 = vadd.f32 %v2935, %v3450
      %v3452 = vpop.f32.mrb[0].mxu0
      %3453 = vmatprep.mubr.f32.mxu0 0.0
      %3454 = vmatmul.mubr.f32.gmra.mrb[0].mxu0 %v3198
      %v3455 = vpop.f32.mrb[0].mxu0
      %v3456 = vadd.f32 %v2940, %v3455
      %v3457 = vpop.f32.mrb[0].mxu0
      %3458 = vmatprep.mubr.f32.mxu0 0.0
      %3459 = vmatmul.mubr.f32.gmra.mrb[0].mxu0 %v3200
      %v3460 = vpop.f32.mrb[0].mxu0
      %v3461 = vadd.f32 %v2945, %v3460
      %v3462 = vpop.f32.mrb[0].mxu0
      %3463 = vmatprep.mubr.f32.mxu0 0.0
      %3464 = vmatmul.mubr.f32.gmra.mrb[0].mxu0 %v3202
      %v3465 = vpop.f32.mrb[0].mxu0
      %v3466 = vadd.f32 %v2950, %v3465
      %v3467 = vpop.f32.mrb[0].mxu0
      %3468 = vmatprep.mubr.f32.mxu0 0.0
      %3469 = vmatmul.mubr.f32.gmra.mrb[0].mxu0 %v3204
      %v3470 = vpop.f32.mrb[0].mxu0
      %v3471 = vadd.f32 %v2955, %v3470
      %v3472 = vpop.f32.mrb[0].mxu0
      %3473 = vmatprep.mubr.f32.mxu0 0.0
      %3474 = vmatmul.mubr.f32.gmra.mrb[0].mxu0 %v3206
      %v3475 = vpop.f32.mrb[0].mxu0
      %v3476 = vadd.f32 %v2960, %v3475
      %v3477 = vpop.f32.mrb[0].mxu0
      %3478 = vmatprep.mubr.f32.mxu0 0.0
      %3479 = vmatmul.mubr.f32.gmra.mrb[0].mxu0 %v3208
      %v3480 = vpop.f32.mrb[0].mxu0
      %v3481 = vadd.f32 %v2965, %v3480
      %v3482 = vpop.f32.mrb[0].mxu0
      %3483 = vmatprep.mubr.f32.mxu0 0.0
      %3484 = vmatmul.mubr.f32.gmra.mrb[0].mxu0 %v3210
      %v3485 = vpop.f32.mrb[0].mxu0
      %v3486 = vadd.f32 %v2970, %v3485
      %v3487 = vpop.f32.mrb[0].mxu0
      %3488 = vmatprep.mubr.f32.mxu0 0.0
      %3489 = vmatmul.mubr.f32.gmra.mrb[0].mxu0 %v3212
      %v3490 = vpop.f32.mrb[0].mxu0
      %v3491 = vadd.f32 %v2975, %v3490
      %v3492 = vpop.f32.mrb[0].mxu0
      %3493 = vmatprep.mubr.f32.mxu0 0.0
      %3494 = vmatmul.mubr.f32.gmra.mrb[0].mxu0 %v3214
      %v3495 = vpop.f32.mrb[0].mxu0
      %v3496 = vadd.f32 %v2980, %v3495
      %v3497 = vpop.f32.mrb[0].mxu0
      %3498 = vmatprep.mubr.f32.mxu0 0.0
      %3499 = vmatmul.mubr.f32.gmra.mrb[0].mxu0 %v3216
      %v3500 = vpop.f32.mrb[0].mxu0
      %v3501 = vadd.f32 %v2985, %v3500
      %v3502 = vpop.f32.mrb[0].mxu0
      %3503 = vmatprep.mubr.f32.mxu0 0.0
      %3504 = vmatmul.mubr.f32.gmra.mrb[0].mxu0 %v3218
      %v3505 = vpop.f32.mrb[0].mxu0
      %v3506 = vadd.f32 %v2990, %v3505
      %v3507 = vpop.f32.mrb[0].mxu0
      %3508 = vmatprep.mubr.f32.mxu0 0.0
      %3509 = vmatmul.mubr.f32.gmra.mrb[0].mxu0 %v3220
      %v3510 = vpop.f32.mrb[0].mxu0
      %v3511 = vadd.f32 %v2995, %v3510
      %v3512 = vpop.f32.mrb[0].mxu0
      %3513 = vmatprep.mubr.f32.mxu0 0.0
      %3514 = vmatmul.mubr.f32.gmra.mrb[0].mxu0 %v3222
      %v3515 = vpop.f32.mrb[0].mxu0
      %v3516 = vadd.f32 %v3000, %v3515
      %v3517 = vpop.f32.mrb[0].mxu0
      %3518 = vmatprep.mubr.f32.mxu0 0.0
      %3519 = vmatmul.mubr.f32.gmra.mrb[0].mxu0 %v3224
      %v3520 = vpop.f32.mrb[0].mxu0
      %v3521 = vadd.f32 %v3005, %v3520
      %v3522 = vpop.f32.mrb[0].mxu0
      %3523 = vmatprep.mubr.f32.mxu0 0.0
      %3524 = vmatmul.mubr.f32.gmra.mrb[0].mxu0 %v3226
      %v3525 = vpop.f32.mrb[0].mxu0
      %v3526 = vadd.f32 %v3010, %v3525
      %v3527 = vpop.f32.mrb[0].mxu0
      %3528 = vmatprep.mubr.f32.mxu0 0.0
      %3529 = vmatmul.mubr.f32.gmra.mrb[0].mxu0 %v3228
      %v3530 = vpop.f32.mrb[0].mxu0
      %v3531 = vadd.f32 %v3015, %v3530
      %v3532 = vpop.f32.mrb[0].mxu0
      %3533 = vmatprep.mubr.f32.mxu0 0.0
      %3534 = vmatmul.mubr.f32.gmra.mrb[0].mxu0 %v3230
      %v3535 = vpop.f32.mrb[0].mxu0
      %v3536 = vadd.f32 %v3020, %v3535
      %v3537 = vpop.f32.mrb[0].mxu0
      %3538 = vmatprep.mubr.f32.mxu0 0.0
      %3539 = vmatmul.mubr.f32.gmra.mrb[0].mxu0 %v3232
      %v3540 = vpop.f32.mrb[0].mxu0
      %v3541 = vadd.f32 %v3025, %v3540
      %v3542 = vpop.f32.mrb[0].mxu0
      %3543 = vmatprep.mubr.f32.mxu0 0.0
      %3544 = vmatmul.mubr.f32.gmra.mrb[0].mxu0 %v3234
      %v3545 = vpop.f32.mrb[0].mxu0
      %v3546 = vadd.f32 %v3030, %v3545
      %v3547 = vpop.f32.mrb[0].mxu0
      %3548 = vmatprep.mubr.f32.mxu0 0.0
      %3549 = vmatmul.mubr.f32.gmra.mrb[0].mxu0 %v3236
      %v3550 = vpop.f32.mrb[0].mxu0
      %v3551 = vadd.f32 %v3035, %v3550
      %v3552 = vpop.f32.mrb[0].mxu0
      %3553 = vmatprep.mubr.f32.mxu0 0.0
      %3554 = vmatmul.mubr.f32.gmra.mrb[0].mxu0 %v3238
      %v3555 = vpop.f32.mrb[0].mxu0
      %v3556 = vadd.f32 %v3040, %v3555
      %v3557 = vpop.f32.mrb[0].mxu0
      %3558 = vmatprep.mubr.f32.mxu0 0.0
      %3559 = vmatmul.mubr.f32.gmra.mrb[0].mxu0 %v3240
      %v3560 = vpop.f32.mrb[0].mxu0
      %v3561 = vadd.f32 %v3045, %v3560
      %v3562 = vpop.f32.mrb[0].mxu0
      %3563 = vmatprep.mubr.f32.mxu0 0.0
      %3564 = vmatmul.mubr.f32.gmra.mrb[0].mxu0 %v3242
      %v3565 = vpop.f32.mrb[0].mxu0
      %v3566 = vadd.f32 %v3050, %v3565
      %v3567 = vpop.f32.mrb[0].mxu0
      %3568 = vmatprep.mubr.f32.mxu0 0.0
      %3569 = vmatmul.mubr.f32.gmra.mrb[0].mxu0 %v3244
      %v3570 = vpop.f32.mrb[0].mxu0
      %v3571 = vadd.f32 %v3055, %v3570
      %v3572 = vpop.f32.mrb[0].mxu0
      %3573 = vmatprep.mubr.f32.mxu0 0.0
      %3574 = vmatmul.mubr.f32.gmra.mrb[0].mxu0 %v3246
      %v3575 = vpop.f32.mrb[0].mxu0
      %v3576 = vadd.f32 %v3060, %v3575
      %v3577 = vpop.f32.mrb[0].mxu0
      %3578 = vmatprep.mubr.f32.mxu0 0.0
      %3579 = vmatmul.mubr.f32.gmra.mrb[0].mxu0 %v3248
      %v3580 = vpop.f32.mrb[0].mxu0
      %v3581 = vadd.f32 %v3065, %v3580
      %v3582 = vpop.f32.mrb[0].mxu0
      %3583 = vmatprep.mubr.f32.mxu0 0.0
      %3584 = vmatmul.mubr.f32.gmra.mrb[0].mxu0 %v3250
      %v3585 = vpop.f32.mrb[0].mxu0
      %v3586 = vadd.f32 %v3070, %v3585
      %v3587 = vpop.f32.mrb[0].mxu0
      %3588 = vmatprep.mubr.f32.mxu0 0.0
      %3589 = vmatmul.mubr.f32.gmra.mrb[0].mxu0 %v3252
      %v3590 = vpop.f32.mrb[0].mxu0
      %v3591 = vadd.f32 %v3075, %v3590
      %v3592 = vpop.f32.mrb[0].mxu0
      %3593 = vmatprep.mubr.f32.mxu0 0.0
      %3594 = vmatmul.mubr.f32.gmra.mrb[0].mxu0 %v3254
      %v3595 = vpop.f32.mrb[0].mxu0
      %v3596 = vadd.f32 %v3080, %v3595
      %v3597 = vpop.f32.mrb[0].mxu0
      %3598 = vmatprep.mubr.f32.mxu0 0.0
      %3599 = vmatmul.mubr.f32.gmra.mrb[0].mxu0 %v3256
      %v3600 = vpop.f32.mrb[0].mxu0
      %v3601 = vadd.f32 %v3085, %v3600
      %v3602 = vpop.f32.mrb[0].mxu0
      %3603 = vmatprep.mubr.f32.mxu0 0.0
      %3604 = vmatmul.mubr.f32.gmra.mrb[0].mxu0 %v3258
      %v3605 = vpop.f32.mrb[0].mxu0
      %v3606 = vadd.f32 %v3090, %v3605
      %v3607 = vpop.f32.mrb[0].mxu0
      %3608 = vmatprep.mubr.f32.mxu0 0.0
      %3609 = vmatmul.mubr.f32.gmra.mrb[0].mxu0 %v3260
      %v3610 = vpop.f32.mrb[0].mxu0
      %v3611 = vadd.f32 %v3095, %v3610
      %v3612 = vpop.f32.mrb[0].mxu0
      %3613 = vmatprep.mubr.f32.mxu0 0.0
      %3614 = vmatmul.mubr.f32.gmra.mrb[0].mxu0 %v3262
      %v3615 = vpop.f32.mrb[0].mxu0
      %v3616 = vadd.f32 %v3100, %v3615
      %v3617 = vpop.f32.mrb[0].mxu0
      %3618 = vmatprep.mubr.f32.mxu0 0.0
      %3619 = vmatmul.mubr.f32.gmra.mrb[0].mxu0 %v3264
      %v3620 = vpop.f32.mrb[0].mxu0
      %v3621 = vadd.f32 %v3105, %v3620
      %v3622 = vpop.f32.mrb[0].mxu0
      %3623 = vmatprep.mubr.f32.mxu0 0.0
      %3624 = vmatmul.mubr.f32.gmra.mrb[0].mxu0 %v3266
      %v3625 = vpop.f32.mrb[0].mxu0
      %v3626 = vadd.f32 %v3110, %v3625
      %v3627 = vpop.f32.mrb[0].mxu0
      %3628 = vmatprep.mubr.f32.mxu0 0.0
      %3629 = vmatmul.mubr.f32.gmra.mrb[0].mxu0 %v3268
      %v3630 = vpop.f32.mrb[0].mxu0
      %v3631 = vadd.f32 %v3115, %v3630
      %v3632 = vpop.f32.mrb[0].mxu0
      %3633 = vmatprep.mubr.f32.mxu0 0.0
      %3634 = vmatmul.mubr.f32.gmra.mrb[0].mxu0 %v3270
      %v3635 = vpop.f32.mrb[0].mxu0
      %v3636 = vadd.f32 %v3120, %v3635
      %v3637 = vpop.f32.mrb[0].mxu0
      %3638 = vmatprep.mubr.f32.mxu0 0.0
      %3639 = vmatmul.mubr.f32.gmra.mrb[0].mxu0 %v3272
      %v3640 = vpop.f32.mrb[0].mxu0
      %v3641 = vadd.f32 %v3125, %v3640
      %v3642 = vpop.f32.mrb[0].mxu0
      %3643 = vmatprep.mubr.f32.mxu0 0.0
      %3644 = vmatmul.mubr.f32.gmra.mrb[0].mxu0 %v3274
      %v3645 = vpop.f32.mrb[0].mxu0
      %v3646 = vadd.f32 %v3130, %v3645
      %v3647 = vpop.f32.mrb[0].mxu0
      %3648 = vmatprep.mubr.f32.mxu0 0.0
      %3649 = vmatmul.mubr.f32.gmra.mrb[0].mxu0 %v3276
      %v3650 = vpop.f32.mrb[0].mxu0
      %v3651 = vadd.f32 %v3135, %v3650
      %v3652 = vpop.f32.mrb[0].mxu0
      %3653 = vmatprep.mubr.f32.mxu0 0.0
      %3654 = vmatmul.mubr.f32.gmra.mrb[0].mxu0 %v3278
      %v3655 = vpop.f32.mrb[0].mxu0
      %v3656 = vadd.f32 %v3140, %v3655
      %v3657 = vpop.f32.mrb[0].mxu0
      %3658 = vmatprep.mubr.f32.mxu0 0.0
      %3659 = vmatmul.mubr.f32.gmra.mrb[0].mxu0 %v3280
      %v3660 = vpop.f32.mrb[0].mxu0
      %v3661 = vadd.f32 %v3145, %v3660
      %v3662 = vpop.f32.mrb[0].mxu0
      %3663 = vmatprep.mubr.f32.mxu0 0.0
      %3664 = vmatmul.mubr.f32.gmra.mrb[0].mxu0 %v3282
      %v3665 = vpop.f32.mrb[0].mxu0
      %v3666 = vadd.f32 %v3150, %v3665
      %v3667 = vpop.f32.mrb[0].mxu0
      %3668 = vmatprep.mubr.f32.mxu0 0.0
      %3669 = vmatmul.mubr.f32.gmra.mrb[0].mxu0 %v3284
      %v3670 = vpop.f32.mrb[0].mxu0
      %v3671 = vadd.f32 %v3155, %v3670
      %v3672 = vpop.f32.mrb[0].mxu0
      %3673 = vdwg.mxu0
      %s3674 = scalar_lea.vmem %s3, 176
      %v3675 = vld [vmem:[%s3674] sm:$0xff]
      %v3676 = vld [vmem:[%s3674 + $0x8] sm:$0xff]
      %v3677 = vld [vmem:[%s3674 + $0x10] sm:$0xff]
      %v3678 = vld [vmem:[%s3674 + $0x18] sm:$0xff]
      %v3679 = vld [vmem:[%s3674 + $0x20] sm:$0xff]
      %v3680 = vld [vmem:[%s3674 + $0x28] sm:$0xff]
      %v3681 = vld [vmem:[%s3674 + $0x30] sm:$0xff]
      %v3682 = vld [vmem:[%s3674 + $0x38] sm:$0xff]
      %v3683 = vld [vmem:[%s3674 + $0x40] sm:$0xff]
      %v3684 = vld [vmem:[%s3674 + $0x48] sm:$0xff]
      %v3685 = vld [vmem:[%s3674 + $0x50] sm:$0xf]
      %v3686 = vrot.slane %v2362, 2
      %v3687 = vrot.slane %v2363, 2
      %v3688 = vsel %vm1586, %v3686, %v3687
      %v3689 = vrot.slane %v2364, 2
      %v3690 = vsel %vm1586, %v3687, %v3689
      %v3691 = vrot.slane %v2365, 2
      %v3692 = vsel %vm1586, %v3689, %v3691
      %v3693 = vrot.slane %v2366, 2
      %v3694 = vsel %vm1586, %v3691, %v3693
      %v3695 = vrot.slane %v2367, 2
      %v3696 = vsel %vm1586, %v3693, %v3695
      %v3697 = vrot.slane %v2368, 2
      %v3698 = vsel %vm1586, %v3695, %v3697
      %v3699 = vrot.slane %v2369, 2
      %v3700 = vsel %vm1586, %v3697, %v3699
      %v3701 = vrot.slane %v2370, 2
      %v3702 = vsel %vm1586, %v3699, %v3701
      %v3703 = vrot.slane %v2371, 2
      %v3704 = vsel %vm1586, %v3701, %v3703
      %v3705 = vrot.slane %v2372, 2
      %v3706 = vsel %vm1586, %v3703, %v3705
      %v3707 = vrot.slane %v2373, 2
      %v3708 = vsel %vm1586, %v3705, %v3707
      %v3709 = vrot.slane %v2374, 2
      %v3710 = vsel %vm1586, %v3707, %v3709
      %v3711 = vrot.slane %v2375, 2
      %v3712 = vsel %vm1586, %v3709, %v3711
      %v3713 = vrot.slane %v2376, 2
      %v3714 = vsel %vm1586, %v3711, %v3713
      %v3715 = vrot.slane %v2377, 2
      %v3716 = vsel %vm1586, %v3713, %v3715
      %v3717 = vrot.slane %v2378, 2
      %v3718 = vsel %vm1586, %v3715, %v3717
      %v3719 = vrot.slane %v2379, 2
      %v3720 = vsel %vm1586, %v3717, %v3719
      %v3721 = vrot.slane %v2380, 2
      %v3722 = vsel %vm1586, %v3719, %v3721
      %v3723 = vrot.slane %v2381, 2
      %v3724 = vsel %vm1586, %v3721, %v3723
      %v3725 = vrot.slane %v2382, 2
      %v3726 = vsel %vm1586, %v3723, %v3725
      %v3727 = vrot.slane %v2383, 2
      %v3728 = vsel %vm1586, %v3725, %v3727
      %v3729 = vrot.slane %v2384, 2
      %v3730 = vsel %vm1586, %v3727, %v3729
      %v3731 = vrot.slane %v2385, 2
      %v3732 = vsel %vm1586, %v3729, %v3731
      %v3733 = vrot.slane %v2386, 2
      %v3734 = vsel %vm1586, %v3731, %v3733
      %v3735 = vrot.slane %v2387, 2
      %v3736 = vsel %vm1586, %v3733, %v3735
      %v3737 = vrot.slane %v2388, 2
      %v3738 = vsel %vm1586, %v3735, %v3737
      %v3739 = vrot.slane %v2389, 2
      %v3740 = vsel %vm1586, %v3737, %v3739
      %v3741 = vrot.slane %v2390, 2
      %v3742 = vsel %vm1586, %v3739, %v3741
      %v3743 = vrot.slane %v2391, 2
      %v3744 = vsel %vm1586, %v3741, %v3743
      %v3745 = vrot.slane %v2392, 2
      %v3746 = vsel %vm1586, %v3743, %v3745
      %v3747 = vrot.slane %v2393, 2
      %v3748 = vsel %vm1586, %v3745, %v3747
      %v3749 = vrot.slane %v2394, 2
      %v3750 = vsel %vm1586, %v3747, %v3749
      %v3751 = vrot.slane %v2395, 2
      %v3752 = vsel %vm1586, %v3749, %v3751
      %v3753 = vrot.slane %v2396, 2
      %v3754 = vsel %vm1586, %v3751, %v3753
      %v3755 = vrot.slane %v2397, 2
      %v3756 = vsel %vm1586, %v3753, %v3755
      %v3757 = vrot.slane %v2398, 2
      %v3758 = vsel %vm1586, %v3755, %v3757
      %v3759 = vrot.slane %v2399, 2
      %v3760 = vsel %vm1586, %v3757, %v3759
      %v3761 = vrot.slane %v2400, 2
      %v3762 = vsel %vm1586, %v3759, %v3761
      %v3763 = vrot.slane %v2401, 2
      %v3764 = vsel %vm1586, %v3761, %v3763
      %v3765 = vrot.slane %v2402, 2
      %v3766 = vsel %vm1586, %v3763, %v3765
      %v3767 = vrot.slane %v2403, 2
      %v3768 = vsel %vm1586, %v3765, %v3767
      %v3769 = vrot.slane %v2404, 2
      %v3770 = vsel %vm1586, %v3767, %v3769
      %v3771 = vrot.slane %v2405, 2
      %v3772 = vsel %vm1586, %v3769, %v3771
      %v3773 = vrot.slane %v2406, 2
      %v3774 = vsel %vm1586, %v3771, %v3773
      %v3775 = vrot.slane %v2407, 2
      %v3776 = vsel %vm1586, %v3773, %v3775
      %v3777 = vrot.slane %v2408, 2
      %v3778 = vsel %vm1586, %v3775, %v3777
      %v3779 = vrot.slane %v2409, 2
      %v3780 = vsel %vm1586, %v3777, %v3779
      %v3781 = vrot.slane %v2410, 2
      %v3782 = vsel %vm1586, %v3779, %v3781
      %v3783 = vrot.slane %v2411, 2
      %v3784 = vsel %vm1586, %v3781, %v3783
      %v3785 = vrot.slane %v2412, 2
      %v3786 = vsel %vm1586, %v3783, %v3785
      %v3787 = vrot.slane %v2413, 2
      %v3788 = vsel %vm1586, %v3785, %v3787
      %v3789 = vrot.slane %v2414, 2
      %v3790 = vsel %vm1586, %v3787, %v3789
      %v3791 = vrot.slane %v2415, 2
      %v3792 = vsel %vm1586, %v3789, %v3791
      %v3793 = vrot.slane %v2416, 2
      %v3794 = vsel %vm1586, %v3791, %v3793
      %v3795 = vrot.slane %v2417, 2
      %v3796 = vsel %vm1586, %v3793, %v3795
      %v3797 = vrot.slane %v2418, 2
      %v3798 = vsel %vm1586, %v3795, %v3797
      %v3799 = vrot.slane %v2419, 2
      %v3800 = vsel %vm1586, %v3797, %v3799
      %v3801 = vrot.slane %v2420, 2
      %v3802 = vsel %vm1586, %v3799, %v3801
      %v3803 = vrot.slane %v2421, 2
      %v3804 = vsel %vm1586, %v3801, %v3803
      %v3805 = vrot.slane %v2422, 2
      %v3806 = vsel %vm1586, %v3803, %v3805
      %v3807 = vrot.slane %v2423, 2
      %v3808 = vsel %vm1586, %v3805, %v3807
      %v3809 = vrot.slane %v2424, 2
      %v3810 = vsel %vm1586, %v3807, %v3809
      %v3811 = vrot.slane %v2425, 2
      %v3812 = vsel %vm1586, %v3809, %v3811
      %v3813 = vsel %vm2640, %v3688, 0
      %v3815 = vsel %vm2640, %v3690, 0
      %v3817 = vsel %vm2640, %v3692, 0
      %v3819 = vsel %vm2640, %v3694, 0
      %v3821 = vsel %vm2640, %v3696, 0
      %v3823 = vsel %vm2640, %v3698, 0
      %v3825 = vsel %vm2640, %v3700, 0
      %v3827 = vsel %vm2640, %v3702, 0
      %v3829 = vsel %vm2640, %v3704, 0
      %v3831 = vsel %vm2640, %v3706, 0
      %v3833 = vsel %vm2640, %v3708, 0
      %v3835 = vsel %vm2640, %v3710, 0
      %v3837 = vsel %vm2640, %v3712, 0
      %v3839 = vsel %vm2640, %v3714, 0
      %v3841 = vsel %vm2640, %v3716, 0
      %v3843 = vsel %vm2640, %v3718, 0
      %v3845 = vsel %vm2640, %v3720, 0
      %v3847 = vsel %vm2640, %v3722, 0
      %v3849 = vsel %vm2640, %v3724, 0
      %v3851 = vsel %vm2640, %v3726, 0
      %v3853 = vsel %vm2640, %v3728, 0
      %v3855 = vsel %vm2640, %v3730, 0
      %v3857 = vsel %vm2640, %v3732, 0
      %v3859 = vsel %vm2640, %v3734, 0
      %v3861 = vsel %vm2640, %v3736, 0
      %v3863 = vsel %vm2640, %v3738, 0
      %v3865 = vsel %vm2640, %v3740, 0
      %v3867 = vsel %vm2640, %v3742, 0
      %v3869 = vsel %vm2640, %v3744, 0
      %v3871 = vsel %vm2640, %v3746, 0
      %v3873 = vsel %vm2640, %v3748, 0
      %v3875 = vsel %vm2640, %v3750, 0
      %v3877 = vsel %vm2640, %v3752, 0
      %v3879 = vsel %vm2640, %v3754, 0
      %v3881 = vsel %vm2640, %v3756, 0
      %v3883 = vsel %vm2640, %v3758, 0
      %v3885 = vsel %vm2640, %v3760, 0
      %v3887 = vsel %vm2640, %v3762, 0
      %v3889 = vsel %vm2640, %v3764, 0
      %v3891 = vsel %vm2640, %v3766, 0
      %v3893 = vsel %vm2640, %v3768, 0
      %v3895 = vsel %vm2640, %v3770, 0
      %v3897 = vsel %vm2640, %v3772, 0
      %v3899 = vsel %vm2640, %v3774, 0
      %v3901 = vsel %vm2640, %v3776, 0
      %v3903 = vsel %vm2640, %v3778, 0
      %v3905 = vsel %vm2640, %v3780, 0
      %v3907 = vsel %vm2640, %v3782, 0
      %v3909 = vsel %vm2640, %v3784, 0
      %v3911 = vsel %vm2640, %v3786, 0
      %v3913 = vsel %vm2640, %v3788, 0
      %v3915 = vsel %vm2640, %v3790, 0
      %v3917 = vsel %vm2640, %v3792, 0
      %v3919 = vsel %vm2640, %v3794, 0
      %v3921 = vsel %vm2640, %v3796, 0
      %v3923 = vsel %vm2640, %v3798, 0
      %v3925 = vsel %vm2640, %v3800, 0
      %v3927 = vsel %vm2640, %v3802, 0
      %v3929 = vsel %vm2640, %v3804, 0
      %v3931 = vsel %vm2640, %v3806, 0
      %v3933 = vsel %vm2640, %v3808, 0
      %v3935 = vsel %vm2640, %v3810, 0
      %v3937 = vsel %vm2640, %v3812, 0
      %v3939 = vsel %vm2640, %v3811, 0
      %v3942 = vsel %vm2769, %v3685, 0
      %3944 = vmatprep.subr.mxu0 0.0
      %3945 = vmatpush1.msra.mxu0 %v3675
      %3946 = vmatprep.subr.mxu0 0.0
      %3947 = vmatpush1.msra.mxu0 %v3676
      %3948 = vmatprep.subr.mxu0 0.0
      %3949 = vmatpush1.msra.mxu0 %v3677
      %3950 = vmatprep.subr.mxu0 0.0
      %3951 = vmatpush1.msra.mxu0 %v3678
      %3952 = vmatprep.subr.mxu0 0.0
      %3953 = vmatpush1.msra.mxu0 %v3679
      %3954 = vmatprep.subr.mxu0 0.0
      %3955 = vmatpush1.msra.mxu0 %v3680
      %3956 = vmatprep.subr.mxu0 0.0
      %3957 = vmatpush1.msra.mxu0 %v3681
      %3958 = vmatprep.subr.mxu0 0.0
      %3959 = vmatpush1.msra.mxu0 %v3682
      %3960 = vmatprep.subr.mxu0 0.0
      %3961 = vmatpush1.msra.mxu0 %v3683
      %3962 = vmatprep.subr.mxu0 0.0
      %3963 = vmatpush1.msra.mxu0 %v3684
      %3964 = vmatprep.subr.mxu0 0.0
      %3965 = vmatpush1.msra.mxu0 %v3942
      %3966 = vmatprep.subr.mxu0 0.0
      %3967 = vmatpush1.msra.mxu0 0.0
      %3968 = vmatprep.subr.mxu0 0.0
      %3969 = vmatpush1.msra.mxu0 0.0
      %3970 = vmatprep.subr.mxu0 0.0
      %3971 = vmatpush1.msra.mxu0 0.0
      %3972 = vmatprep.subr.mxu0 0.0
      %3973 = vmatpush1.msra.mxu0 0.0
      %3974 = vmatprep.subr.mxu0 0.0
      %3975 = vmatpush1.msra.mxu0 0.0
      %3976 = vmatprep.subr.mxu0 0.0
      %3977 = vmatpush1.msra.mxu0 0.0
      %3978 = vmatprep.subr.mxu0 0.0
      %3979 = vmatpush1.msra.mxu0 0.0
      %3980 = vmatprep.subr.mxu0 0.0
      %3981 = vmatpush1.msra.mxu0 0.0
      %3982 = vmatprep.subr.mxu0 0.0
      %3983 = vmatpush1.msra.mxu0 0.0
      %3984 = vmatprep.subr.mxu0 0.0
      %3985 = vmatpush1.msra.mxu0 0.0
      %3986 = vmatprep.subr.mxu0 0.0
      %3987 = vmatpush1.msra.mxu0 0.0
      %3988 = vmatprep.subr.mxu0 0.0
      %3989 = vmatpush1.msra.mxu0 0.0
      %3990 = vmatprep.subr.mxu0 0.0
      %3991 = vmatpush1.msra.mxu0 0.0
      %3992 = vmatprep.subr.mxu0 0.0
      %3993 = vmatpush1.msra.mxu0 0.0
      %3994 = vmatprep.subr.mxu0 0.0
      %3995 = vmatpush1.msra.mxu0 0.0
      %3996 = vmatprep.subr.mxu0 0.0
      %3997 = vmatpush1.msra.mxu0 0.0
      %3998 = vmatprep.subr.mxu0 0.0
      %3999 = vmatpush1.msra.mxu0 0.0
      %4000 = vmatprep.subr.mxu0 0.0
      %4001 = vmatpush1.msra.mxu0 0.0
      %4002 = vmatprep.subr.mxu0 0.0
      %4003 = vmatpush1.msra.mxu0 0.0
      %4004 = vmatprep.subr.mxu0 0.0
      %4005 = vmatpush1.msra.mxu0 0.0
      %4006 = vmatprep.subr.mxu0 0.0
      %4007 = vmatpush1.msra.mxu0 0.0
      %4008 = vmatprep.mubr.f32.mxu0 0.0
      %4009 = vmatmul.mubr.f32.gmra.mrb[0].mxu0 %v3813
      %v4010 = vpop.f32.mrb[0].mxu0
      %v4011 = vadd.f32 0.0, %v4010
      %v4012 = vpop.f32.mrb[0].mxu0
      %4013 = vmatprep.mubr.f32.mxu0 0.0
      %4014 = vmatmul.mubr.f32.gmra.mrb[0].mxu0 %v3815
      %v4015 = vpop.f32.mrb[0].mxu0
      %v4016 = vadd.f32 0.0, %v4015
      %v4017 = vpop.f32.mrb[0].mxu0
      %4018 = vmatprep.mubr.f32.mxu0 0.0
      %4019 = vmatmul.mubr.f32.gmra.mrb[0].mxu0 %v3817
      %v4020 = vpop.f32.mrb[0].mxu0
      %v4021 = vadd.f32 0.0, %v4020
      %v4022 = vpop.f32.mrb[0].mxu0
      %4023 = vmatprep.mubr.f32.mxu0 0.0
      %4024 = vmatmul.mubr.f32.gmra.mrb[0].mxu0 %v3819
      %v4025 = vpop.f32.mrb[0].mxu0
      %v4026 = vadd.f32 0.0, %v4025
      %v4027 = vpop.f32.mrb[0].mxu0
      %4028 = vmatprep.mubr.f32.mxu0 0.0
      %4029 = vmatmul.mubr.f32.gmra.mrb[0].mxu0 %v3821
      %v4030 = vpop.f32.mrb[0].mxu0
      %v4031 = vadd.f32 0.0, %v4030
      %v4032 = vpop.f32.mrb[0].mxu0
      %4033 = vmatprep.mubr.f32.mxu0 0.0
      %4034 = vmatmul.mubr.f32.gmra.mrb[0].mxu0 %v3823
      %v4035 = vpop.f32.mrb[0].mxu0
      %v4036 = vadd.f32 0.0, %v4035
      %v4037 = vpop.f32.mrb[0].mxu0
      %4038 = vmatprep.mubr.f32.mxu0 0.0
      %4039 = vmatmul.mubr.f32.gmra.mrb[0].mxu0 %v3825
      %v4040 = vpop.f32.mrb[0].mxu0
      %v4041 = vadd.f32 0.0, %v4040
      %v4042 = vpop.f32.mrb[0].mxu0
      %4043 = vmatprep.mubr.f32.mxu0 0.0
      %4044 = vmatmul.mubr.f32.gmra.mrb[0].mxu0 %v3827
      %v4045 = vpop.f32.mrb[0].mxu0
      %v4046 = vadd.f32 0.0, %v4045
      %v4047 = vpop.f32.mrb[0].mxu0
      %4048 = vmatprep.mubr.f32.mxu0 0.0
      %4049 = vmatmul.mubr.f32.gmra.mrb[0].mxu0 %v3829
      %v4050 = vpop.f32.mrb[0].mxu0
      %v4051 = vadd.f32 0.0, %v4050
      %v4052 = vpop.f32.mrb[0].mxu0
      %4053 = vmatprep.mubr.f32.mxu0 0.0
      %4054 = vmatmul.mubr.f32.gmra.mrb[0].mxu0 %v3831
      %v4055 = vpop.f32.mrb[0].mxu0
      %v4056 = vadd.f32 0.0, %v4055
      %v4057 = vpop.f32.mrb[0].mxu0
      %4058 = vmatprep.mubr.f32.mxu0 0.0
      %4059 = vmatmul.mubr.f32.gmra.mrb[0].mxu0 %v3833
      %v4060 = vpop.f32.mrb[0].mxu0
      %v4061 = vadd.f32 0.0, %v4060
      %v4062 = vpop.f32.mrb[0].mxu0
      %4063 = vmatprep.mubr.f32.mxu0 0.0
      %4064 = vmatmul.mubr.f32.gmra.mrb[0].mxu0 %v3835
      %v4065 = vpop.f32.mrb[0].mxu0
      %v4066 = vadd.f32 0.0, %v4065
      %v4067 = vpop.f32.mrb[0].mxu0
      %4068 = vmatprep.mubr.f32.mxu0 0.0
      %4069 = vmatmul.mubr.f32.gmra.mrb[0].mxu0 %v3837
      %v4070 = vpop.f32.mrb[0].mxu0
      %v4071 = vadd.f32 0.0, %v4070
      %v4072 = vpop.f32.mrb[0].mxu0
      %4073 = vmatprep.mubr.f32.mxu0 0.0
      %4074 = vmatmul.mubr.f32.gmra.mrb[0].mxu0 %v3839
      %v4075 = vpop.f32.mrb[0].mxu0
      %v4076 = vadd.f32 0.0, %v4075
      %v4077 = vpop.f32.mrb[0].mxu0
      %4078 = vmatprep.mubr.f32.mxu0 0.0
      %4079 = vmatmul.mubr.f32.gmra.mrb[0].mxu0 %v3841
      %v4080 = vpop.f32.mrb[0].mxu0
      %v4081 = vadd.f32 0.0, %v4080
      %v4082 = vpop.f32.mrb[0].mxu0
      %4083 = vmatprep.mubr.f32.mxu0 0.0
      %4084 = vmatmul.mubr.f32.gmra.mrb[0].mxu0 %v3843
      %v4085 = vpop.f32.mrb[0].mxu0
      %v4086 = vadd.f32 0.0, %v4085
      %v4087 = vpop.f32.mrb[0].mxu0
      %4088 = vmatprep.mubr.f32.mxu0 0.0
      %4089 = vmatmul.mubr.f32.gmra.mrb[0].mxu0 %v3845
      %v4090 = vpop.f32.mrb[0].mxu0
      %v4091 = vadd.f32 0.0, %v4090
      %v4092 = vpop.f32.mrb[0].mxu0
      %4093 = vmatprep.mubr.f32.mxu0 0.0
      %4094 = vmatmul.mubr.f32.gmra.mrb[0].mxu0 %v3847
      %v4095 = vpop.f32.mrb[0].mxu0
      %v4096 = vadd.f32 0.0, %v4095
      %v4097 = vpop.f32.mrb[0].mxu0
      %4098 = vmatprep.mubr.f32.mxu0 0.0
      %4099 = vmatmul.mubr.f32.gmra.mrb[0].mxu0 %v3849
      %v4100 = vpop.f32.mrb[0].mxu0
      %v4101 = vadd.f32 0.0, %v4100
      %v4102 = vpop.f32.mrb[0].mxu0
      %4103 = vmatprep.mubr.f32.mxu0 0.0
      %4104 = vmatmul.mubr.f32.gmra.mrb[0].mxu0 %v3851
      %v4105 = vpop.f32.mrb[0].mxu0
      %v4106 = vadd.f32 0.0, %v4105
      %v4107 = vpop.f32.mrb[0].mxu0
      %4108 = vmatprep.mubr.f32.mxu0 0.0
      %4109 = vmatmul.mubr.f32.gmra.mrb[0].mxu0 %v3853
      %v4110 = vpop.f32.mrb[0].mxu0
      %v4111 = vadd.f32 0.0, %v4110
      %v4112 = vpop.f32.mrb[0].mxu0
      %4113 = vmatprep.mubr.f32.mxu0 0.0
      %4114 = vmatmul.mubr.f32.gmra.mrb[0].mxu0 %v3855
      %v4115 = vpop.f32.mrb[0].mxu0
      %v4116 = vadd.f32 0.0, %v4115
      %v4117 = vpop.f32.mrb[0].mxu0
      %4118 = vmatprep.mubr.f32.mxu0 0.0
      %4119 = vmatmul.mubr.f32.gmra.mrb[0].mxu0 %v3857
      %v4120 = vpop.f32.mrb[0].mxu0
      %v4121 = vadd.f32 0.0, %v4120
      %v4122 = vpop.f32.mrb[0].mxu0
      %4123 = vmatprep.mubr.f32.mxu0 0.0
      %4124 = vmatmul.mubr.f32.gmra.mrb[0].mxu0 %v3859
      %v4125 = vpop.f32.mrb[0].mxu0
      %v4126 = vadd.f32 0.0, %v4125
      %v4127 = vpop.f32.mrb[0].mxu0
      %4128 = vmatprep.mubr.f32.mxu0 0.0
      %4129 = vmatmul.mubr.f32.gmra.mrb[0].mxu0 %v3861
      %v4130 = vpop.f32.mrb[0].mxu0
      %v4131 = vadd.f32 0.0, %v4130
      %v4132 = vpop.f32.mrb[0].mxu0
      %4133 = vmatprep.mubr.f32.mxu0 0.0
      %4134 = vmatmul.mubr.f32.gmra.mrb[0].mxu0 %v3863
      %v4135 = vpop.f32.mrb[0].mxu0
      %v4136 = vadd.f32 0.0, %v4135
      %v4137 = vpop.f32.mrb[0].mxu0
      %4138 = vmatprep.mubr.f32.mxu0 0.0
      %4139 = vmatmul.mubr.f32.gmra.mrb[0].mxu0 %v3865
      %v4140 = vpop.f32.mrb[0].mxu0
      %v4141 = vadd.f32 0.0, %v4140
      %v4142 = vpop.f32.mrb[0].mxu0
      %4143 = vmatprep.mubr.f32.mxu0 0.0
      %4144 = vmatmul.mubr.f32.gmra.mrb[0].mxu0 %v3867
      %v4145 = vpop.f32.mrb[0].mxu0
      %v4146 = vadd.f32 0.0, %v4145
      %v4147 = vpop.f32.mrb[0].mxu0
      %4148 = vmatprep.mubr.f32.mxu0 0.0
      %4149 = vmatmul.mubr.f32.gmra.mrb[0].mxu0 %v3869
      %v4150 = vpop.f32.mrb[0].mxu0
      %v4151 = vadd.f32 0.0, %v4150
      %v4152 = vpop.f32.mrb[0].mxu0
      %4153 = vmatprep.mubr.f32.mxu0 0.0
      %4154 = vmatmul.mubr.f32.gmra.mrb[0].mxu0 %v3871
      %v4155 = vpop.f32.mrb[0].mxu0
      %v4156 = vadd.f32 0.0, %v4155
      %v4157 = vpop.f32.mrb[0].mxu0
      %4158 = vmatprep.mubr.f32.mxu0 0.0
      %4159 = vmatmul.mubr.f32.gmra.mrb[0].mxu0 %v3873
      %v4160 = vpop.f32.mrb[0].mxu0
      %v4161 = vadd.f32 0.0, %v4160
      %v4162 = vpop.f32.mrb[0].mxu0
      %4163 = vmatprep.mubr.f32.mxu0 0.0
      %4164 = vmatmul.mubr.f32.gmra.mrb[0].mxu0 %v3875
      %v4165 = vpop.f32.mrb[0].mxu0
      %v4166 = vadd.f32 0.0, %v4165
      %v4167 = vpop.f32.mrb[0].mxu0
      %4168 = vmatprep.mubr.f32.mxu0 0.0
      %4169 = vmatmul.mubr.f32.gmra.mrb[0].mxu0 %v3877
      %v4170 = vpop.f32.mrb[0].mxu0
      %v4171 = vadd.f32 0.0, %v4170
      %v4172 = vpop.f32.mrb[0].mxu0
      %4173 = vmatprep.mubr.f32.mxu0 0.0
      %4174 = vmatmul.mubr.f32.gmra.mrb[0].mxu0 %v3879
      %v4175 = vpop.f32.mrb[0].mxu0
      %v4176 = vadd.f32 0.0, %v4175
      %v4177 = vpop.f32.mrb[0].mxu0
      %4178 = vmatprep.mubr.f32.mxu0 0.0
      %4179 = vmatmul.mubr.f32.gmra.mrb[0].mxu0 %v3881
      %v4180 = vpop.f32.mrb[0].mxu0
      %v4181 = vadd.f32 0.0, %v4180
      %v4182 = vpop.f32.mrb[0].mxu0
      %4183 = vmatprep.mubr.f32.mxu0 0.0
      %4184 = vmatmul.mubr.f32.gmra.mrb[0].mxu0 %v3883
      %v4185 = vpop.f32.mrb[0].mxu0
      %v4186 = vadd.f32 0.0, %v4185
      %v4187 = vpop.f32.mrb[0].mxu0
      %4188 = vmatprep.mubr.f32.mxu0 0.0
      %4189 = vmatmul.mubr.f32.gmra.mrb[0].mxu0 %v3885
      %v4190 = vpop.f32.mrb[0].mxu0
      %v4191 = vadd.f32 0.0, %v4190
      %v4192 = vpop.f32.mrb[0].mxu0
      %4193 = vmatprep.mubr.f32.mxu0 0.0
      %4194 = vmatmul.mubr.f32.gmra.mrb[0].mxu0 %v3887
      %v4195 = vpop.f32.mrb[0].mxu0
      %v4196 = vadd.f32 0.0, %v4195
      %v4197 = vpop.f32.mrb[0].mxu0
      %4198 = vmatprep.mubr.f32.mxu0 0.0
      %4199 = vmatmul.mubr.f32.gmra.mrb[0].mxu0 %v3889
      %v4200 = vpop.f32.mrb[0].mxu0
      %v4201 = vadd.f32 0.0, %v4200
      %v4202 = vpop.f32.mrb[0].mxu0
      %4203 = vmatprep.mubr.f32.mxu0 0.0
      %4204 = vmatmul.mubr.f32.gmra.mrb[0].mxu0 %v3891
      %v4205 = vpop.f32.mrb[0].mxu0
      %v4206 = vadd.f32 0.0, %v4205
      %v4207 = vpop.f32.mrb[0].mxu0
      %4208 = vmatprep.mubr.f32.mxu0 0.0
      %4209 = vmatmul.mubr.f32.gmra.mrb[0].mxu0 %v3893
      %v4210 = vpop.f32.mrb[0].mxu0
      %v4211 = vadd.f32 0.0, %v4210
      %v4212 = vpop.f32.mrb[0].mxu0
      %4213 = vmatprep.mubr.f32.mxu0 0.0
      %4214 = vmatmul.mubr.f32.gmra.mrb[0].mxu0 %v3895
      %v4215 = vpop.f32.mrb[0].mxu0
      %v4216 = vadd.f32 0.0, %v4215
      %v4217 = vpop.f32.mrb[0].mxu0
      %4218 = vmatprep.mubr.f32.mxu0 0.0
      %4219 = vmatmul.mubr.f32.gmra.mrb[0].mxu0 %v3897
      %v4220 = vpop.f32.mrb[0].mxu0
      %v4221 = vadd.f32 0.0, %v4220
      %v4222 = vpop.f32.mrb[0].mxu0
      %4223 = vmatprep.mubr.f32.mxu0 0.0
      %4224 = vmatmul.mubr.f32.gmra.mrb[0].mxu0 %v3899
      %v4225 = vpop.f32.mrb[0].mxu0
      %v4226 = vadd.f32 0.0, %v4225
      %v4227 = vpop.f32.mrb[0].mxu0
      %4228 = vmatprep.mubr.f32.mxu0 0.0
      %4229 = vmatmul.mubr.f32.gmra.mrb[0].mxu0 %v3901
      %v4230 = vpop.f32.mrb[0].mxu0
      %v4231 = vadd.f32 0.0, %v4230
      %v4232 = vpop.f32.mrb[0].mxu0
      %4233 = vmatprep.mubr.f32.mxu0 0.0
      %4234 = vmatmul.mubr.f32.gmra.mrb[0].mxu0 %v3903
      %v4235 = vpop.f32.mrb[0].mxu0
      %v4236 = vadd.f32 0.0, %v4235
      %v4237 = vpop.f32.mrb[0].mxu0
      %4238 = vmatprep.mubr.f32.mxu0 0.0
      %4239 = vmatmul.mubr.f32.gmra.mrb[0].mxu0 %v3905
      %v4240 = vpop.f32.mrb[0].mxu0
      %v4241 = vadd.f32 0.0, %v4240
      %v4242 = vpop.f32.mrb[0].mxu0
      %4243 = vmatprep.mubr.f32.mxu0 0.0
      %4244 = vmatmul.mubr.f32.gmra.mrb[0].mxu0 %v3907
      %v4245 = vpop.f32.mrb[0].mxu0
      %v4246 = vadd.f32 0.0, %v4245
      %v4247 = vpop.f32.mrb[0].mxu0
      %4248 = vmatprep.mubr.f32.mxu0 0.0
      %4249 = vmatmul.mubr.f32.gmra.mrb[0].mxu0 %v3909
      %v4250 = vpop.f32.mrb[0].mxu0
      %v4251 = vadd.f32 0.0, %v4250
      %v4252 = vpop.f32.mrb[0].mxu0
      %4253 = vmatprep.mubr.f32.mxu0 0.0
      %4254 = vmatmul.mubr.f32.gmra.mrb[0].mxu0 %v3911
      %v4255 = vpop.f32.mrb[0].mxu0
      %v4256 = vadd.f32 0.0, %v4255
      %v4257 = vpop.f32.mrb[0].mxu0
      %4258 = vmatprep.mubr.f32.mxu0 0.0
      %4259 = vmatmul.mubr.f32.gmra.mrb[0].mxu0 %v3913
      %v4260 = vpop.f32.mrb[0].mxu0
      %v4261 = vadd.f32 0.0, %v4260
      %v4262 = vpop.f32.mrb[0].mxu0
      %4263 = vmatprep.mubr.f32.mxu0 0.0
      %4264 = vmatmul.mubr.f32.gmra.mrb[0].mxu0 %v3915
      %v4265 = vpop.f32.mrb[0].mxu0
      %v4266 = vadd.f32 0.0, %v4265
      %v4267 = vpop.f32.mrb[0].mxu0
      %4268 = vmatprep.mubr.f32.mxu0 0.0
      %4269 = vmatmul.mubr.f32.gmra.mrb[0].mxu0 %v3917
      %v4270 = vpop.f32.mrb[0].mxu0
      %v4271 = vadd.f32 0.0, %v4270
      %v4272 = vpop.f32.mrb[0].mxu0
      %4273 = vmatprep.mubr.f32.mxu0 0.0
      %4274 = vmatmul.mubr.f32.gmra.mrb[0].mxu0 %v3919
      %v4275 = vpop.f32.mrb[0].mxu0
      %v4276 = vadd.f32 0.0, %v4275
      %v4277 = vpop.f32.mrb[0].mxu0
      %4278 = vmatprep.mubr.f32.mxu0 0.0
      %4279 = vmatmul.mubr.f32.gmra.mrb[0].mxu0 %v3921
      %v4280 = vpop.f32.mrb[0].mxu0
      %v4281 = vadd.f32 0.0, %v4280
      %v4282 = vpop.f32.mrb[0].mxu0
      %4283 = vmatprep.mubr.f32.mxu0 0.0
      %4284 = vmatmul.mubr.f32.gmra.mrb[0].mxu0 %v3923
      %v4285 = vpop.f32.mrb[0].mxu0
      %v4286 = vadd.f32 0.0, %v4285
      %v4287 = vpop.f32.mrb[0].mxu0
      %4288 = vmatprep.mubr.f32.mxu0 0.0
      %4289 = vmatmul.mubr.f32.gmra.mrb[0].mxu0 %v3925
      %v4290 = vpop.f32.mrb[0].mxu0
      %v4291 = vadd.f32 0.0, %v4290
      %v4292 = vpop.f32.mrb[0].mxu0
      %4293 = vmatprep.mubr.f32.mxu0 0.0
      %4294 = vmatmul.mubr.f32.gmra.mrb[0].mxu0 %v3927
      %v4295 = vpop.f32.mrb[0].mxu0
      %v4296 = vadd.f32 0.0, %v4295
      %v4297 = vpop.f32.mrb[0].mxu0
      %4298 = vmatprep.mubr.f32.mxu0 0.0
      %4299 = vmatmul.mubr.f32.gmra.mrb[0].mxu0 %v3929
      %v4300 = vpop.f32.mrb[0].mxu0
      %v4301 = vadd.f32 0.0, %v4300
      %v4302 = vpop.f32.mrb[0].mxu0
      %4303 = vmatprep.mubr.f32.mxu0 0.0
      %4304 = vmatmul.mubr.f32.gmra.mrb[0].mxu0 %v3931
      %v4305 = vpop.f32.mrb[0].mxu0
      %v4306 = vadd.f32 0.0, %v4305
      %v4307 = vpop.f32.mrb[0].mxu0
      %4308 = vmatprep.mubr.f32.mxu0 0.0
      %4309 = vmatmul.mubr.f32.gmra.mrb[0].mxu0 %v3933
      %v4310 = vpop.f32.mrb[0].mxu0
      %v4311 = vadd.f32 0.0, %v4310
      %v4312 = vpop.f32.mrb[0].mxu0
      %4313 = vmatprep.mubr.f32.mxu0 0.0
      %4314 = vmatmul.mubr.f32.gmra.mrb[0].mxu0 %v3935
      %v4315 = vpop.f32.mrb[0].mxu0
      %v4316 = vadd.f32 0.0, %v4315
      %v4317 = vpop.f32.mrb[0].mxu0
      %4318 = vmatprep.mubr.f32.mxu0 0.0
      %4319 = vmatmul.mubr.f32.gmra.mrb[0].mxu0 %v3937
      %v4320 = vpop.f32.mrb[0].mxu0
      %v4321 = vadd.f32 0.0, %v4320
      %v4322 = vpop.f32.mrb[0].mxu0
      %4323 = vmatprep.mubr.f32.mxu0 0.0
      %4324 = vmatmul.mubr.f32.gmra.mrb[0].mxu0 %v3939
      %v4325 = vpop.f32.mrb[0].mxu0
      %v4326 = vadd.f32 0.0, %v4325
      %v4327 = vpop.f32.mrb[0].mxu0
      %4328 = vdwg.mxu0
      %v4329 = vadd.f32 %v3356, %v4011
      %v4330 = vadd.f32 %v3361, %v4016
      %v4331 = vadd.f32 %v3366, %v4021
      %v4332 = vadd.f32 %v3371, %v4026
      %v4333 = vadd.f32 %v3376, %v4031
      %v4334 = vadd.f32 %v3381, %v4036
      %v4335 = vadd.f32 %v3386, %v4041
      %v4336 = vadd.f32 %v3391, %v4046
      %v4337 = vadd.f32 %v3396, %v4051
      %v4338 = vadd.f32 %v3401, %v4056
      %v4339 = vadd.f32 %v3406, %v4061
      %v4340 = vadd.f32 %v3411, %v4066
      %v4341 = vadd.f32 %v3416, %v4071
      %v4342 = vadd.f32 %v3421, %v4076
      %v4343 = vadd.f32 %v3426, %v4081
      %v4344 = vadd.f32 %v3431, %v4086
      %v4345 = vadd.f32 %v3436, %v4091
      %v4346 = vadd.f32 %v3441, %v4096
      %v4347 = vadd.f32 %v3446, %v4101
      %v4348 = vadd.f32 %v3451, %v4106
      %v4349 = vadd.f32 %v3456, %v4111
      %v4350 = vadd.f32 %v3461, %v4116
      %v4351 = vadd.f32 %v3466, %v4121
      %v4352 = vadd.f32 %v3471, %v4126
      %v4353 = vadd.f32 %v3476, %v4131
      %v4354 = vadd.f32 %v3481, %v4136
      %v4355 = vadd.f32 %v3486, %v4141
      %v4356 = vadd.f32 %v3491, %v4146
      %v4357 = vadd.f32 %v3496, %v4151
      %v4358 = vadd.f32 %v3501, %v4156
      %v4359 = vadd.f32 %v3506, %v4161
      %v4360 = vadd.f32 %v3511, %v4166
      %v4361 = vadd.f32 %v3516, %v4171
      %v4362 = vadd.f32 %v3521, %v4176
      %v4363 = vadd.f32 %v3526, %v4181
      %v4364 = vadd.f32 %v3531, %v4186
      %v4365 = vadd.f32 %v3536, %v4191
      %v4366 = vadd.f32 %v3541, %v4196
      %v4367 = vadd.f32 %v3546, %v4201
      %v4368 = vadd.f32 %v3551, %v4206
      %v4369 = vadd.f32 %v3556, %v4211
      %v4370 = vadd.f32 %v3561, %v4216
      %v4371 = vadd.f32 %v3566, %v4221
      %v4372 = vadd.f32 %v3571, %v4226
      %v4373 = vadd.f32 %v3576, %v4231
      %v4374 = vadd.f32 %v3581, %v4236
      %v4375 = vadd.f32 %v3586, %v4241
      %v4376 = vadd.f32 %v3591, %v4246
      %v4377 = vadd.f32 %v3596, %v4251
      %v4378 = vadd.f32 %v3601, %v4256
      %v4379 = vadd.f32 %v3606, %v4261
      %v4380 = vadd.f32 %v3611, %v4266
      %v4381 = vadd.f32 %v3616, %v4271
      %v4382 = vadd.f32 %v3621, %v4276
      %v4383 = vadd.f32 %v3626, %v4281
      %v4384 = vadd.f32 %v3631, %v4286
      %v4385 = vadd.f32 %v3636, %v4291
      %v4386 = vadd.f32 %v3641, %v4296
      %v4387 = vadd.f32 %v3646, %v4301
      %v4388 = vadd.f32 %v3651, %v4306
      %v4389 = vadd.f32 %v3656, %v4311
      %v4390 = vadd.f32 %v3661, %v4316
      %v4391 = vadd.f32 %v3666, %v4321
      %v4392 = vadd.f32 %v3671, %v4326
      %v4393 = vld [vmem:[%s4] sm:$0x1]
      %v4395 = vlaneseq
      %v4396 = vshrl.u32 %v4395, 7
      %v4397 = vsub.s32 0, %v4396
      %v4398 = vrot.slane %v4393, %v4397
      %v4400 = vadd.f32 %v4329, %v4398
      %v4401 = vadd.f32 %v4330, %v4398
      %v4402 = vadd.f32 %v4331, %v4398
      %v4403 = vadd.f32 %v4332, %v4398
      %v4404 = vadd.f32 %v4333, %v4398
      %v4405 = vadd.f32 %v4334, %v4398
      %v4406 = vadd.f32 %v4335, %v4398
      %v4407 = vadd.f32 %v4336, %v4398
      %v4408 = vadd.f32 %v4337, %v4398
      %v4409 = vadd.f32 %v4338, %v4398
      %v4410 = vadd.f32 %v4339, %v4398
      %v4411 = vadd.f32 %v4340, %v4398
      %v4412 = vadd.f32 %v4341, %v4398
      %v4413 = vadd.f32 %v4342, %v4398
      %v4414 = vadd.f32 %v4343, %v4398
      %v4415 = vadd.f32 %v4344, %v4398
      %v4416 = vadd.f32 %v4345, %v4398
      %v4417 = vadd.f32 %v4346, %v4398
      %v4418 = vadd.f32 %v4347, %v4398
      %v4419 = vadd.f32 %v4348, %v4398
      %v4420 = vadd.f32 %v4349, %v4398
      %v4421 = vadd.f32 %v4350, %v4398
      %v4422 = vadd.f32 %v4351, %v4398
      %v4423 = vadd.f32 %v4352, %v4398
      %v4424 = vadd.f32 %v4353, %v4398
      %v4425 = vadd.f32 %v4354, %v4398
      %v4426 = vadd.f32 %v4355, %v4398
      %v4427 = vadd.f32 %v4356, %v4398
      %v4428 = vadd.f32 %v4357, %v4398
      %v4429 = vadd.f32 %v4358, %v4398
      %v4430 = vadd.f32 %v4359, %v4398
      %v4431 = vadd.f32 %v4360, %v4398
      %v4432 = vadd.f32 %v4361, %v4398
      %v4433 = vadd.f32 %v4362, %v4398
      %v4434 = vadd.f32 %v4363, %v4398
      %v4435 = vadd.f32 %v4364, %v4398
      %v4436 = vadd.f32 %v4365, %v4398
      %v4437 = vadd.f32 %v4366, %v4398
      %v4438 = vadd.f32 %v4367, %v4398
      %v4439 = vadd.f32 %v4368, %v4398
      %v4440 = vadd.f32 %v4369, %v4398
      %v4441 = vadd.f32 %v4370, %v4398
      %v4442 = vadd.f32 %v4371, %v4398
      %v4443 = vadd.f32 %v4372, %v4398
      %v4444 = vadd.f32 %v4373, %v4398
      %v4445 = vadd.f32 %v4374, %v4398
      %v4446 = vadd.f32 %v4375, %v4398
      %v4447 = vadd.f32 %v4376, %v4398
      %v4448 = vadd.f32 %v4377, %v4398
      %v4449 = vadd.f32 %v4378, %v4398
      %v4450 = vadd.f32 %v4379, %v4398
      %v4451 = vadd.f32 %v4380, %v4398
      %v4452 = vadd.f32 %v4381, %v4398
      %v4453 = vadd.f32 %v4382, %v4398
      %v4454 = vadd.f32 %v4383, %v4398
      %v4455 = vadd.f32 %v4384, %v4398
      %v4456 = vadd.f32 %v4385, %v4398
      %v4457 = vadd.f32 %v4386, %v4398
      %v4458 = vadd.f32 %v4387, %v4398
      %v4459 = vadd.f32 %v4388, %v4398
      %v4460 = vadd.f32 %v4389, %v4398
      %v4461 = vadd.f32 %v4390, %v4398
      %v4462 = vadd.f32 %v4391, %v4398
      %v4463 = vadd.f32 %v4392, %v4398
      %v4464 = vmax.f32 %v4400, 0.0
      %v4465 = vmax.f32 %v4401, 0.0
      %v4466 = vmax.f32 %v4402, 0.0
      %v4467 = vmax.f32 %v4403, 0.0
      %v4468 = vmax.f32 %v4404, 0.0
      %v4469 = vmax.f32 %v4405, 0.0
      %v4470 = vmax.f32 %v4406, 0.0
      %v4471 = vmax.f32 %v4407, 0.0
      %v4472 = vmax.f32 %v4408, 0.0
      %v4473 = vmax.f32 %v4409, 0.0
      %v4474 = vmax.f32 %v4410, 0.0
      %v4475 = vmax.f32 %v4411, 0.0
      %v4476 = vmax.f32 %v4412, 0.0
      %v4477 = vmax.f32 %v4413, 0.0
      %v4478 = vmax.f32 %v4414, 0.0
      %v4479 = vmax.f32 %v4415, 0.0
      %v4480 = vmax.f32 %v4416, 0.0
      %v4481 = vmax.f32 %v4417, 0.0
      %v4482 = vmax.f32 %v4418, 0.0
      %v4483 = vmax.f32 %v4419, 0.0
      %v4484 = vmax.f32 %v4420, 0.0
      %v4485 = vmax.f32 %v4421, 0.0
      %v4486 = vmax.f32 %v4422, 0.0
      %v4487 = vmax.f32 %v4423, 0.0
      %v4488 = vmax.f32 %v4424, 0.0
      %v4489 = vmax.f32 %v4425, 0.0
      %v4490 = vmax.f32 %v4426, 0.0
      %v4491 = vmax.f32 %v4427, 0.0
      %v4492 = vmax.f32 %v4428, 0.0
      %v4493 = vmax.f32 %v4429, 0.0
      %v4494 = vmax.f32 %v4430, 0.0
      %v4495 = vmax.f32 %v4431, 0.0
      %v4496 = vmax.f32 %v4432, 0.0
      %v4497 = vmax.f32 %v4433, 0.0
      %v4498 = vmax.f32 %v4434, 0.0
      %v4499 = vmax.f32 %v4435, 0.0
      %v4500 = vmax.f32 %v4436, 0.0
      %v4501 = vmax.f32 %v4437, 0.0
      %v4502 = vmax.f32 %v4438, 0.0
      %v4503 = vmax.f32 %v4439, 0.0
      %v4504 = vmax.f32 %v4440, 0.0
      %v4505 = vmax.f32 %v4441, 0.0
      %v4506 = vmax.f32 %v4442, 0.0
      %v4507 = vmax.f32 %v4443, 0.0
      %v4508 = vmax.f32 %v4444, 0.0
      %v4509 = vmax.f32 %v4445, 0.0
      %v4510 = vmax.f32 %v4446, 0.0
      %v4511 = vmax.f32 %v4447, 0.0
      %v4512 = vmax.f32 %v4448, 0.0
      %v4513 = vmax.f32 %v4449, 0.0
      %v4514 = vmax.f32 %v4450, 0.0
      %v4515 = vmax.f32 %v4451, 0.0
      %v4516 = vmax.f32 %v4452, 0.0
      %v4517 = vmax.f32 %v4453, 0.0
      %v4518 = vmax.f32 %v4454, 0.0
      %v4519 = vmax.f32 %v4455, 0.0
      %v4520 = vmax.f32 %v4456, 0.0
      %v4521 = vmax.f32 %v4457, 0.0
      %v4522 = vmax.f32 %v4458, 0.0
      %v4523 = vmax.f32 %v4459, 0.0
      %v4524 = vmax.f32 %v4460, 0.0
      %v4525 = vmax.f32 %v4461, 0.0
      %v4526 = vmax.f32 %v4462, 0.0
      %v4527 = vmax.f32 %v4463, 0.0
      %v4528 = vld [vmem:[%s5] sm:$0xff]
      %v4529 = vld [vmem:[%s5 + $0x8] sm:$0xff]
      %v4530 = vld [vmem:[%s5 + $0x10] sm:$0xff]
      %v4531 = vld [vmem:[%s5 + $0x18] sm:$0xff]
      %s4532 = scalar_lea.vmem %s5, 32
      %v4533 = vld [vmem:[%s4532] sm:$0xff]
      %v4534 = vld [vmem:[%s4532 + $0x8] sm:$0xff]
      %v4535 = vld [vmem:[%s4532 + $0x10] sm:$0xff]
      %v4536 = vld [vmem:[%s4532 + $0x18] sm:$0xff]
      %4601 = vrot.lane.b32.xlu0 %v4464, 127
      %v4602 = vpop.permute.xlu0 %4601
      %4603 = vrot.lane.b32.xlu0 %v4465, 127
      %v4604 = vpop.permute.xlu0 %4603
      %4605 = vrot.lane.b32.xlu0 %v4466, 127
      %v4606 = vpop.permute.xlu0 %4605
      %4607 = vrot.lane.b32.xlu0 %v4467, 127
      %v4608 = vpop.permute.xlu0 %4607
      %4609 = vrot.lane.b32.xlu0 %v4468, 127
      %v4610 = vpop.permute.xlu0 %4609
      %4611 = vrot.lane.b32.xlu0 %v4469, 127
      %v4612 = vpop.permute.xlu0 %4611
      %4613 = vrot.lane.b32.xlu0 %v4470, 127
      %v4614 = vpop.permute.xlu0 %4613
      %4615 = vrot.lane.b32.xlu0 %v4471, 127
      %v4616 = vpop.permute.xlu0 %4615
      %4617 = vrot.lane.b32.xlu0 %v4472, 127
      %v4618 = vpop.permute.xlu0 %4617
      %4619 = vrot.lane.b32.xlu0 %v4473, 127
      %v4620 = vpop.permute.xlu0 %4619
      %4621 = vrot.lane.b32.xlu0 %v4474, 127
      %v4622 = vpop.permute.xlu0 %4621
      %4623 = vrot.lane.b32.xlu0 %v4475, 127
      %v4624 = vpop.permute.xlu0 %4623
      %4625 = vrot.lane.b32.xlu0 %v4476, 127
      %v4626 = vpop.permute.xlu0 %4625
      %4627 = vrot.lane.b32.xlu0 %v4477, 127
      %v4628 = vpop.permute.xlu0 %4627
      %4629 = vrot.lane.b32.xlu0 %v4478, 127
      %v4630 = vpop.permute.xlu0 %4629
      %4631 = vrot.lane.b32.xlu0 %v4479, 127
      %v4632 = vpop.permute.xlu0 %4631
      %4633 = vrot.lane.b32.xlu0 %v4480, 127
      %v4634 = vpop.permute.xlu0 %4633
      %4635 = vrot.lane.b32.xlu0 %v4481, 127
      %v4636 = vpop.permute.xlu0 %4635
      %4637 = vrot.lane.b32.xlu0 %v4482, 127
      %v4638 = vpop.permute.xlu0 %4637
      %4639 = vrot.lane.b32.xlu0 %v4483, 127
      %v4640 = vpop.permute.xlu0 %4639
      %4641 = vrot.lane.b32.xlu0 %v4484, 127
      %v4642 = vpop.permute.xlu0 %4641
      %4643 = vrot.lane.b32.xlu0 %v4485, 127
      %v4644 = vpop.permute.xlu0 %4643
      %4645 = vrot.lane.b32.xlu0 %v4486, 127
      %v4646 = vpop.permute.xlu0 %4645
      %4647 = vrot.lane.b32.xlu0 %v4487, 127
      %v4648 = vpop.permute.xlu0 %4647
      %4649 = vrot.lane.b32.xlu0 %v4488, 127
      %v4650 = vpop.permute.xlu0 %4649
      %4651 = vrot.lane.b32.xlu0 %v4489, 127
      %v4652 = vpop.permute.xlu0 %4651
      %4653 = vrot.lane.b32.xlu0 %v4490, 127
      %v4654 = vpop.permute.xlu0 %4653
      %4655 = vrot.lane.b32.xlu0 %v4491, 127
      %v4656 = vpop.permute.xlu0 %4655
      %4657 = vrot.lane.b32.xlu0 %v4492, 127
      %v4658 = vpop.permute.xlu0 %4657
      %4659 = vrot.lane.b32.xlu0 %v4493, 127
      %v4660 = vpop.permute.xlu0 %4659
      %4661 = vrot.lane.b32.xlu0 %v4494, 127
      %v4662 = vpop.permute.xlu0 %4661
      %4663 = vrot.lane.b32.xlu0 %v4495, 127
      %v4664 = vpop.permute.xlu0 %4663
      %4665 = vrot.lane.b32.xlu0 %v4496, 127
      %v4666 = vpop.permute.xlu0 %4665
      %4667 = vrot.lane.b32.xlu0 %v4497, 127
      %v4668 = vpop.permute.xlu0 %4667
      %4669 = vrot.lane.b32.xlu0 %v4498, 127
      %v4670 = vpop.permute.xlu0 %4669
      %4671 = vrot.lane.b32.xlu0 %v4499, 127
      %v4672 = vpop.permute.xlu0 %4671
      %4673 = vrot.lane.b32.xlu0 %v4500, 127
      %v4674 = vpop.permute.xlu0 %4673
      %4675 = vrot.lane.b32.xlu0 %v4501, 127
      %v4676 = vpop.permute.xlu0 %4675
      %4677 = vrot.lane.b32.xlu0 %v4502, 127
      %v4678 = vpop.permute.xlu0 %4677
      %4679 = vrot.lane.b32.xlu0 %v4503, 127
      %v4680 = vpop.permute.xlu0 %4679
      %4681 = vrot.lane.b32.xlu0 %v4504, 127
      %v4682 = vpop.permute.xlu0 %4681
      %4683 = vrot.lane.b32.xlu0 %v4505, 127
      %v4684 = vpop.permute.xlu0 %4683
      %4685 = vrot.lane.b32.xlu0 %v4506, 127
      %v4686 = vpop.permute.xlu0 %4685
      %4687 = vrot.lane.b32.xlu0 %v4507, 127
      %v4688 = vpop.permute.xlu0 %4687
      %4689 = vrot.lane.b32.xlu0 %v4508, 127
      %v4690 = vpop.permute.xlu0 %4689
      %4691 = vrot.lane.b32.xlu0 %v4509, 127
      %v4692 = vpop.permute.xlu0 %4691
      %4693 = vrot.lane.b32.xlu0 %v4510, 127
      %v4694 = vpop.permute.xlu0 %4693
      %4695 = vrot.lane.b32.xlu0 %v4511, 127
      %v4696 = vpop.permute.xlu0 %4695
      %4697 = vrot.lane.b32.xlu0 %v4512, 127
      %v4698 = vpop.permute.xlu0 %4697
      %4699 = vrot.lane.b32.xlu0 %v4513, 127
      %v4700 = vpop.permute.xlu0 %4699
      %4701 = vrot.lane.b32.xlu0 %v4514, 127
      %v4702 = vpop.permute.xlu0 %4701
      %4703 = vrot.lane.b32.xlu0 %v4515, 127
      %v4704 = vpop.permute.xlu0 %4703
      %4705 = vrot.lane.b32.xlu0 %v4516, 127
      %v4706 = vpop.permute.xlu0 %4705
      %4707 = vrot.lane.b32.xlu0 %v4517, 127
      %v4708 = vpop.permute.xlu0 %4707
      %4709 = vrot.lane.b32.xlu0 %v4518, 127
      %v4710 = vpop.permute.xlu0 %4709
      %4711 = vrot.lane.b32.xlu0 %v4519, 127
      %v4712 = vpop.permute.xlu0 %4711
      %4713 = vrot.lane.b32.xlu0 %v4520, 127
      %v4714 = vpop.permute.xlu0 %4713
      %4715 = vrot.lane.b32.xlu0 %v4521, 127
      %v4716 = vpop.permute.xlu0 %4715
      %4717 = vrot.lane.b32.xlu0 %v4522, 127
      %v4718 = vpop.permute.xlu0 %4717
      %4719 = vrot.lane.b32.xlu0 %v4523, 127
      %v4720 = vpop.permute.xlu0 %4719
      %4721 = vrot.lane.b32.xlu0 %v4524, 127
      %v4722 = vpop.permute.xlu0 %4721
      %4723 = vrot.lane.b32.xlu0 %v4525, 127
      %v4724 = vpop.permute.xlu0 %4723
      %4725 = vrot.lane.b32.xlu0 %v4526, 127
      %v4726 = vpop.permute.xlu0 %4725
      %4727 = vrot.lane.b32.xlu0 %v4527, 127
      %v4728 = vpop.permute.xlu0 %4727
      %vm4792 = vcmask 1014784
      %v4794 = vsel %vm4792, %v4536, 0
      %v4796 = vsel %vm2769, %v4728, 0
      %4798 = vmatprep.subr.mxu0 0.0
      %4799 = vmatpush1.msra.mxu0 %v4602
      %4800 = vmatprep.subr.mxu0 0.0
      %4801 = vmatpush1.msra.mxu0 %v4604
      %4802 = vmatprep.subr.mxu0 0.0
      %4803 = vmatpush1.msra.mxu0 %v4606
      %4804 = vmatprep.subr.mxu0 0.0
      %4805 = vmatpush1.msra.mxu0 %v4608
      %4806 = vmatprep.subr.mxu0 0.0
      %4807 = vmatpush1.msra.mxu0 %v4610
      %4808 = vmatprep.subr.mxu0 0.0
      %4809 = vmatpush1.msra.mxu0 %v4612
      %4810 = vmatprep.subr.mxu0 0.0
      %4811 = vmatpush1.msra.mxu0 %v4614
      %4812 = vmatprep.subr.mxu0 0.0
      %4813 = vmatpush1.msra.mxu0 %v4616
      %4814 = vmatprep.subr.mxu0 0.0
      %4815 = vmatpush1.msra.mxu0 %v4618
      %4816 = vmatprep.subr.mxu0 0.0
      %4817 = vmatpush1.msra.mxu0 %v4620
      %4818 = vmatprep.subr.mxu0 0.0
      %4819 = vmatpush1.msra.mxu0 %v4622
      %4820 = vmatprep.subr.mxu0 0.0
      %4821 = vmatpush1.msra.mxu0 %v4624
      %4822 = vmatprep.subr.mxu0 0.0
      %4823 = vmatpush1.msra.mxu0 %v4626
      %4824 = vmatprep.subr.mxu0 0.0
      %4825 = vmatpush1.msra.mxu0 %v4628
      %4826 = vmatprep.subr.mxu0 0.0
      %4827 = vmatpush1.msra.mxu0 %v4630
      %4828 = vmatprep.subr.mxu0 0.0
      %4829 = vmatpush1.msra.mxu0 %v4632
      %4830 = vmatprep.subr.mxu0 0.0
      %4831 = vmatpush1.msra.mxu0 %v4634
      %4832 = vmatprep.subr.mxu0 0.0
      %4833 = vmatpush1.msra.mxu0 %v4636
      %4834 = vmatprep.subr.mxu0 0.0
      %4835 = vmatpush1.msra.mxu0 %v4638
      %4836 = vmatprep.subr.mxu0 0.0
      %4837 = vmatpush1.msra.mxu0 %v4640
      %4838 = vmatprep.subr.mxu0 0.0
      %4839 = vmatpush1.msra.mxu0 %v4642
      %4840 = vmatprep.subr.mxu0 0.0
      %4841 = vmatpush1.msra.mxu0 %v4644
      %4842 = vmatprep.subr.mxu0 0.0
      %4843 = vmatpush1.msra.mxu0 %v4646
      %4844 = vmatprep.subr.mxu0 0.0
      %4845 = vmatpush1.msra.mxu0 %v4648
      %4846 = vmatprep.subr.mxu0 0.0
      %4847 = vmatpush1.msra.mxu0 %v4650
      %4848 = vmatprep.subr.mxu0 0.0
      %4849 = vmatpush1.msra.mxu0 %v4652
      %4850 = vmatprep.subr.mxu0 0.0
      %4851 = vmatpush1.msra.mxu0 %v4654
      %4852 = vmatprep.subr.mxu0 0.0
      %4853 = vmatpush1.msra.mxu0 %v4656
      %4854 = vmatprep.subr.mxu0 0.0
      %4855 = vmatpush1.msra.mxu0 %v4658
      %4856 = vmatprep.subr.mxu0 0.0
      %4857 = vmatpush1.msra.mxu0 %v4660
      %4858 = vmatprep.subr.mxu0 0.0
      %4859 = vmatpush1.msra.mxu0 %v4662
      %4860 = vmatprep.subr.mxu0 0.0
      %4861 = vmatpush1.msra.mxu0 %v4664
      %4862 = vmatprep.mubr.f32.mxu0 %v4534
      %4863 = vmatmul.mubr.f32.gmra.mrb[0].mxu0 %v4533
      %v4864 = vpop.f32.mrb[0].mxu0
      %v4865 = vadd.f32 0.0, %v4864
      %v4866 = vpop.f32.mrb[0].mxu0
      %4867 = vdwg.mxu0
      %4868 = vmatprep.subr.mxu0 0.0
      %4869 = vmatpush1.msra.mxu0 %v4666
      %4870 = vmatprep.subr.mxu0 0.0
      %4871 = vmatpush1.msra.mxu0 %v4668
      %4872 = vmatprep.subr.mxu0 0.0
      %4873 = vmatpush1.msra.mxu0 %v4670
      %4874 = vmatprep.subr.mxu0 0.0
      %4875 = vmatpush1.msra.mxu0 %v4672
      %4876 = vmatprep.subr.mxu0 0.0
      %4877 = vmatpush1.msra.mxu0 %v4674
      %4878 = vmatprep.subr.mxu0 0.0
      %4879 = vmatpush1.msra.mxu0 %v4676
      %4880 = vmatprep.subr.mxu0 0.0
      %4881 = vmatpush1.msra.mxu0 %v4678
      %4882 = vmatprep.subr.mxu0 0.0
      %4883 = vmatpush1.msra.mxu0 %v4680
      %4884 = vmatprep.subr.mxu0 0.0
      %4885 = vmatpush1.msra.mxu0 %v4682
      %4886 = vmatprep.subr.mxu0 0.0
      %4887 = vmatpush1.msra.mxu0 %v4684
      %4888 = vmatprep.subr.mxu0 0.0
      %4889 = vmatpush1.msra.mxu0 %v4686
      %4890 = vmatprep.subr.mxu0 0.0
      %4891 = vmatpush1.msra.mxu0 %v4688
      %4892 = vmatprep.subr.mxu0 0.0
      %4893 = vmatpush1.msra.mxu0 %v4690
      %4894 = vmatprep.subr.mxu0 0.0
      %4895 = vmatpush1.msra.mxu0 %v4692
      %4896 = vmatprep.subr.mxu0 0.0
      %4897 = vmatpush1.msra.mxu0 %v4694
      %4898 = vmatprep.subr.mxu0 0.0
      %4899 = vmatpush1.msra.mxu0 %v4696
      %4900 = vmatprep.subr.mxu0 0.0
      %4901 = vmatpush1.msra.mxu0 %v4698
      %4902 = vmatprep.subr.mxu0 0.0
      %4903 = vmatpush1.msra.mxu0 %v4700
      %4904 = vmatprep.subr.mxu0 0.0
      %4905 = vmatpush1.msra.mxu0 %v4702
      %4906 = vmatprep.subr.mxu0 0.0
      %4907 = vmatpush1.msra.mxu0 %v4704
      %4908 = vmatprep.subr.mxu0 0.0
      %4909 = vmatpush1.msra.mxu0 %v4706
      %4910 = vmatprep.subr.mxu0 0.0
      %4911 = vmatpush1.msra.mxu0 %v4708
      %4912 = vmatprep.subr.mxu0 0.0
      %4913 = vmatpush1.msra.mxu0 %v4710
      %4914 = vmatprep.subr.mxu0 0.0
      %4915 = vmatpush1.msra.mxu0 %v4712
      %4916 = vmatprep.subr.mxu0 0.0
      %4917 = vmatpush1.msra.mxu0 %v4714
      %4918 = vmatprep.subr.mxu0 0.0
      %4919 = vmatpush1.msra.mxu0 %v4716
      %4920 = vmatprep.subr.mxu0 0.0
      %4921 = vmatpush1.msra.mxu0 %v4718
      %4922 = vmatprep.subr.mxu0 0.0
      %4923 = vmatpush1.msra.mxu0 %v4720
      %4924 = vmatprep.subr.mxu0 0.0
      %4925 = vmatpush1.msra.mxu0 %v4722
      %4926 = vmatprep.subr.mxu0 0.0
      %4927 = vmatpush1.msra.mxu0 %v4724
      %4928 = vmatprep.subr.mxu0 0.0
      %4929 = vmatpush1.msra.mxu0 %v4726
      %4930 = vmatprep.subr.mxu0 0.0
      %4931 = vmatpush1.msra.mxu0 %v4796
      %4932 = vmatprep.mubr.f32.mxu0 %v4794
      %4933 = vmatmul.mubr.f32.gmra.mrb[0].mxu0 %v4535
      %v4934 = vpop.f32.mrb[0].mxu0
      %v4935 = vadd.f32 %v4865, %v4934
      %v4936 = vpop.f32.mrb[0].mxu0
      %4937 = vdwg.mxu0
      %v4939 = vsel %vm4792, %v4531, 0
      %v4941 = vsel %vm2769, %v4527, 0
      %4943 = vmatprep.subr.mxu0 0.0
      %4944 = vmatpush1.msra.mxu0 %v4464
      %4945 = vmatprep.subr.mxu0 0.0
      %4946 = vmatpush1.msra.mxu0 %v4465
      %4947 = vmatprep.subr.mxu0 0.0
      %4948 = vmatpush1.msra.mxu0 %v4466
      %4949 = vmatprep.subr.mxu0 0.0
      %4950 = vmatpush1.msra.mxu0 %v4467
      %4951 = vmatprep.subr.mxu0 0.0
      %4952 = vmatpush1.msra.mxu0 %v4468
      %4953 = vmatprep.subr.mxu0 0.0
      %4954 = vmatpush1.msra.mxu0 %v4469
      %4955 = vmatprep.subr.mxu0 0.0
      %4956 = vmatpush1.msra.mxu0 %v4470
      %4957 = vmatprep.subr.mxu0 0.0
      %4958 = vmatpush1.msra.mxu0 %v4471
      %4959 = vmatprep.subr.mxu0 0.0
      %4960 = vmatpush1.msra.mxu0 %v4472
      %4961 = vmatprep.subr.mxu0 0.0
      %4962 = vmatpush1.msra.mxu0 %v4473
      %4963 = vmatprep.subr.mxu0 0.0
      %4964 = vmatpush1.msra.mxu0 %v4474
      %4965 = vmatprep.subr.mxu0 0.0
      %4966 = vmatpush1.msra.mxu0 %v4475
      %4967 = vmatprep.subr.mxu0 0.0
      %4968 = vmatpush1.msra.mxu0 %v4476
      %4969 = vmatprep.subr.mxu0 0.0
      %4970 = vmatpush1.msra.mxu0 %v4477
      %4971 = vmatprep.subr.mxu0 0.0
      %4972 = vmatpush1.msra.mxu0 %v4478
      %4973 = vmatprep.subr.mxu0 0.0
      %4974 = vmatpush1.msra.mxu0 %v4479
      %4975 = vmatprep.subr.mxu0 0.0
      %4976 = vmatpush1.msra.mxu0 %v4480
      %4977 = vmatprep.subr.mxu0 0.0
      %4978 = vmatpush1.msra.mxu0 %v4481
      %4979 = vmatprep.subr.mxu0 0.0
      %4980 = vmatpush1.msra.mxu0 %v4482
      %4981 = vmatprep.subr.mxu0 0.0
      %4982 = vmatpush1.msra.mxu0 %v4483
      %4983 = vmatprep.subr.mxu0 0.0
      %4984 = vmatpush1.msra.mxu0 %v4484
      %4985 = vmatprep.subr.mxu0 0.0
      %4986 = vmatpush1.msra.mxu0 %v4485
      %4987 = vmatprep.subr.mxu0 0.0
      %4988 = vmatpush1.msra.mxu0 %v4486
      %4989 = vmatprep.subr.mxu0 0.0
      %4990 = vmatpush1.msra.mxu0 %v4487
      %4991 = vmatprep.subr.mxu0 0.0
      %4992 = vmatpush1.msra.mxu0 %v4488
      %4993 = vmatprep.subr.mxu0 0.0
      %4994 = vmatpush1.msra.mxu0 %v4489
      %4995 = vmatprep.subr.mxu0 0.0
      %4996 = vmatpush1.msra.mxu0 %v4490
      %4997 = vmatprep.subr.mxu0 0.0
      %4998 = vmatpush1.msra.mxu0 %v4491
      %4999 = vmatprep.subr.mxu0 0.0
      %5000 = vmatpush1.msra.mxu0 %v4492
      %5001 = vmatprep.subr.mxu0 0.0
      %5002 = vmatpush1.msra.mxu0 %v4493
      %5003 = vmatprep.subr.mxu0 0.0
      %5004 = vmatpush1.msra.mxu0 %v4494
      %5005 = vmatprep.subr.mxu0 0.0
      %5006 = vmatpush1.msra.mxu0 %v4495
      %5007 = vmatprep.mubr.f32.mxu0 %v4529
      %5008 = vmatmul.mubr.f32.gmra.mrb[0].mxu0 %v4528
      %v5009 = vpop.f32.mrb[0].mxu0
      %v5010 = vadd.f32 %v4935, %v5009
      %v5011 = vpop.f32.mrb[0].mxu0
      %5012 = vdwg.mxu0
      %5013 = vmatprep.subr.mxu0 0.0
      %5014 = vmatpush1.msra.mxu0 %v4496
      %5015 = vmatprep.subr.mxu0 0.0
      %5016 = vmatpush1.msra.mxu0 %v4497
      %5017 = vmatprep.subr.mxu0 0.0
      %5018 = vmatpush1.msra.mxu0 %v4498
      %5019 = vmatprep.subr.mxu0 0.0
      %5020 = vmatpush1.msra.mxu0 %v4499
      %5021 = vmatprep.subr.mxu0 0.0
      %5022 = vmatpush1.msra.mxu0 %v4500
      %5023 = vmatprep.subr.mxu0 0.0
      %5024 = vmatpush1.msra.mxu0 %v4501
      %5025 = vmatprep.subr.mxu0 0.0
      %5026 = vmatpush1.msra.mxu0 %v4502
      %5027 = vmatprep.subr.mxu0 0.0
      %5028 = vmatpush1.msra.mxu0 %v4503
      %5029 = vmatprep.subr.mxu0 0.0
      %5030 = vmatpush1.msra.mxu0 %v4504
      %5031 = vmatprep.subr.mxu0 0.0
      %5032 = vmatpush1.msra.mxu0 %v4505
      %5033 = vmatprep.subr.mxu0 0.0
      %5034 = vmatpush1.msra.mxu0 %v4506
      %5035 = vmatprep.subr.mxu0 0.0
      %5036 = vmatpush1.msra.mxu0 %v4507
      %5037 = vmatprep.subr.mxu0 0.0
      %5038 = vmatpush1.msra.mxu0 %v4508
      %5039 = vmatprep.subr.mxu0 0.0
      %5040 = vmatpush1.msra.mxu0 %v4509
      %5041 = vmatprep.subr.mxu0 0.0
      %5042 = vmatpush1.msra.mxu0 %v4510
      %5043 = vmatprep.subr.mxu0 0.0
      %5044 = vmatpush1.msra.mxu0 %v4511
      %5045 = vmatprep.subr.mxu0 0.0
      %5046 = vmatpush1.msra.mxu0 %v4512
      %5047 = vmatprep.subr.mxu0 0.0
      %5048 = vmatpush1.msra.mxu0 %v4513
      %5049 = vmatprep.subr.mxu0 0.0
      %5050 = vmatpush1.msra.mxu0 %v4514
      %5051 = vmatprep.subr.mxu0 0.0
      %5052 = vmatpush1.msra.mxu0 %v4515
      %5053 = vmatprep.subr.mxu0 0.0
      %5054 = vmatpush1.msra.mxu0 %v4516
      %5055 = vmatprep.subr.mxu0 0.0
      %5056 = vmatpush1.msra.mxu0 %v4517
      %5057 = vmatprep.subr.mxu0 0.0
      %5058 = vmatpush1.msra.mxu0 %v4518
      %5059 = vmatprep.subr.mxu0 0.0
      %5060 = vmatpush1.msra.mxu0 %v4519
      %5061 = vmatprep.subr.mxu0 0.0
      %5062 = vmatpush1.msra.mxu0 %v4520
      %5063 = vmatprep.subr.mxu0 0.0
      %5064 = vmatpush1.msra.mxu0 %v4521
      %5065 = vmatprep.subr.mxu0 0.0
      %5066 = vmatpush1.msra.mxu0 %v4522
      %5067 = vmatprep.subr.mxu0 0.0
      %5068 = vmatpush1.msra.mxu0 %v4523
      %5069 = vmatprep.subr.mxu0 0.0
      %5070 = vmatpush1.msra.mxu0 %v4524
      %5071 = vmatprep.subr.mxu0 0.0
      %5072 = vmatpush1.msra.mxu0 %v4525
      %5073 = vmatprep.subr.mxu0 0.0
      %5074 = vmatpush1.msra.mxu0 %v4526
      %5075 = vmatprep.subr.mxu0 0.0
      %5076 = vmatpush1.msra.mxu0 %v4941
      %5077 = vmatprep.mubr.f32.mxu0 %v4939
      %5078 = vmatmul.mubr.f32.gmra.mrb[0].mxu0 %v4530
      %v5079 = vpop.f32.mrb[0].mxu0
      %v5080 = vadd.f32 %v5010, %v5079
      %v5081 = vpop.f32.mrb[0].mxu0
      %5082 = vdwg.mxu0
      %s5083 = scalar_lea.vmem %s5, 64
      %v5084 = vld [vmem:[%s5083] sm:$0xff]
      %v5085 = vld [vmem:[%s5083 + $0x8] sm:$0xff]
      %v5086 = vld [vmem:[%s5083 + $0x10] sm:$0xff]
      %v5087 = vld [vmem:[%s5083 + $0x18] sm:$0xff]
      %5088 = vrot.lane.b32.xlu0 %v4464, 126
      %v5089 = vpop.permute.xlu0 %5088
      %5090 = vrot.lane.b32.xlu0 %v4465, 126
      %v5091 = vpop.permute.xlu0 %5090
      %5092 = vrot.lane.b32.xlu0 %v4466, 126
      %v5093 = vpop.permute.xlu0 %5092
      %5094 = vrot.lane.b32.xlu0 %v4467, 126
      %v5095 = vpop.permute.xlu0 %5094
      %5096 = vrot.lane.b32.xlu0 %v4468, 126
      %v5097 = vpop.permute.xlu0 %5096
      %5098 = vrot.lane.b32.xlu0 %v4469, 126
      %v5099 = vpop.permute.xlu0 %5098
      %5100 = vrot.lane.b32.xlu0 %v4470, 126
      %v5101 = vpop.permute.xlu0 %5100
      %5102 = vrot.lane.b32.xlu0 %v4471, 126
      %v5103 = vpop.permute.xlu0 %5102
      %5104 = vrot.lane.b32.xlu0 %v4472, 126
      %v5105 = vpop.permute.xlu0 %5104
      %5106 = vrot.lane.b32.xlu0 %v4473, 126
      %v5107 = vpop.permute.xlu0 %5106
      %5108 = vrot.lane.b32.xlu0 %v4474, 126
      %v5109 = vpop.permute.xlu0 %5108
      %5110 = vrot.lane.b32.xlu0 %v4475, 126
      %v5111 = vpop.permute.xlu0 %5110
      %5112 = vrot.lane.b32.xlu0 %v4476, 126
      %v5113 = vpop.permute.xlu0 %5112
      %5114 = vrot.lane.b32.xlu0 %v4477, 126
      %v5115 = vpop.permute.xlu0 %5114
      %5116 = vrot.lane.b32.xlu0 %v4478, 126
      %v5117 = vpop.permute.xlu0 %5116
      %5118 = vrot.lane.b32.xlu0 %v4479, 126
      %v5119 = vpop.permute.xlu0 %5118
      %5120 = vrot.lane.b32.xlu0 %v4480, 126
      %v5121 = vpop.permute.xlu0 %5120
      %5122 = vrot.lane.b32.xlu0 %v4481, 126
      %v5123 = vpop.permute.xlu0 %5122
      %5124 = vrot.lane.b32.xlu0 %v4482, 126
      %v5125 = vpop.permute.xlu0 %5124
      %5126 = vrot.lane.b32.xlu0 %v4483, 126
      %v5127 = vpop.permute.xlu0 %5126
      %5128 = vrot.lane.b32.xlu0 %v4484, 126
      %v5129 = vpop.permute.xlu0 %5128
      %5130 = vrot.lane.b32.xlu0 %v4485, 126
      %v5131 = vpop.permute.xlu0 %5130
      %5132 = vrot.lane.b32.xlu0 %v4486, 126
      %v5133 = vpop.permute.xlu0 %5132
      %5134 = vrot.lane.b32.xlu0 %v4487, 126
      %v5135 = vpop.permute.xlu0 %5134
      %5136 = vrot.lane.b32.xlu0 %v4488, 126
      %v5137 = vpop.permute.xlu0 %5136
      %5138 = vrot.lane.b32.xlu0 %v4489, 126
      %v5139 = vpop.permute.xlu0 %5138
      %5140 = vrot.lane.b32.xlu0 %v4490, 126
      %v5141 = vpop.permute.xlu0 %5140
      %5142 = vrot.lane.b32.xlu0 %v4491, 126
      %v5143 = vpop.permute.xlu0 %5142
      %5144 = vrot.lane.b32.xlu0 %v4492, 126
      %v5145 = vpop.permute.xlu0 %5144
      %5146 = vrot.lane.b32.xlu0 %v4493, 126
      %v5147 = vpop.permute.xlu0 %5146
      %5148 = vrot.lane.b32.xlu0 %v4494, 126
      %v5149 = vpop.permute.xlu0 %5148
      %5150 = vrot.lane.b32.xlu0 %v4495, 126
      %v5151 = vpop.permute.xlu0 %5150
      %5152 = vrot.lane.b32.xlu0 %v4496, 126
      %v5153 = vpop.permute.xlu0 %5152
      %5154 = vrot.lane.b32.xlu0 %v4497, 126
      %v5155 = vpop.permute.xlu0 %5154
      %5156 = vrot.lane.b32.xlu0 %v4498, 126
      %v5157 = vpop.permute.xlu0 %5156
      %5158 = vrot.lane.b32.xlu0 %v4499, 126
      %v5159 = vpop.permute.xlu0 %5158
      %5160 = vrot.lane.b32.xlu0 %v4500, 126
      %v5161 = vpop.permute.xlu0 %5160
      %5162 = vrot.lane.b32.xlu0 %v4501, 126
      %v5163 = vpop.permute.xlu0 %5162
      %5164 = vrot.lane.b32.xlu0 %v4502, 126
      %v5165 = vpop.permute.xlu0 %5164
      %5166 = vrot.lane.b32.xlu0 %v4503, 126
      %v5167 = vpop.permute.xlu0 %5166
      %5168 = vrot.lane.b32.xlu0 %v4504, 126
      %v5169 = vpop.permute.xlu0 %5168
      %5170 = vrot.lane.b32.xlu0 %v4505, 126
      %v5171 = vpop.permute.xlu0 %5170
      %5172 = vrot.lane.b32.xlu0 %v4506, 126
      %v5173 = vpop.permute.xlu0 %5172
      %5174 = vrot.lane.b32.xlu0 %v4507, 126
      %v5175 = vpop.permute.xlu0 %5174
      %5176 = vrot.lane.b32.xlu0 %v4508, 126
      %v5177 = vpop.permute.xlu0 %5176
      %5178 = vrot.lane.b32.xlu0 %v4509, 126
      %v5179 = vpop.permute.xlu0 %5178
      %5180 = vrot.lane.b32.xlu0 %v4510, 126
      %v5181 = vpop.permute.xlu0 %5180
      %5182 = vrot.lane.b32.xlu0 %v4511, 126
      %v5183 = vpop.permute.xlu0 %5182
      %5184 = vrot.lane.b32.xlu0 %v4512, 126
      %v5185 = vpop.permute.xlu0 %5184
      %5186 = vrot.lane.b32.xlu0 %v4513, 126
      %v5187 = vpop.permute.xlu0 %5186
      %5188 = vrot.lane.b32.xlu0 %v4514, 126
      %v5189 = vpop.permute.xlu0 %5188
      %5190 = vrot.lane.b32.xlu0 %v4515, 126
      %v5191 = vpop.permute.xlu0 %5190
      %5192 = vrot.lane.b32.xlu0 %v4516, 126
      %v5193 = vpop.permute.xlu0 %5192
      %5194 = vrot.lane.b32.xlu0 %v4517, 126
      %v5195 = vpop.permute.xlu0 %5194
      %5196 = vrot.lane.b32.xlu0 %v4518, 126
      %v5197 = vpop.permute.xlu0 %5196
      %5198 = vrot.lane.b32.xlu0 %v4519, 126
      %v5199 = vpop.permute.xlu0 %5198
      %5200 = vrot.lane.b32.xlu0 %v4520, 126
      %v5201 = vpop.permute.xlu0 %5200
      %5202 = vrot.lane.b32.xlu0 %v4521, 126
      %v5203 = vpop.permute.xlu0 %5202
      %5204 = vrot.lane.b32.xlu0 %v4522, 126
      %v5205 = vpop.permute.xlu0 %5204
      %5206 = vrot.lane.b32.xlu0 %v4523, 126
      %v5207 = vpop.permute.xlu0 %5206
      %5208 = vrot.lane.b32.xlu0 %v4524, 126
      %v5209 = vpop.permute.xlu0 %5208
      %5210 = vrot.lane.b32.xlu0 %v4525, 126
      %v5211 = vpop.permute.xlu0 %5210
      %5212 = vrot.lane.b32.xlu0 %v4526, 126
      %v5213 = vpop.permute.xlu0 %5212
      %5214 = vrot.lane.b32.xlu0 %v4527, 126
      %v5215 = vpop.permute.xlu0 %5214
      %v5280 = vsel %vm4792, %v5087, 0
      %v5282 = vsel %vm2769, %v5215, 0
      %5284 = vmatprep.subr.mxu0 0.0
      %5285 = vmatpush1.msra.mxu0 %v5089
      %5286 = vmatprep.subr.mxu0 0.0
      %5287 = vmatpush1.msra.mxu0 %v5091
      %5288 = vmatprep.subr.mxu0 0.0
      %5289 = vmatpush1.msra.mxu0 %v5093
      %5290 = vmatprep.subr.mxu0 0.0
      %5291 = vmatpush1.msra.mxu0 %v5095
      %5292 = vmatprep.subr.mxu0 0.0
      %5293 = vmatpush1.msra.mxu0 %v5097
      %5294 = vmatprep.subr.mxu0 0.0
      %5295 = vmatpush1.msra.mxu0 %v5099
      %5296 = vmatprep.subr.mxu0 0.0
      %5297 = vmatpush1.msra.mxu0 %v5101
      %5298 = vmatprep.subr.mxu0 0.0
      %5299 = vmatpush1.msra.mxu0 %v5103
      %5300 = vmatprep.subr.mxu0 0.0
      %5301 = vmatpush1.msra.mxu0 %v5105
      %5302 = vmatprep.subr.mxu0 0.0
      %5303 = vmatpush1.msra.mxu0 %v5107
      %5304 = vmatprep.subr.mxu0 0.0
      %5305 = vmatpush1.msra.mxu0 %v5109
      %5306 = vmatprep.subr.mxu0 0.0
      %5307 = vmatpush1.msra.mxu0 %v5111
      %5308 = vmatprep.subr.mxu0 0.0
      %5309 = vmatpush1.msra.mxu0 %v5113
      %5310 = vmatprep.subr.mxu0 0.0
      %5311 = vmatpush1.msra.mxu0 %v5115
      %5312 = vmatprep.subr.mxu0 0.0
      %5313 = vmatpush1.msra.mxu0 %v5117
      %5314 = vmatprep.subr.mxu0 0.0
      %5315 = vmatpush1.msra.mxu0 %v5119
      %5316 = vmatprep.subr.mxu0 0.0
      %5317 = vmatpush1.msra.mxu0 %v5121
      %5318 = vmatprep.subr.mxu0 0.0
      %5319 = vmatpush1.msra.mxu0 %v5123
      %5320 = vmatprep.subr.mxu0 0.0
      %5321 = vmatpush1.msra.mxu0 %v5125
      %5322 = vmatprep.subr.mxu0 0.0
      %5323 = vmatpush1.msra.mxu0 %v5127
      %5324 = vmatprep.subr.mxu0 0.0
      %5325 = vmatpush1.msra.mxu0 %v5129
      %5326 = vmatprep.subr.mxu0 0.0
      %5327 = vmatpush1.msra.mxu0 %v5131
      %5328 = vmatprep.subr.mxu0 0.0
      %5329 = vmatpush1.msra.mxu0 %v5133
      %5330 = vmatprep.subr.mxu0 0.0
      %5331 = vmatpush1.msra.mxu0 %v5135
      %5332 = vmatprep.subr.mxu0 0.0
      %5333 = vmatpush1.msra.mxu0 %v5137
      %5334 = vmatprep.subr.mxu0 0.0
      %5335 = vmatpush1.msra.mxu0 %v5139
      %5336 = vmatprep.subr.mxu0 0.0
      %5337 = vmatpush1.msra.mxu0 %v5141
      %5338 = vmatprep.subr.mxu0 0.0
      %5339 = vmatpush1.msra.mxu0 %v5143
      %5340 = vmatprep.subr.mxu0 0.0
      %5341 = vmatpush1.msra.mxu0 %v5145
      %5342 = vmatprep.subr.mxu0 0.0
      %5343 = vmatpush1.msra.mxu0 %v5147
      %5344 = vmatprep.subr.mxu0 0.0
      %5345 = vmatpush1.msra.mxu0 %v5149
      %5346 = vmatprep.subr.mxu0 0.0
      %5347 = vmatpush1.msra.mxu0 %v5151
      %5348 = vmatprep.mubr.f32.mxu0 %v5085
      %5349 = vmatmul.mubr.f32.gmra.mrb[0].mxu0 %v5084
      %v5350 = vpop.f32.mrb[0].mxu0
      %v5351 = vadd.f32 0.0, %v5350
      %v5352 = vpop.f32.mrb[0].mxu0
      %5353 = vdwg.mxu0
      %5354 = vmatprep.subr.mxu0 0.0
      %5355 = vmatpush1.msra.mxu0 %v5153
      %5356 = vmatprep.subr.mxu0 0.0
      %5357 = vmatpush1.msra.mxu0 %v5155
      %5358 = vmatprep.subr.mxu0 0.0
      %5359 = vmatpush1.msra.mxu0 %v5157
      %5360 = vmatprep.subr.mxu0 0.0
      %5361 = vmatpush1.msra.mxu0 %v5159
      %5362 = vmatprep.subr.mxu0 0.0
      %5363 = vmatpush1.msra.mxu0 %v5161
      %5364 = vmatprep.subr.mxu0 0.0
      %5365 = vmatpush1.msra.mxu0 %v5163
      %5366 = vmatprep.subr.mxu0 0.0
      %5367 = vmatpush1.msra.mxu0 %v5165
      %5368 = vmatprep.subr.mxu0 0.0
      %5369 = vmatpush1.msra.mxu0 %v5167
      %5370 = vmatprep.subr.mxu0 0.0
      %5371 = vmatpush1.msra.mxu0 %v5169
      %5372 = vmatprep.subr.mxu0 0.0
      %5373 = vmatpush1.msra.mxu0 %v5171
      %5374 = vmatprep.subr.mxu0 0.0
      %5375 = vmatpush1.msra.mxu0 %v5173
      %5376 = vmatprep.subr.mxu0 0.0
      %5377 = vmatpush1.msra.mxu0 %v5175
      %5378 = vmatprep.subr.mxu0 0.0
      %5379 = vmatpush1.msra.mxu0 %v5177
      %5380 = vmatprep.subr.mxu0 0.0
      %5381 = vmatpush1.msra.mxu0 %v5179
      %5382 = vmatprep.subr.mxu0 0.0
      %5383 = vmatpush1.msra.mxu0 %v5181
      %5384 = vmatprep.subr.mxu0 0.0
      %5385 = vmatpush1.msra.mxu0 %v5183
      %5386 = vmatprep.subr.mxu0 0.0
      %5387 = vmatpush1.msra.mxu0 %v5185
      %5388 = vmatprep.subr.mxu0 0.0
      %5389 = vmatpush1.msra.mxu0 %v5187
      %5390 = vmatprep.subr.mxu0 0.0
      %5391 = vmatpush1.msra.mxu0 %v5189
      %5392 = vmatprep.subr.mxu0 0.0
      %5393 = vmatpush1.msra.mxu0 %v5191
      %5394 = vmatprep.subr.mxu0 0.0
      %5395 = vmatpush1.msra.mxu0 %v5193
      %5396 = vmatprep.subr.mxu0 0.0
      %5397 = vmatpush1.msra.mxu0 %v5195
      %5398 = vmatprep.subr.mxu0 0.0
      %5399 = vmatpush1.msra.mxu0 %v5197
      %5400 = vmatprep.subr.mxu0 0.0
      %5401 = vmatpush1.msra.mxu0 %v5199
      %5402 = vmatprep.subr.mxu0 0.0
      %5403 = vmatpush1.msra.mxu0 %v5201
      %5404 = vmatprep.subr.mxu0 0.0
      %5405 = vmatpush1.msra.mxu0 %v5203
      %5406 = vmatprep.subr.mxu0 0.0
      %5407 = vmatpush1.msra.mxu0 %v5205
      %5408 = vmatprep.subr.mxu0 0.0
      %5409 = vmatpush1.msra.mxu0 %v5207
      %5410 = vmatprep.subr.mxu0 0.0
      %5411 = vmatpush1.msra.mxu0 %v5209
      %5412 = vmatprep.subr.mxu0 0.0
      %5413 = vmatpush1.msra.mxu0 %v5211
      %5414 = vmatprep.subr.mxu0 0.0
      %5415 = vmatpush1.msra.mxu0 %v5213
      %5416 = vmatprep.subr.mxu0 0.0
      %5417 = vmatpush1.msra.mxu0 %v5282
      %5418 = vmatprep.mubr.f32.mxu0 %v5280
      %5419 = vmatmul.mubr.f32.gmra.mrb[0].mxu0 %v5086
      %v5420 = vpop.f32.mrb[0].mxu0
      %v5421 = vadd.f32 %v5351, %v5420
      %v5422 = vpop.f32.mrb[0].mxu0
      %5423 = vdwg.mxu0
      %v5424 = vadd.f32 %v5080, %v5421
      %s5425 = scalar_lea.vmem %s5, 96
      %v5426 = vld [vmem:[%s5425] sm:$0xff]
      %v5427 = vld [vmem:[%s5425 + $0x8] sm:$0xff]
      %v5428 = vld [vmem:[%s5425 + $0x10] sm:$0xff]
      %v5429 = vld [vmem:[%s5425 + $0x18] sm:$0xff]
      %5430 = vrot.lane.b32.xlu0 %v4464, 125
      %v5431 = vpop.permute.xlu0 %5430
      %5432 = vrot.lane.b32.xlu0 %v4465, 125
      %v5433 = vpop.permute.xlu0 %5432
      %5434 = vrot.lane.b32.xlu0 %v4466, 125
      %v5435 = vpop.permute.xlu0 %5434
      %5436 = vrot.lane.b32.xlu0 %v4467, 125
      %v5437 = vpop.permute.xlu0 %5436
      %5438 = vrot.lane.b32.xlu0 %v4468, 125
      %v5439 = vpop.permute.xlu0 %5438
      %5440 = vrot.lane.b32.xlu0 %v4469, 125
      %v5441 = vpop.permute.xlu0 %5440
      %5442 = vrot.lane.b32.xlu0 %v4470, 125
      %v5443 = vpop.permute.xlu0 %5442
      %5444 = vrot.lane.b32.xlu0 %v4471, 125
      %v5445 = vpop.permute.xlu0 %5444
      %5446 = vrot.lane.b32.xlu0 %v4472, 125
      %v5447 = vpop.permute.xlu0 %5446
      %5448 = vrot.lane.b32.xlu0 %v4473, 125
      %v5449 = vpop.permute.xlu0 %5448
      %5450 = vrot.lane.b32.xlu0 %v4474, 125
      %v5451 = vpop.permute.xlu0 %5450
      %5452 = vrot.lane.b32.xlu0 %v4475, 125
      %v5453 = vpop.permute.xlu0 %5452
      %5454 = vrot.lane.b32.xlu0 %v4476, 125
      %v5455 = vpop.permute.xlu0 %5454
      %5456 = vrot.lane.b32.xlu0 %v4477, 125
      %v5457 = vpop.permute.xlu0 %5456
      %5458 = vrot.lane.b32.xlu0 %v4478, 125
      %v5459 = vpop.permute.xlu0 %5458
      %5460 = vrot.lane.b32.xlu0 %v4479, 125
      %v5461 = vpop.permute.xlu0 %5460
      %5462 = vrot.lane.b32.xlu0 %v4480, 125
      %v5463 = vpop.permute.xlu0 %5462
      %5464 = vrot.lane.b32.xlu0 %v4481, 125
      %v5465 = vpop.permute.xlu0 %5464
      %5466 = vrot.lane.b32.xlu0 %v4482, 125
      %v5467 = vpop.permute.xlu0 %5466
      %5468 = vrot.lane.b32.xlu0 %v4483, 125
      %v5469 = vpop.permute.xlu0 %5468
      %5470 = vrot.lane.b32.xlu0 %v4484, 125
      %v5471 = vpop.permute.xlu0 %5470
      %5472 = vrot.lane.b32.xlu0 %v4485, 125
      %v5473 = vpop.permute.xlu0 %5472
      %5474 = vrot.lane.b32.xlu0 %v4486, 125
      %v5475 = vpop.permute.xlu0 %5474
      %5476 = vrot.lane.b32.xlu0 %v4487, 125
      %v5477 = vpop.permute.xlu0 %5476
      %5478 = vrot.lane.b32.xlu0 %v4488, 125
      %v5479 = vpop.permute.xlu0 %5478
      %5480 = vrot.lane.b32.xlu0 %v4489, 125
      %v5481 = vpop.permute.xlu0 %5480
      %5482 = vrot.lane.b32.xlu0 %v4490, 125
      %v5483 = vpop.permute.xlu0 %5482
      %5484 = vrot.lane.b32.xlu0 %v4491, 125
      %v5485 = vpop.permute.xlu0 %5484
      %5486 = vrot.lane.b32.xlu0 %v4492, 125
      %v5487 = vpop.permute.xlu0 %5486
      %5488 = vrot.lane.b32.xlu0 %v4493, 125
      %v5489 = vpop.permute.xlu0 %5488
      %5490 = vrot.lane.b32.xlu0 %v4494, 125
      %v5491 = vpop.permute.xlu0 %5490
      %5492 = vrot.lane.b32.xlu0 %v4495, 125
      %v5493 = vpop.permute.xlu0 %5492
      %5494 = vrot.lane.b32.xlu0 %v4496, 125
      %v5495 = vpop.permute.xlu0 %5494
      %5496 = vrot.lane.b32.xlu0 %v4497, 125
      %v5497 = vpop.permute.xlu0 %5496
      %5498 = vrot.lane.b32.xlu0 %v4498, 125
      %v5499 = vpop.permute.xlu0 %5498
      %5500 = vrot.lane.b32.xlu0 %v4499, 125
      %v5501 = vpop.permute.xlu0 %5500
      %5502 = vrot.lane.b32.xlu0 %v4500, 125
      %v5503 = vpop.permute.xlu0 %5502
      %5504 = vrot.lane.b32.xlu0 %v4501, 125
      %v5505 = vpop.permute.xlu0 %5504
      %5506 = vrot.lane.b32.xlu0 %v4502, 125
      %v5507 = vpop.permute.xlu0 %5506
      %5508 = vrot.lane.b32.xlu0 %v4503, 125
      %v5509 = vpop.permute.xlu0 %5508
      %5510 = vrot.lane.b32.xlu0 %v4504, 125
      %v5511 = vpop.permute.xlu0 %5510
      %5512 = vrot.lane.b32.xlu0 %v4505, 125
      %v5513 = vpop.permute.xlu0 %5512
      %5514 = vrot.lane.b32.xlu0 %v4506, 125
      %v5515 = vpop.permute.xlu0 %5514
      %5516 = vrot.lane.b32.xlu0 %v4507, 125
      %v5517 = vpop.permute.xlu0 %5516
      %5518 = vrot.lane.b32.xlu0 %v4508, 125
      %v5519 = vpop.permute.xlu0 %5518
      %5520 = vrot.lane.b32.xlu0 %v4509, 125
      %v5521 = vpop.permute.xlu0 %5520
      %5522 = vrot.lane.b32.xlu0 %v4510, 125
      %v5523 = vpop.permute.xlu0 %5522
      %5524 = vrot.lane.b32.xlu0 %v4511, 125
      %v5525 = vpop.permute.xlu0 %5524
      %5526 = vrot.lane.b32.xlu0 %v4512, 125
      %v5527 = vpop.permute.xlu0 %5526
      %5528 = vrot.lane.b32.xlu0 %v4513, 125
      %v5529 = vpop.permute.xlu0 %5528
      %5530 = vrot.lane.b32.xlu0 %v4514, 125
      %v5531 = vpop.permute.xlu0 %5530
      %5532 = vrot.lane.b32.xlu0 %v4515, 125
      %v5533 = vpop.permute.xlu0 %5532
      %5534 = vrot.lane.b32.xlu0 %v4516, 125
      %v5535 = vpop.permute.xlu0 %5534
      %5536 = vrot.lane.b32.xlu0 %v4517, 125
      %v5537 = vpop.permute.xlu0 %5536
      %5538 = vrot.lane.b32.xlu0 %v4518, 125
      %v5539 = vpop.permute.xlu0 %5538
      %5540 = vrot.lane.b32.xlu0 %v4519, 125
      %v5541 = vpop.permute.xlu0 %5540
      %5542 = vrot.lane.b32.xlu0 %v4520, 125
      %v5543 = vpop.permute.xlu0 %5542
      %5544 = vrot.lane.b32.xlu0 %v4521, 125
      %v5545 = vpop.permute.xlu0 %5544
      %5546 = vrot.lane.b32.xlu0 %v4522, 125
      %v5547 = vpop.permute.xlu0 %5546
      %5548 = vrot.lane.b32.xlu0 %v4523, 125
      %v5549 = vpop.permute.xlu0 %5548
      %5550 = vrot.lane.b32.xlu0 %v4524, 125
      %v5551 = vpop.permute.xlu0 %5550
      %5552 = vrot.lane.b32.xlu0 %v4525, 125
      %v5553 = vpop.permute.xlu0 %5552
      %5554 = vrot.lane.b32.xlu0 %v4526, 125
      %v5555 = vpop.permute.xlu0 %5554
      %5556 = vrot.lane.b32.xlu0 %v4527, 125
      %v5557 = vpop.permute.xlu0 %5556
      %v5622 = vsel %vm4792, %v5429, 0
      %v5624 = vsel %vm2769, %v5557, 0
      %5626 = vmatprep.subr.mxu0 0.0
      %5627 = vmatpush1.msra.mxu0 %v5431
      %5628 = vmatprep.subr.mxu0 0.0
      %5629 = vmatpush1.msra.mxu0 %v5433
      %5630 = vmatprep.subr.mxu0 0.0
      %5631 = vmatpush1.msra.mxu0 %v5435
      %5632 = vmatprep.subr.mxu0 0.0
      %5633 = vmatpush1.msra.mxu0 %v5437
      %5634 = vmatprep.subr.mxu0 0.0
      %5635 = vmatpush1.msra.mxu0 %v5439
      %5636 = vmatprep.subr.mxu0 0.0
      %5637 = vmatpush1.msra.mxu0 %v5441
      %5638 = vmatprep.subr.mxu0 0.0
      %5639 = vmatpush1.msra.mxu0 %v5443
      %5640 = vmatprep.subr.mxu0 0.0
      %5641 = vmatpush1.msra.mxu0 %v5445
      %5642 = vmatprep.subr.mxu0 0.0
      %5643 = vmatpush1.msra.mxu0 %v5447
      %5644 = vmatprep.subr.mxu0 0.0
      %5645 = vmatpush1.msra.mxu0 %v5449
      %5646 = vmatprep.subr.mxu0 0.0
      %5647 = vmatpush1.msra.mxu0 %v5451
      %5648 = vmatprep.subr.mxu0 0.0
      %5649 = vmatpush1.msra.mxu0 %v5453
      %5650 = vmatprep.subr.mxu0 0.0
      %5651 = vmatpush1.msra.mxu0 %v5455
      %5652 = vmatprep.subr.mxu0 0.0
      %5653 = vmatpush1.msra.mxu0 %v5457
      %5654 = vmatprep.subr.mxu0 0.0
      %5655 = vmatpush1.msra.mxu0 %v5459
      %5656 = vmatprep.subr.mxu0 0.0
      %5657 = vmatpush1.msra.mxu0 %v5461
      %5658 = vmatprep.subr.mxu0 0.0
      %5659 = vmatpush1.msra.mxu0 %v5463
      %5660 = vmatprep.subr.mxu0 0.0
      %5661 = vmatpush1.msra.mxu0 %v5465
      %5662 = vmatprep.subr.mxu0 0.0
      %5663 = vmatpush1.msra.mxu0 %v5467
      %5664 = vmatprep.subr.mxu0 0.0
      %5665 = vmatpush1.msra.mxu0 %v5469
      %5666 = vmatprep.subr.mxu0 0.0
      %5667 = vmatpush1.msra.mxu0 %v5471
      %5668 = vmatprep.subr.mxu0 0.0
      %5669 = vmatpush1.msra.mxu0 %v5473
      %5670 = vmatprep.subr.mxu0 0.0
      %5671 = vmatpush1.msra.mxu0 %v5475
      %5672 = vmatprep.subr.mxu0 0.0
      %5673 = vmatpush1.msra.mxu0 %v5477
      %5674 = vmatprep.subr.mxu0 0.0
      %5675 = vmatpush1.msra.mxu0 %v5479
      %5676 = vmatprep.subr.mxu0 0.0
      %5677 = vmatpush1.msra.mxu0 %v5481
      %5678 = vmatprep.subr.mxu0 0.0
      %5679 = vmatpush1.msra.mxu0 %v5483
      %5680 = vmatprep.subr.mxu0 0.0
      %5681 = vmatpush1.msra.mxu0 %v5485
      %5682 = vmatprep.subr.mxu0 0.0
      %5683 = vmatpush1.msra.mxu0 %v5487
      %5684 = vmatprep.subr.mxu0 0.0
      %5685 = vmatpush1.msra.mxu0 %v5489
      %5686 = vmatprep.subr.mxu0 0.0
      %5687 = vmatpush1.msra.mxu0 %v5491
      %5688 = vmatprep.subr.mxu0 0.0
      %5689 = vmatpush1.msra.mxu0 %v5493
      %5690 = vmatprep.mubr.f32.mxu0 %v5427
      %5691 = vmatmul.mubr.f32.gmra.mrb[0].mxu0 %v5426
      %v5692 = vpop.f32.mrb[0].mxu0
      %v5693 = vadd.f32 0.0, %v5692
      %v5694 = vpop.f32.mrb[0].mxu0
      %5695 = vdwg.mxu0
      %5696 = vmatprep.subr.mxu0 0.0
      %5697 = vmatpush1.msra.mxu0 %v5495
      %5698 = vmatprep.subr.mxu0 0.0
      %5699 = vmatpush1.msra.mxu0 %v5497
      %5700 = vmatprep.subr.mxu0 0.0
      %5701 = vmatpush1.msra.mxu0 %v5499
      %5702 = vmatprep.subr.mxu0 0.0
      %5703 = vmatpush1.msra.mxu0 %v5501
      %5704 = vmatprep.subr.mxu0 0.0
      %5705 = vmatpush1.msra.mxu0 %v5503
      %5706 = vmatprep.subr.mxu0 0.0
      %5707 = vmatpush1.msra.mxu0 %v5505
      %5708 = vmatprep.subr.mxu0 0.0
      %5709 = vmatpush1.msra.mxu0 %v5507
      %5710 = vmatprep.subr.mxu0 0.0
      %5711 = vmatpush1.msra.mxu0 %v5509
      %5712 = vmatprep.subr.mxu0 0.0
      %5713 = vmatpush1.msra.mxu0 %v5511
      %5714 = vmatprep.subr.mxu0 0.0
      %5715 = vmatpush1.msra.mxu0 %v5513
      %5716 = vmatprep.subr.mxu0 0.0
      %5717 = vmatpush1.msra.mxu0 %v5515
      %5718 = vmatprep.subr.mxu0 0.0
      %5719 = vmatpush1.msra.mxu0 %v5517
      %5720 = vmatprep.subr.mxu0 0.0
      %5721 = vmatpush1.msra.mxu0 %v5519
      %5722 = vmatprep.subr.mxu0 0.0
      %5723 = vmatpush1.msra.mxu0 %v5521
      %5724 = vmatprep.subr.mxu0 0.0
      %5725 = vmatpush1.msra.mxu0 %v5523
      %5726 = vmatprep.subr.mxu0 0.0
      %5727 = vmatpush1.msra.mxu0 %v5525
      %5728 = vmatprep.subr.mxu0 0.0
      %5729 = vmatpush1.msra.mxu0 %v5527
      %5730 = vmatprep.subr.mxu0 0.0
      %5731 = vmatpush1.msra.mxu0 %v5529
      %5732 = vmatprep.subr.mxu0 0.0
      %5733 = vmatpush1.msra.mxu0 %v5531
      %5734 = vmatprep.subr.mxu0 0.0
      %5735 = vmatpush1.msra.mxu0 %v5533
      %5736 = vmatprep.subr.mxu0 0.0
      %5737 = vmatpush1.msra.mxu0 %v5535
      %5738 = vmatprep.subr.mxu0 0.0
      %5739 = vmatpush1.msra.mxu0 %v5537
      %5740 = vmatprep.subr.mxu0 0.0
      %5741 = vmatpush1.msra.mxu0 %v5539
      %5742 = vmatprep.subr.mxu0 0.0
      %5743 = vmatpush1.msra.mxu0 %v5541
      %5744 = vmatprep.subr.mxu0 0.0
      %5745 = vmatpush1.msra.mxu0 %v5543
      %5746 = vmatprep.subr.mxu0 0.0
      %5747 = vmatpush1.msra.mxu0 %v5545
      %5748 = vmatprep.subr.mxu0 0.0
      %5749 = vmatpush1.msra.mxu0 %v5547
      %5750 = vmatprep.subr.mxu0 0.0
      %5751 = vmatpush1.msra.mxu0 %v5549
      %5752 = vmatprep.subr.mxu0 0.0
      %5753 = vmatpush1.msra.mxu0 %v5551
      %5754 = vmatprep.subr.mxu0 0.0
      %5755 = vmatpush1.msra.mxu0 %v5553
      %5756 = vmatprep.subr.mxu0 0.0
      %5757 = vmatpush1.msra.mxu0 %v5555
      %5758 = vmatprep.subr.mxu0 0.0
      %5759 = vmatpush1.msra.mxu0 %v5624
      %5760 = vmatprep.mubr.f32.mxu0 %v5622
      %5761 = vmatmul.mubr.f32.gmra.mrb[0].mxu0 %v5428
      %v5762 = vpop.f32.mrb[0].mxu0
      %v5763 = vadd.f32 %v5693, %v5762
      %v5764 = vpop.f32.mrb[0].mxu0
      %5765 = vdwg.mxu0
      %v5766 = vadd.f32 %v5424, %v5763
      %s5767 = scalar_lea.vmem %s5, 128
      %v5768 = vld [vmem:[%s5767] sm:$0xff]
      %v5769 = vld [vmem:[%s5767 + $0x8] sm:$0xff]
      %v5770 = vld [vmem:[%s5767 + $0x10] sm:$0xff]
      %v5771 = vld [vmem:[%s5767 + $0x18] sm:$0xff]
      %5772 = vrot.lane.b32.xlu0 %v4464, 124
      %v5773 = vpop.permute.xlu0 %5772
      %5774 = vrot.lane.b32.xlu0 %v4465, 124
      %v5775 = vpop.permute.xlu0 %5774
      %5776 = vrot.lane.b32.xlu0 %v4466, 124
      %v5777 = vpop.permute.xlu0 %5776
      %5778 = vrot.lane.b32.xlu0 %v4467, 124
      %v5779 = vpop.permute.xlu0 %5778
      %5780 = vrot.lane.b32.xlu0 %v4468, 124
      %v5781 = vpop.permute.xlu0 %5780
      %5782 = vrot.lane.b32.xlu0 %v4469, 124
      %v5783 = vpop.permute.xlu0 %5782
      %5784 = vrot.lane.b32.xlu0 %v4470, 124
      %v5785 = vpop.permute.xlu0 %5784
      %5786 = vrot.lane.b32.xlu0 %v4471, 124
      %v5787 = vpop.permute.xlu0 %5786
      %5788 = vrot.lane.b32.xlu0 %v4472, 124
      %v5789 = vpop.permute.xlu0 %5788
      %5790 = vrot.lane.b32.xlu0 %v4473, 124
      %v5791 = vpop.permute.xlu0 %5790
      %5792 = vrot.lane.b32.xlu0 %v4474, 124
      %v5793 = vpop.permute.xlu0 %5792
      %5794 = vrot.lane.b32.xlu0 %v4475, 124
      %v5795 = vpop.permute.xlu0 %5794
      %5796 = vrot.lane.b32.xlu0 %v4476, 124
      %v5797 = vpop.permute.xlu0 %5796
      %5798 = vrot.lane.b32.xlu0 %v4477, 124
      %v5799 = vpop.permute.xlu0 %5798
      %5800 = vrot.lane.b32.xlu0 %v4478, 124
      %v5801 = vpop.permute.xlu0 %5800
      %5802 = vrot.lane.b32.xlu0 %v4479, 124
      %v5803 = vpop.permute.xlu0 %5802
      %5804 = vrot.lane.b32.xlu0 %v4480, 124
      %v5805 = vpop.permute.xlu0 %5804
      %5806 = vrot.lane.b32.xlu0 %v4481, 124
      %v5807 = vpop.permute.xlu0 %5806
      %5808 = vrot.lane.b32.xlu0 %v4482, 124
      %v5809 = vpop.permute.xlu0 %5808
      %5810 = vrot.lane.b32.xlu0 %v4483, 124
      %v5811 = vpop.permute.xlu0 %5810
      %5812 = vrot.lane.b32.xlu0 %v4484, 124
      %v5813 = vpop.permute.xlu0 %5812
      %5814 = vrot.lane.b32.xlu0 %v4485, 124
      %v5815 = vpop.permute.xlu0 %5814
      %5816 = vrot.lane.b32.xlu0 %v4486, 124
      %v5817 = vpop.permute.xlu0 %5816
      %5818 = vrot.lane.b32.xlu0 %v4487, 124
      %v5819 = vpop.permute.xlu0 %5818
      %5820 = vrot.lane.b32.xlu0 %v4488, 124
      %v5821 = vpop.permute.xlu0 %5820
      %5822 = vrot.lane.b32.xlu0 %v4489, 124
      %v5823 = vpop.permute.xlu0 %5822
      %5824 = vrot.lane.b32.xlu0 %v4490, 124
      %v5825 = vpop.permute.xlu0 %5824
      %5826 = vrot.lane.b32.xlu0 %v4491, 124
      %v5827 = vpop.permute.xlu0 %5826
      %5828 = vrot.lane.b32.xlu0 %v4492, 124
      %v5829 = vpop.permute.xlu0 %5828
      %5830 = vrot.lane.b32.xlu0 %v4493, 124
      %v5831 = vpop.permute.xlu0 %5830
      %5832 = vrot.lane.b32.xlu0 %v4494, 124
      %v5833 = vpop.permute.xlu0 %5832
      %5834 = vrot.lane.b32.xlu0 %v4495, 124
      %v5835 = vpop.permute.xlu0 %5834
      %5836 = vrot.lane.b32.xlu0 %v4496, 124
      %v5837 = vpop.permute.xlu0 %5836
      %5838 = vrot.lane.b32.xlu0 %v4497, 124
      %v5839 = vpop.permute.xlu0 %5838
      %5840 = vrot.lane.b32.xlu0 %v4498, 124
      %v5841 = vpop.permute.xlu0 %5840
      %5842 = vrot.lane.b32.xlu0 %v4499, 124
      %v5843 = vpop.permute.xlu0 %5842
      %5844 = vrot.lane.b32.xlu0 %v4500, 124
      %v5845 = vpop.permute.xlu0 %5844
      %5846 = vrot.lane.b32.xlu0 %v4501, 124
      %v5847 = vpop.permute.xlu0 %5846
      %5848 = vrot.lane.b32.xlu0 %v4502, 124
      %v5849 = vpop.permute.xlu0 %5848
      %5850 = vrot.lane.b32.xlu0 %v4503, 124
      %v5851 = vpop.permute.xlu0 %5850
      %5852 = vrot.lane.b32.xlu0 %v4504, 124
      %v5853 = vpop.permute.xlu0 %5852
      %5854 = vrot.lane.b32.xlu0 %v4505, 124
      %v5855 = vpop.permute.xlu0 %5854
      %5856 = vrot.lane.b32.xlu0 %v4506, 124
      %v5857 = vpop.permute.xlu0 %5856
      %5858 = vrot.lane.b32.xlu0 %v4507, 124
      %v5859 = vpop.permute.xlu0 %5858
      %5860 = vrot.lane.b32.xlu0 %v4508, 124
      %v5861 = vpop.permute.xlu0 %5860
      %5862 = vrot.lane.b32.xlu0 %v4509, 124
      %v5863 = vpop.permute.xlu0 %5862
      %5864 = vrot.lane.b32.xlu0 %v4510, 124
      %v5865 = vpop.permute.xlu0 %5864
      %5866 = vrot.lane.b32.xlu0 %v4511, 124
      %v5867 = vpop.permute.xlu0 %5866
      %5868 = vrot.lane.b32.xlu0 %v4512, 124
      %v5869 = vpop.permute.xlu0 %5868
      %5870 = vrot.lane.b32.xlu0 %v4513, 124
      %v5871 = vpop.permute.xlu0 %5870
      %5872 = vrot.lane.b32.xlu0 %v4514, 124
      %v5873 = vpop.permute.xlu0 %5872
      %5874 = vrot.lane.b32.xlu0 %v4515, 124
      %v5875 = vpop.permute.xlu0 %5874
      %5876 = vrot.lane.b32.xlu0 %v4516, 124
      %v5877 = vpop.permute.xlu0 %5876
      %5878 = vrot.lane.b32.xlu0 %v4517, 124
      %v5879 = vpop.permute.xlu0 %5878
      %5880 = vrot.lane.b32.xlu0 %v4518, 124
      %v5881 = vpop.permute.xlu0 %5880
      %5882 = vrot.lane.b32.xlu0 %v4519, 124
      %v5883 = vpop.permute.xlu0 %5882
      %5884 = vrot.lane.b32.xlu0 %v4520, 124
      %v5885 = vpop.permute.xlu0 %5884
      %5886 = vrot.lane.b32.xlu0 %v4521, 124
      %v5887 = vpop.permute.xlu0 %5886
      %5888 = vrot.lane.b32.xlu0 %v4522, 124
      %v5889 = vpop.permute.xlu0 %5888
      %5890 = vrot.lane.b32.xlu0 %v4523, 124
      %v5891 = vpop.permute.xlu0 %5890
      %5892 = vrot.lane.b32.xlu0 %v4524, 124
      %v5893 = vpop.permute.xlu0 %5892
      %5894 = vrot.lane.b32.xlu0 %v4525, 124
      %v5895 = vpop.permute.xlu0 %5894
      %5896 = vrot.lane.b32.xlu0 %v4526, 124
      %v5897 = vpop.permute.xlu0 %5896
      %5898 = vrot.lane.b32.xlu0 %v4527, 124
      %v5899 = vpop.permute.xlu0 %5898
      %v5964 = vsel %vm4792, %v5771, 0
      %v5966 = vsel %vm2769, %v5899, 0
      %5968 = vmatprep.subr.mxu0 0.0
      %5969 = vmatpush1.msra.mxu0 %v5773
      %5970 = vmatprep.subr.mxu0 0.0
      %5971 = vmatpush1.msra.mxu0 %v5775
      %5972 = vmatprep.subr.mxu0 0.0
      %5973 = vmatpush1.msra.mxu0 %v5777
      %5974 = vmatprep.subr.mxu0 0.0
      %5975 = vmatpush1.msra.mxu0 %v5779
      %5976 = vmatprep.subr.mxu0 0.0
      %5977 = vmatpush1.msra.mxu0 %v5781
      %5978 = vmatprep.subr.mxu0 0.0
      %5979 = vmatpush1.msra.mxu0 %v5783
      %5980 = vmatprep.subr.mxu0 0.0
      %5981 = vmatpush1.msra.mxu0 %v5785
      %5982 = vmatprep.subr.mxu0 0.0
      %5983 = vmatpush1.msra.mxu0 %v5787
      %5984 = vmatprep.subr.mxu0 0.0
      %5985 = vmatpush1.msra.mxu0 %v5789
      %5986 = vmatprep.subr.mxu0 0.0
      %5987 = vmatpush1.msra.mxu0 %v5791
      %5988 = vmatprep.subr.mxu0 0.0
      %5989 = vmatpush1.msra.mxu0 %v5793
      %5990 = vmatprep.subr.mxu0 0.0
      %5991 = vmatpush1.msra.mxu0 %v5795
      %5992 = vmatprep.subr.mxu0 0.0
      %5993 = vmatpush1.msra.mxu0 %v5797
      %5994 = vmatprep.subr.mxu0 0.0
      %5995 = vmatpush1.msra.mxu0 %v5799
      %5996 = vmatprep.subr.mxu0 0.0
      %5997 = vmatpush1.msra.mxu0 %v5801
      %5998 = vmatprep.subr.mxu0 0.0
      %5999 = vmatpush1.msra.mxu0 %v5803
      %6000 = vmatprep.subr.mxu0 0.0
      %6001 = vmatpush1.msra.mxu0 %v5805
      %6002 = vmatprep.subr.mxu0 0.0
      %6003 = vmatpush1.msra.mxu0 %v5807
      %6004 = vmatprep.subr.mxu0 0.0
      %6005 = vmatpush1.msra.mxu0 %v5809
      %6006 = vmatprep.subr.mxu0 0.0
      %6007 = vmatpush1.msra.mxu0 %v5811
      %6008 = vmatprep.subr.mxu0 0.0
      %6009 = vmatpush1.msra.mxu0 %v5813
      %6010 = vmatprep.subr.mxu0 0.0
      %6011 = vmatpush1.msra.mxu0 %v5815
      %6012 = vmatprep.subr.mxu0 0.0
      %6013 = vmatpush1.msra.mxu0 %v5817
      %6014 = vmatprep.subr.mxu0 0.0
      %6015 = vmatpush1.msra.mxu0 %v5819
      %6016 = vmatprep.subr.mxu0 0.0
      %6017 = vmatpush1.msra.mxu0 %v5821
      %6018 = vmatprep.subr.mxu0 0.0
      %6019 = vmatpush1.msra.mxu0 %v5823
      %6020 = vmatprep.subr.mxu0 0.0
      %6021 = vmatpush1.msra.mxu0 %v5825
      %6022 = vmatprep.subr.mxu0 0.0
      %6023 = vmatpush1.msra.mxu0 %v5827
      %6024 = vmatprep.subr.mxu0 0.0
      %6025 = vmatpush1.msra.mxu0 %v5829
      %6026 = vmatprep.subr.mxu0 0.0
      %6027 = vmatpush1.msra.mxu0 %v5831
      %6028 = vmatprep.subr.mxu0 0.0
      %6029 = vmatpush1.msra.mxu0 %v5833
      %6030 = vmatprep.subr.mxu0 0.0
      %6031 = vmatpush1.msra.mxu0 %v5835
      %6032 = vmatprep.mubr.f32.mxu0 %v5769
      %6033 = vmatmul.mubr.f32.gmra.mrb[0].mxu0 %v5768
      %v6034 = vpop.f32.mrb[0].mxu0
      %v6035 = vadd.f32 0.0, %v6034
      %v6036 = vpop.f32.mrb[0].mxu0
      %6037 = vdwg.mxu0
      %6038 = vmatprep.subr.mxu0 0.0
      %6039 = vmatpush1.msra.mxu0 %v5837
      %6040 = vmatprep.subr.mxu0 0.0
      %6041 = vmatpush1.msra.mxu0 %v5839
      %6042 = vmatprep.subr.mxu0 0.0
      %6043 = vmatpush1.msra.mxu0 %v5841
      %6044 = vmatprep.subr.mxu0 0.0
      %6045 = vmatpush1.msra.mxu0 %v5843
      %6046 = vmatprep.subr.mxu0 0.0
      %6047 = vmatpush1.msra.mxu0 %v5845
      %6048 = vmatprep.subr.mxu0 0.0
      %6049 = vmatpush1.msra.mxu0 %v5847
      %6050 = vmatprep.subr.mxu0 0.0
      %6051 = vmatpush1.msra.mxu0 %v5849
      %6052 = vmatprep.subr.mxu0 0.0
      %6053 = vmatpush1.msra.mxu0 %v5851
      %6054 = vmatprep.subr.mxu0 0.0
      %6055 = vmatpush1.msra.mxu0 %v5853
      %6056 = vmatprep.subr.mxu0 0.0
      %6057 = vmatpush1.msra.mxu0 %v5855
      %6058 = vmatprep.subr.mxu0 0.0
      %6059 = vmatpush1.msra.mxu0 %v5857
      %6060 = vmatprep.subr.mxu0 0.0
      %6061 = vmatpush1.msra.mxu0 %v5859
      %6062 = vmatprep.subr.mxu0 0.0
      %6063 = vmatpush1.msra.mxu0 %v5861
      %6064 = vmatprep.subr.mxu0 0.0
      %6065 = vmatpush1.msra.mxu0 %v5863
      %6066 = vmatprep.subr.mxu0 0.0
      %6067 = vmatpush1.msra.mxu0 %v5865
      %6068 = vmatprep.subr.mxu0 0.0
      %6069 = vmatpush1.msra.mxu0 %v5867
      %6070 = vmatprep.subr.mxu0 0.0
      %6071 = vmatpush1.msra.mxu0 %v5869
      %6072 = vmatprep.subr.mxu0 0.0
      %6073 = vmatpush1.msra.mxu0 %v5871
      %6074 = vmatprep.subr.mxu0 0.0
      %6075 = vmatpush1.msra.mxu0 %v5873
      %6076 = vmatprep.subr.mxu0 0.0
      %6077 = vmatpush1.msra.mxu0 %v5875
      %6078 = vmatprep.subr.mxu0 0.0
      %6079 = vmatpush1.msra.mxu0 %v5877
      %6080 = vmatprep.subr.mxu0 0.0
      %6081 = vmatpush1.msra.mxu0 %v5879
      %6082 = vmatprep.subr.mxu0 0.0
      %6083 = vmatpush1.msra.mxu0 %v5881
      %6084 = vmatprep.subr.mxu0 0.0
      %6085 = vmatpush1.msra.mxu0 %v5883
      %6086 = vmatprep.subr.mxu0 0.0
      %6087 = vmatpush1.msra.mxu0 %v5885
      %6088 = vmatprep.subr.mxu0 0.0
      %6089 = vmatpush1.msra.mxu0 %v5887
      %6090 = vmatprep.subr.mxu0 0.0
      %6091 = vmatpush1.msra.mxu0 %v5889
      %6092 = vmatprep.subr.mxu0 0.0
      %6093 = vmatpush1.msra.mxu0 %v5891
      %6094 = vmatprep.subr.mxu0 0.0
      %6095 = vmatpush1.msra.mxu0 %v5893
      %6096 = vmatprep.subr.mxu0 0.0
      %6097 = vmatpush1.msra.mxu0 %v5895
      %6098 = vmatprep.subr.mxu0 0.0
      %6099 = vmatpush1.msra.mxu0 %v5897
      %6100 = vmatprep.subr.mxu0 0.0
      %6101 = vmatpush1.msra.mxu0 %v5966
      %6102 = vmatprep.mubr.f32.mxu0 %v5964
      %6103 = vmatmul.mubr.f32.gmra.mrb[0].mxu0 %v5770
      %v6104 = vpop.f32.mrb[0].mxu0
      %v6105 = vadd.f32 %v6035, %v6104
      %v6106 = vpop.f32.mrb[0].mxu0
      %6107 = vdwg.mxu0
      %v6108 = vadd.f32 %v5766, %v6105
      %v6109 = vld [vmem:[%s6] sm:$0xff]
      %6111 = vset.pattern.permute.xlu0 0
      %6112 = vperm.xlu0 %6111, %v6109
      %v6113 = vpop.permute.xlu0 %6112
      %v6115 = vadd.f32 %v6108, %v6113
      %v6116 = vmax.f32 %v6115, 0.0
      %vm6117 = vcmask 64512
      %v6118 = vsel %vm6117, %v6116, 0.0
      %6119 = vadd.xlane.f32.xlu0 %v6118
      %v6120 = vpop.xlane.xlu0 %6119
      %v6121 = vmul.f32 %v6120, 0.125
      %vm6122 = vcmask 7168
      %6123 = vst.msk [vmem:[%s276] sm:$0xff] %vm6122, %v6121
      %p6124 = scmp.lt.s32.totalorder %s18, 1
      %s6125 = scalar_select %p6124, %s18, 1
      %s6126 = smul.addr %s6125, 8
      %s6127 = scalar_lea.vmem %s7, %s6126
      // Predicated region
      $region49: #{tpu_custom_call.1} parent=47 // pred_check
        %p6128 = pneg %p188
      $region50: #{tpu_custom_call.1} parent=47 // pred_check_branch
        %6130 = sbr.rel (%p6128) target = $region52
      $region51: #{tpu_custom_call.1} parent=47 // pred_region
        _
      $region52: #{tpu_custom_call.1} parent=47 // pred_fallthru
        _
    $region48: #{tpu_custom_call.1} parent=5 // pred_fallthru
      _
    %p6131 = scmp.le.s32.totalorder 2, %s13
    // Predicated region
    $region53: #{tpu_custom_call.1} parent=5 // pred_check
      %p6132 = pneg %p6131
    $region54: #{tpu_custom_call.1} parent=5 // pred_check_branch
      %6134 = sbr.rel (%p6132) target = $region56
    $region55: #{tpu_custom_call.1} parent=5 // pred_region
      %s6135 = ssub.s32 %s13, 2
      // Predicated region
      $region57: #{tpu_custom_call.1} parent=55 // pred_check
        %p6136 = pneg %p194
      $region58: #{tpu_custom_call.1} parent=55 // pred_check_branch
        %6138 = sbr.rel (%p6136) target = $region60
      $region59: #{tpu_custom_call.1} parent=55 // pred_region
        %p6139 = scmp.lt.s32.totalorder %s19, 1
        %s6140 = scalar_select %p6139, %s19, 1
        %s6141 = smul.addr %s6140, 8
        %s6142 = scalar_lea.vmem %s7, %s6141
      $region60: #{tpu_custom_call.1} parent=55 // pred_fallthru
        _
    $region56: #{tpu_custom_call.1} parent=5 // pred_fallthru
      _
  $region6: #{tpu_custom_call.1} parent=0 // loop_footer
    %s17 = sadd.s32 1, %s13
  $region7: #{tpu_custom_call.1} parent=0 // loop_footer_branch
    %12 = sbr.rel target = $region3
  $region8: #{tpu_custom_call.1} parent=0 // loop_exit
    _

</llo_original>
